<compile_context>
chip_gen: v6e
topology: v6e:2x2x1
jax: 0.10.0
libtpu: 0.0.40
codegen_flags: <defaults>
</compile_context>

<pallas_src>
import functools

import numpy as np
import jax
import jax.numpy as jnp
from jax.experimental import pallas as pl
from jax.experimental.pallas import tpu as pltpu

LANE = 128


def _softplus(x):
    # numerically-stable softplus, all f32 VPU/EUP ops
    return jnp.maximum(x, 0.0) + jnp.log1p(jnp.exp(-jnp.abs(x)))


# ---------------------------------------------------------------------------
# Fused Pallas kernel: full NeuralGCDE forward
#   h = gcn1(x)                                 (no activation)
#   h = relu-GCN(h)  x num_other                (encoder stack)
#   h = RK4 solve of dh/dt = GCN_b(softplus(GCN_a(h)))   (unrolled, dt static)
#   o = gcn2(h)                                 (no activation)
# ---------------------------------------------------------------------------
def _fused_gcde_kernel(a_ref, x_ref, *rest, num_other, dts):
    # rest layout: w1, b1, (w, b)*num_other, wa, ba, wb, bb, w2, b2, o_ref
    w1_ref, b1_ref = rest[0], rest[1]
    other_refs = rest[2:2 + 2 * num_other]
    base = 2 + 2 * num_other
    wa_ref, ba_ref, wb_ref, bb_ref, w2_ref, b2_ref = rest[base:base + 6]
    o_ref = rest[base + 6]

    a = a_ref[...]                      # bf16 A_hat, resident for the whole forward
    n = a.shape[0]

    def gcn(h, w, b, activation=None):
        # MXU operands in bf16, f32 accumulation; bias add / activation in f32.
        hw = jnp.dot(h.astype(jnp.bfloat16), w, preferred_element_type=jnp.float32)
        z = jnp.dot(a, hw.astype(jnp.bfloat16),
                    preferred_element_type=jnp.float32) + b
        if activation == "relu":
            z = jnp.maximum(z, 0.0)
        elif activation == "softplus":
            z = _softplus(z)
        return z

    # ----- encoder -----
    h = gcn(x_ref[...], w1_ref[...], b1_ref[...], activation=None)
    for li in range(num_other):
        h = gcn(h, other_refs[2 * li][...], other_refs[2 * li + 1][...],
                activation="relu")

    # ----- ODE vector-field params, hoisted out of the unrolled time loop -----
    wa = wa_ref[...]                                        # bf16
    wb = wb_ref[...]                                        # bf16
    ba = jnp.broadcast_to(ba_ref[...], (n, wa.shape[1]))    # f32, broadcast once
    bb = jnp.broadcast_to(bb_ref[...], (n, wb.shape[1]))    # f32, broadcast once

    def vector_field(hh):
        z = jnp.dot(a,
                    jnp.dot(hh.astype(jnp.bfloat16), wa,
                            preferred_element_type=jnp.float32).astype(jnp.bfloat16),
                    preferred_element_type=jnp.float32) + ba
        z = _softplus(z)
        return jnp.dot(a,
                       jnp.dot(z.astype(jnp.bfloat16), wb,
                               preferred_element_type=jnp.float32).astype(jnp.bfloat16),
                       preferred_element_type=jnp.float32) + bb

    # ----- RK4 time loop, statically unrolled; dt are compile-time Python floats -----
    for dt in dts:
        half_dt = 0.5 * dt
        dt_over_6 = dt / 6.0
        k1 = vector_field(h)
        k2 = vector_field(h + half_dt * k1)
        k3 = vector_field(h + half_dt * k2)
        k4 = vector_field(h + dt * k3)
        h = h + dt_over_6 * (k1 + 2.0 * k2 + 2.0 * k3 + k4)

    # ----- decoder (lane-dense padded output store) -----
    o_ref[...] = gcn(h, w2_ref[...], b2_ref[...], activation=None).astype(o_ref.dtype)


# ---------------------------------------------------------------------------
# Wrapper: pads feature dims to 128 lanes, casts MXU operands to bf16,
# bakes the dt schedule, attaches a cost estimate, slices the output.
# ---------------------------------------------------------------------------
def _ceil_lane(d):
    return ((d + LANE - 1) // LANE) * LANE


def _pad_mat(m, rows, cols, dtype):
    m = jnp.asarray(m, dtype)
    return jnp.pad(m, ((0, rows - m.shape[0]), (0, cols - m.shape[1])))


def _pad_bias(b, cols):
    b = jnp.asarray(b, jnp.float32).reshape(1, -1)
    return jnp.pad(b, ((0, 0), (0, cols - b.shape[1])))


def neural_gcde_forward(params, a_hat, x, t_span):
    # dt schedule is static (as in the module's usage) -> bake as Python constants.
    ts = np.asarray(jax.device_get(t_span), dtype=np.float64)
    dts = tuple(float(d) for d in (ts[1:] - ts[:-1]))
    num_steps = len(dts)
    num_other = len(params["other"])

    n, in_feats = x.shape
    hidden = params["w1"].shape[1]
    gcn_hidden = params["wa"].shape[1]
    out_feats = params["w2"].shape[1]

    in_p = _ceil_lane(in_feats)
    hid_p = _ceil_lane(hidden)
    gcn_p = _ceil_lane(gcn_hidden)
    out_p = _ceil_lane(out_feats)

    # bf16 MXU operands (weights, A_hat, input); f32 biases.
    args = [
        jnp.asarray(a_hat, jnp.bfloat16),
        _pad_mat(x, n, in_p, jnp.bfloat16),
        _pad_mat(params["w1"], in_p, hid_p, jnp.bfloat16),
        _pad_bias(params["b1"], hid_p),
    ]
    for w, b in params["other"]:
        args += [_pad_mat(w, hid_p, hid_p, jnp.bfloat16), _pad_bias(b, hid_p)]
    args += [
        _pad_mat(params["wa"], hid_p, gcn_p, jnp.bfloat16), _pad_bias(params["ba"], gcn_p),
        _pad_mat(params["wb"], gcn_p, hid_p, jnp.bfloat16), _pad_bias(params["bb"], hid_p),
        _pad_mat(params["w2"], hid_p, out_p, jnp.bfloat16), _pad_bias(params["b2"], out_p),
    ]

    # Advisory cost estimate for XLA scheduling around the fused call.
    n_gcn = 2 + num_other + 8 * num_steps        # every GCN layer = 2 matmuls
    flops = int(n_gcn * (2 * n * hid_p * hid_p + 2 * n * n * hid_p))
    transcendentals = int(4 * num_steps * n * gcn_p * 2)
    bytes_accessed = int(sum(int(np.prod(a.shape)) * a.dtype.itemsize for a in args)
                         + n * out_p * 4)
    cost = pl.CostEstimate(flops=flops, transcendentals=transcendentals,
                           bytes_accessed=bytes_accessed)

    out = pl.pallas_call(
        functools.partial(_fused_gcde_kernel, num_other=num_other, dts=dts),
        out_shape=jax.ShapeDtypeStruct((n, out_p), jnp.float32),
        in_specs=[pl.BlockSpec(memory_space=pltpu.MemorySpace.VMEM)] * len(args),
        out_specs=pl.BlockSpec(memory_space=pltpu.MemorySpace.VMEM),
        cost_estimate=cost,
    )(*args)
    return out[:, :out_feats]


# ---------------------------------------------------------------------------
# Pure-JAX f32 reference for verification
# ---------------------------------------------------------------------------
def _ref_gcn(a, x, w, b, activation=None):
    h = a @ (x @ w) + b[None, :]
    if activation == "relu":
        h = jnp.maximum(h, 0.0)
    elif activation == "softplus":
        h = _softplus(h)
    return h


def reference_forward(params, a_hat, x, t_span):
    h = _ref_gcn(a_hat, x, params["w1"], params["b1"])
    for w, b in params["other"]:
        h = _ref_gcn(a_hat, h, w, b, activation="relu")

    def f(h):
        z = _ref_gcn(a_hat, h, params["wa"], params["ba"], activation="softplus")
        return _ref_gcn(a_hat, z, params["wb"], params["bb"])

    for i in range(t_span.shape[0] - 1):
        dt = t_span[i + 1] - t_span[i]
        k1 = f(h)
        k2 = f(h + 0.5 * dt * k1)
        k3 = f(h + 0.5 * dt * k2)
        k4 = f(h + dt * k3)
        h = h + (dt / 6.0) * (k1 + 2.0 * k2 + 2.0 * k3 + k4)

    return _ref_gcn(a_hat, h, params["w2"], params["b2"])


# ---------------------------------------------------------------------------
if __name__ == "__main__":
    key = jax.random.PRNGKey(0)

    # small shapes implied by the module
    N = 16            # graph nodes
    IN_FEATS = 8
    HIDDEN = 32
    GCN_HIDDEN = 16
    OUT_FEATS = 4
    NUM_LAYERS = 3    # -> one "other" GCN layer

    # deterministic ring graph with self loops, symmetric normalization A_hat
    adj = jnp.eye(N) + jnp.eye(N, k=1) + jnp.eye(N, k=-1)
    adj = adj.at[0, N - 1].set(1.0).at[N - 1, 0].set(1.0)
    deg = adj.sum(axis=1)
    d_inv_sqrt = 1.0 / jnp.sqrt(deg)
    a_hat = (d_inv_sqrt[:, None] * adj * d_inv_sqrt[None, :]).astype(jnp.float32)

    # deterministic parameter init (Glorot-ish)
    ks = jax.random.split(key, 10)

    def glorot(k, shape):
        scale = jnp.sqrt(2.0 / (shape[0] + shape[1]))
        return (jax.random.normal(k, shape, jnp.float32) * scale).astype(jnp.float32)

    params = {
        "w1": glorot(ks[0], (IN_FEATS, HIDDEN)),
        "b1": 0.01 * jax.random.normal(ks[1], (HIDDEN,), jnp.float32),
        "other": [
            (glorot(ks[2], (HIDDEN, HIDDEN)),
             0.01 * jax.random.normal(ks[3], (HIDDEN,), jnp.float32))
        ],
        "wa": glorot(ks[4], (HIDDEN, GCN_HIDDEN)),
        "ba": 0.01 * jax.random.normal(ks[5], (GCN_HIDDEN,), jnp.float32),
        "wb": glorot(ks[6], (GCN_HIDDEN, HIDDEN)),
        "bb": 0.01 * jax.random.normal(ks[7], (HIDDEN,), jnp.float32),
        "w2": glorot(ks[8], (HIDDEN, OUT_FEATS)),
        "b2": 0.01 * jax.random.normal(ks[9], (OUT_FEATS,), jnp.float32),
    }

    # input node features and t_span (4 RK4 steps over [0, 1])
    x = jax.random.normal(jax.random.PRNGKey(1), (N, IN_FEATS), jnp.float32)
    t_span = jnp.linspace(0.0, 1.0, 5).astype(jnp.float32)

    out = jax.block_until_ready(neural_gcde_forward(params, a_hat, x, t_span))
    ref = reference_forward(params, a_hat, x, t_span)

    assert out.shape == (N, OUT_FEATS)
    # bf16 MXU operands (f32 accumulation/state) -> loosened tolerance vs the f32 reference.
    assert jnp.allclose(out, ref, atol=5e-2, rtol=5e-2), "mismatch vs reference"

    print("KERNEL_OK")
</pallas_src>

<mosaic_0001>
module attributes {stable_mosaic.version = 11 : i64} {
  func.func @_fused_gcde_kernel(%arg0: memref<16x16xbf16, #tpu.memory_space<vmem>>, %arg1: memref<16x128xbf16, #tpu.memory_space<vmem>>, %arg2: memref<128x128xbf16, #tpu.memory_space<vmem>>, %arg3: memref<1x128xf32, #tpu.memory_space<vmem>>, %arg4: memref<128x128xbf16, #tpu.memory_space<vmem>>, %arg5: memref<1x128xf32, #tpu.memory_space<vmem>>, %arg6: memref<128x128xbf16, #tpu.memory_space<vmem>>, %arg7: memref<1x128xf32, #tpu.memory_space<vmem>>, %arg8: memref<128x128xbf16, #tpu.memory_space<vmem>>, %arg9: memref<1x128xf32, #tpu.memory_space<vmem>>, %arg10: memref<128x128xbf16, #tpu.memory_space<vmem>>, %arg11: memref<1x128xf32, #tpu.memory_space<vmem>>, %arg12: memref<16x128xf32, #tpu.memory_space<vmem>>) attributes {dimension_semantics = [], scalar_prefetch = 0 : i64, scratch_operands = 0 : i64, tpu.core_type = #tpu.core_type<tc>} {
    %c0 = arith.constant 0 : index
    %c0_0 = arith.constant 0 : index
    %0 = vector.load %arg0[%c0, %c0_0] : memref<16x16xbf16, #tpu.memory_space<vmem>>, vector<16x16xbf16>
    %c0_1 = arith.constant 0 : index
    %c0_2 = arith.constant 0 : index
    %1 = vector.load %arg1[%c0_1, %c0_2] : memref<16x128xbf16, #tpu.memory_space<vmem>>, vector<16x128xbf16>
    %c0_3 = arith.constant 0 : index
    %c0_4 = arith.constant 0 : index
    %2 = vector.load %arg2[%c0_3, %c0_4] : memref<128x128xbf16, #tpu.memory_space<vmem>>, vector<128x128xbf16>
    %c0_5 = arith.constant 0 : index
    %c0_6 = arith.constant 0 : index
    %3 = vector.load %arg3[%c0_5, %c0_6] : memref<1x128xf32, #tpu.memory_space<vmem>>, vector<1x128xf32>
    %cst = arith.constant dense<0.000000e+00> : vector<16x128xf32>
    %4 = tpu.matmul %1, %2, %cst {dimension_numbers = #tpu.dot_dimension_numbers<[1], [0], [0], [1], [0, 0, 1, 1], [], []>} : vector<16x128xbf16>, vector<128x128xbf16>, vector<16x128xf32> -> vector<16x128xf32>
    %5 = arith.truncf %4 : vector<16x128xf32> to vector<16x128xbf16>
    %cst_7 = arith.constant dense<0.000000e+00> : vector<16x128xf32>
    %6 = tpu.matmul %0, %5, %cst_7 {dimension_numbers = #tpu.dot_dimension_numbers<[1], [0], [0], [1], [0, 0, 1, 1], [], []>} : vector<16x16xbf16>, vector<16x128xbf16>, vector<16x128xf32> -> vector<16x128xf32>
    %7 = vector.broadcast %3 : vector<1x128xf32> to vector<16x128xf32>
    %8 = arith.addf %6, %7 : vector<16x128xf32>
    %c0_8 = arith.constant 0 : index
    %c0_9 = arith.constant 0 : index
    %9 = vector.load %arg4[%c0_8, %c0_9] : memref<128x128xbf16, #tpu.memory_space<vmem>>, vector<128x128xbf16>
    %c0_10 = arith.constant 0 : index
    %c0_11 = arith.constant 0 : index
    %10 = vector.load %arg5[%c0_10, %c0_11] : memref<1x128xf32, #tpu.memory_space<vmem>>, vector<1x128xf32>
    %11 = arith.truncf %8 : vector<16x128xf32> to vector<16x128xbf16>
    %cst_12 = arith.constant dense<0.000000e+00> : vector<16x128xf32>
    %12 = tpu.matmul %11, %9, %cst_12 {dimension_numbers = #tpu.dot_dimension_numbers<[1], [0], [0], [1], [0, 0, 1, 1], [], []>} : vector<16x128xbf16>, vector<128x128xbf16>, vector<16x128xf32> -> vector<16x128xf32>
    %13 = arith.truncf %12 : vector<16x128xf32> to vector<16x128xbf16>
    %cst_13 = arith.constant dense<0.000000e+00> : vector<16x128xf32>
    %14 = tpu.matmul %0, %13, %cst_13 {dimension_numbers = #tpu.dot_dimension_numbers<[1], [0], [0], [1], [0, 0, 1, 1], [], []>} : vector<16x16xbf16>, vector<16x128xbf16>, vector<16x128xf32> -> vector<16x128xf32>
    %15 = vector.broadcast %10 : vector<1x128xf32> to vector<16x128xf32>
    %16 = arith.addf %14, %15 : vector<16x128xf32>
    %cst_14 = arith.constant 0.000000e+00 : f32
    %17 = vector.broadcast %cst_14 : f32 to vector<16x128xf32>
    %18 = arith.maximumf %16, %17 : vector<16x128xf32>
    %c0_15 = arith.constant 0 : index
    %c0_16 = arith.constant 0 : index
    %19 = vector.load %arg6[%c0_15, %c0_16] : memref<128x128xbf16, #tpu.memory_space<vmem>>, vector<128x128xbf16>
    %c0_17 = arith.constant 0 : index
    %c0_18 = arith.constant 0 : index
    %20 = vector.load %arg8[%c0_17, %c0_18] : memref<128x128xbf16, #tpu.memory_space<vmem>>, vector<128x128xbf16>
    %c0_19 = arith.constant 0 : index
    %c0_20 = arith.constant 0 : index
    %21 = vector.load %arg7[%c0_19, %c0_20] : memref<1x128xf32, #tpu.memory_space<vmem>>, vector<1x128xf32>
    %22 = vector.shape_cast %21 : vector<1x128xf32> to vector<1x128xf32>
    %23 = vector.broadcast %22 : vector<1x128xf32> to vector<16x128xf32>
    %c0_21 = arith.constant 0 : index
    %c0_22 = arith.constant 0 : index
    %24 = vector.load %arg9[%c0_21, %c0_22] : memref<1x128xf32, #tpu.memory_space<vmem>>, vector<1x128xf32>
    %25 = vector.shape_cast %24 : vector<1x128xf32> to vector<1x128xf32>
    %26 = vector.broadcast %25 : vector<1x128xf32> to vector<16x128xf32>
    %27 = arith.truncf %18 : vector<16x128xf32> to vector<16x128xbf16>
    %cst_23 = arith.constant dense<0.000000e+00> : vector<16x128xf32>
    %28 = tpu.matmul %27, %19, %cst_23 {dimension_numbers = #tpu.dot_dimension_numbers<[1], [0], [0], [1], [0, 0, 1, 1], [], []>} : vector<16x128xbf16>, vector<128x128xbf16>, vector<16x128xf32> -> vector<16x128xf32>
    %29 = arith.truncf %28 : vector<16x128xf32> to vector<16x128xbf16>
    %cst_24 = arith.constant dense<0.000000e+00> : vector<16x128xf32>
    %30 = tpu.matmul %0, %29, %cst_24 {dimension_numbers = #tpu.dot_dimension_numbers<[1], [0], [0], [1], [0, 0, 1, 1], [], []>} : vector<16x16xbf16>, vector<16x128xbf16>, vector<16x128xf32> -> vector<16x128xf32>
    %31 = arith.addf %30, %23 : vector<16x128xf32>
    %cst_25 = arith.constant 0.000000e+00 : f32
    %32 = vector.broadcast %cst_25 : f32 to vector<16x128xf32>
    %33 = arith.maximumf %31, %32 : vector<16x128xf32>
    %34 = math.absf %31 : vector<16x128xf32>
    %cst_26 = arith.constant 0.000000e+00 : f32
    %35 = vector.broadcast %cst_26 : f32 to vector<16x128xf32>
    %36 = arith.subf %35, %34 : vector<16x128xf32>
    %37 = math.exp %36 : vector<16x128xf32>
    %38 = math.log1p %37 : vector<16x128xf32>
    %39 = arith.addf %33, %38 : vector<16x128xf32>
    %40 = arith.truncf %39 : vector<16x128xf32> to vector<16x128xbf16>
    %cst_27 = arith.constant dense<0.000000e+00> : vector<16x128xf32>
    %41 = tpu.matmul %40, %20, %cst_27 {dimension_numbers = #tpu.dot_dimension_numbers<[1], [0], [0], [1], [0, 0, 1, 1], [], []>} : vector<16x128xbf16>, vector<128x128xbf16>, vector<16x128xf32> -> vector<16x128xf32>
    %42 = arith.truncf %41 : vector<16x128xf32> to vector<16x128xbf16>
    %cst_28 = arith.constant dense<0.000000e+00> : vector<16x128xf32>
    %43 = tpu.matmul %0, %42, %cst_28 {dimension_numbers = #tpu.dot_dimension_numbers<[1], [0], [0], [1], [0, 0, 1, 1], [], []>} : vector<16x16xbf16>, vector<16x128xbf16>, vector<16x128xf32> -> vector<16x128xf32>
    %44 = arith.addf %43, %26 : vector<16x128xf32>
    %cst_29 = arith.constant 1.250000e-01 : f32
    %45 = vector.broadcast %cst_29 : f32 to vector<16x128xf32>
    %46 = arith.mulf %45, %44 : vector<16x128xf32>
    %47 = arith.addf %18, %46 : vector<16x128xf32>
    %48 = arith.truncf %47 : vector<16x128xf32> to vector<16x128xbf16>
    %cst_30 = arith.constant dense<0.000000e+00> : vector<16x128xf32>
    %49 = tpu.matmul %48, %19, %cst_30 {dimension_numbers = #tpu.dot_dimension_numbers<[1], [0], [0], [1], [0, 0, 1, 1], [], []>} : vector<16x128xbf16>, vector<128x128xbf16>, vector<16x128xf32> -> vector<16x128xf32>
    %50 = arith.truncf %49 : vector<16x128xf32> to vector<16x128xbf16>
    %cst_31 = arith.constant dense<0.000000e+00> : vector<16x128xf32>
    %51 = tpu.matmul %0, %50, %cst_31 {dimension_numbers = #tpu.dot_dimension_numbers<[1], [0], [0], [1], [0, 0, 1, 1], [], []>} : vector<16x16xbf16>, vector<16x128xbf16>, vector<16x128xf32> -> vector<16x128xf32>
    %52 = arith.addf %51, %23 : vector<16x128xf32>
    %cst_32 = arith.constant 0.000000e+00 : f32
    %53 = vector.broadcast %cst_32 : f32 to vector<16x128xf32>
    %54 = arith.maximumf %52, %53 : vector<16x128xf32>
    %55 = math.absf %52 : vector<16x128xf32>
    %cst_33 = arith.constant 0.000000e+00 : f32
    %56 = vector.broadcast %cst_33 : f32 to vector<16x128xf32>
    %57 = arith.subf %56, %55 : vector<16x128xf32>
    %58 = math.exp %57 : vector<16x128xf32>
    %59 = math.log1p %58 : vector<16x128xf32>
    %60 = arith.addf %54, %59 : vector<16x128xf32>
    %61 = arith.truncf %60 : vector<16x128xf32> to vector<16x128xbf16>
    %cst_34 = arith.constant dense<0.000000e+00> : vector<16x128xf32>
    %62 = tpu.matmul %61, %20, %cst_34 {dimension_numbers = #tpu.dot_dimension_numbers<[1], [0], [0], [1], [0, 0, 1, 1], [], []>} : vector<16x128xbf16>, vector<128x128xbf16>, vector<16x128xf32> -> vector<16x128xf32>
    %63 = arith.truncf %62 : vector<16x128xf32> to vector<16x128xbf16>
    %cst_35 = arith.constant dense<0.000000e+00> : vector<16x128xf32>
    %64 = tpu.matmul %0, %63, %cst_35 {dimension_numbers = #tpu.dot_dimension_numbers<[1], [0], [0], [1], [0, 0, 1, 1], [], []>} : vector<16x16xbf16>, vector<16x128xbf16>, vector<16x128xf32> -> vector<16x128xf32>
    %65 = arith.addf %64, %26 : vector<16x128xf32>
    %cst_36 = arith.constant 1.250000e-01 : f32
    %66 = vector.broadcast %cst_36 : f32 to vector<16x128xf32>
    %67 = arith.mulf %66, %65 : vector<16x128xf32>
    %68 = arith.addf %18, %67 : vector<16x128xf32>
    %69 = arith.truncf %68 : vector<16x128xf32> to vector<16x128xbf16>
    %cst_37 = arith.constant dense<0.000000e+00> : vector<16x128xf32>
    %70 = tpu.matmul %69, %19, %cst_37 {dimension_numbers = #tpu.dot_dimension_numbers<[1], [0], [0], [1], [0, 0, 1, 1], [], []>} : vector<16x128xbf16>, vector<128x128xbf16>, vector<16x128xf32> -> vector<16x128xf32>
    %71 = arith.truncf %70 : vector<16x128xf32> to vector<16x128xbf16>
    %cst_38 = arith.constant dense<0.000000e+00> : vector<16x128xf32>
    %72 = tpu.matmul %0, %71, %cst_38 {dimension_numbers = #tpu.dot_dimension_numbers<[1], [0], [0], [1], [0, 0, 1, 1], [], []>} : vector<16x16xbf16>, vector<16x128xbf16>, vector<16x128xf32> -> vector<16x128xf32>
    %73 = arith.addf %72, %23 : vector<16x128xf32>
    %cst_39 = arith.constant 0.000000e+00 : f32
    %74 = vector.broadcast %cst_39 : f32 to vector<16x128xf32>
    %75 = arith.maximumf %73, %74 : vector<16x128xf32>
    %76 = math.absf %73 : vector<16x128xf32>
    %cst_40 = arith.constant 0.000000e+00 : f32
    %77 = vector.broadcast %cst_40 : f32 to vector<16x128xf32>
    %78 = arith.subf %77, %76 : vector<16x128xf32>
    %79 = math.exp %78 : vector<16x128xf32>
    %80 = math.log1p %79 : vector<16x128xf32>
    %81 = arith.addf %75, %80 : vector<16x128xf32>
    %82 = arith.truncf %81 : vector<16x128xf32> to vector<16x128xbf16>
    %cst_41 = arith.constant dense<0.000000e+00> : vector<16x128xf32>
    %83 = tpu.matmul %82, %20, %cst_41 {dimension_numbers = #tpu.dot_dimension_numbers<[1], [0], [0], [1], [0, 0, 1, 1], [], []>} : vector<16x128xbf16>, vector<128x128xbf16>, vector<16x128xf32> -> vector<16x128xf32>
    %84 = arith.truncf %83 : vector<16x128xf32> to vector<16x128xbf16>
    %cst_42 = arith.constant dense<0.000000e+00> : vector<16x128xf32>
    %85 = tpu.matmul %0, %84, %cst_42 {dimension_numbers = #tpu.dot_dimension_numbers<[1], [0], [0], [1], [0, 0, 1, 1], [], []>} : vector<16x16xbf16>, vector<16x128xbf16>, vector<16x128xf32> -> vector<16x128xf32>
    %86 = arith.addf %85, %26 : vector<16x128xf32>
    %cst_43 = arith.constant 2.500000e-01 : f32
    %87 = vector.broadcast %cst_43 : f32 to vector<16x128xf32>
    %88 = arith.mulf %87, %86 : vector<16x128xf32>
    %89 = arith.addf %18, %88 : vector<16x128xf32>
    %90 = arith.truncf %89 : vector<16x128xf32> to vector<16x128xbf16>
    %cst_44 = arith.constant dense<0.000000e+00> : vector<16x128xf32>
    %91 = tpu.matmul %90, %19, %cst_44 {dimension_numbers = #tpu.dot_dimension_numbers<[1], [0], [0], [1], [0, 0, 1, 1], [], []>} : vector<16x128xbf16>, vector<128x128xbf16>, vector<16x128xf32> -> vector<16x128xf32>
    %92 = arith.truncf %91 : vector<16x128xf32> to vector<16x128xbf16>
    %cst_45 = arith.constant dense<0.000000e+00> : vector<16x128xf32>
    %93 = tpu.matmul %0, %92, %cst_45 {dimension_numbers = #tpu.dot_dimension_numbers<[1], [0], [0], [1], [0, 0, 1, 1], [], []>} : vector<16x16xbf16>, vector<16x128xbf16>, vector<16x128xf32> -> vector<16x128xf32>
    %94 = arith.addf %93, %23 : vector<16x128xf32>
    %cst_46 = arith.constant 0.000000e+00 : f32
    %95 = vector.broadcast %cst_46 : f32 to vector<16x128xf32>
    %96 = arith.maximumf %94, %95 : vector<16x128xf32>
    %97 = math.absf %94 : vector<16x128xf32>
    %cst_47 = arith.constant 0.000000e+00 : f32
    %98 = vector.broadcast %cst_47 : f32 to vector<16x128xf32>
    %99 = arith.subf %98, %97 : vector<16x128xf32>
    %100 = math.exp %99 : vector<16x128xf32>
    %101 = math.log1p %100 : vector<16x128xf32>
    %102 = arith.addf %96, %101 : vector<16x128xf32>
    %103 = arith.truncf %102 : vector<16x128xf32> to vector<16x128xbf16>
    %cst_48 = arith.constant dense<0.000000e+00> : vector<16x128xf32>
    %104 = tpu.matmul %103, %20, %cst_48 {dimension_numbers = #tpu.dot_dimension_numbers<[1], [0], [0], [1], [0, 0, 1, 1], [], []>} : vector<16x128xbf16>, vector<128x128xbf16>, vector<16x128xf32> -> vector<16x128xf32>
    %105 = arith.truncf %104 : vector<16x128xf32> to vector<16x128xbf16>
    %cst_49 = arith.constant dense<0.000000e+00> : vector<16x128xf32>
    %106 = tpu.matmul %0, %105, %cst_49 {dimension_numbers = #tpu.dot_dimension_numbers<[1], [0], [0], [1], [0, 0, 1, 1], [], []>} : vector<16x16xbf16>, vector<16x128xbf16>, vector<16x128xf32> -> vector<16x128xf32>
    %107 = arith.addf %106, %26 : vector<16x128xf32>
    %cst_50 = arith.constant 2.000000e+00 : f32
    %108 = vector.broadcast %cst_50 : f32 to vector<16x128xf32>
    %109 = arith.mulf %108, %65 : vector<16x128xf32>
    %110 = arith.addf %44, %109 : vector<16x128xf32>
    %cst_51 = arith.constant 2.000000e+00 : f32
    %111 = vector.broadcast %cst_51 : f32 to vector<16x128xf32>
    %112 = arith.mulf %111, %86 : vector<16x128xf32>
    %113 = arith.addf %110, %112 : vector<16x128xf32>
    %114 = arith.addf %113, %107 : vector<16x128xf32>
    %cst_52 = arith.constant 0.0416666679 : f32
    %115 = vector.broadcast %cst_52 : f32 to vector<16x128xf32>
    %116 = arith.mulf %115, %114 : vector<16x128xf32>
    %117 = arith.addf %18, %116 : vector<16x128xf32>
    %118 = arith.truncf %117 : vector<16x128xf32> to vector<16x128xbf16>
    %cst_53 = arith.constant dense<0.000000e+00> : vector<16x128xf32>
    %119 = tpu.matmul %118, %19, %cst_53 {dimension_numbers = #tpu.dot_dimension_numbers<[1], [0], [0], [1], [0, 0, 1, 1], [], []>} : vector<16x128xbf16>, vector<128x128xbf16>, vector<16x128xf32> -> vector<16x128xf32>
    %120 = arith.truncf %119 : vector<16x128xf32> to vector<16x128xbf16>
    %cst_54 = arith.constant dense<0.000000e+00> : vector<16x128xf32>
    %121 = tpu.matmul %0, %120, %cst_54 {dimension_numbers = #tpu.dot_dimension_numbers<[1], [0], [0], [1], [0, 0, 1, 1], [], []>} : vector<16x16xbf16>, vector<16x128xbf16>, vector<16x128xf32> -> vector<16x128xf32>
    %122 = arith.addf %121, %23 : vector<16x128xf32>
    %cst_55 = arith.constant 0.000000e+00 : f32
    %123 = vector.broadcast %cst_55 : f32 to vector<16x128xf32>
    %124 = arith.maximumf %122, %123 : vector<16x128xf32>
    %125 = math.absf %122 : vector<16x128xf32>
    %cst_56 = arith.constant 0.000000e+00 : f32
    %126 = vector.broadcast %cst_56 : f32 to vector<16x128xf32>
    %127 = arith.subf %126, %125 : vector<16x128xf32>
    %128 = math.exp %127 : vector<16x128xf32>
    %129 = math.log1p %128 : vector<16x128xf32>
    %130 = arith.addf %124, %129 : vector<16x128xf32>
    %131 = arith.truncf %130 : vector<16x128xf32> to vector<16x128xbf16>
    %cst_57 = arith.constant dense<0.000000e+00> : vector<16x128xf32>
    %132 = tpu.matmul %131, %20, %cst_57 {dimension_numbers = #tpu.dot_dimension_numbers<[1], [0], [0], [1], [0, 0, 1, 1], [], []>} : vector<16x128xbf16>, vector<128x128xbf16>, vector<16x128xf32> -> vector<16x128xf32>
    %133 = arith.truncf %132 : vector<16x128xf32> to vector<16x128xbf16>
    %cst_58 = arith.constant dense<0.000000e+00> : vector<16x128xf32>
    %134 = tpu.matmul %0, %133, %cst_58 {dimension_numbers = #tpu.dot_dimension_numbers<[1], [0], [0], [1], [0, 0, 1, 1], [], []>} : vector<16x16xbf16>, vector<16x128xbf16>, vector<16x128xf32> -> vector<16x128xf32>
    %135 = arith.addf %134, %26 : vector<16x128xf32>
    %cst_59 = arith.constant 1.250000e-01 : f32
    %136 = vector.broadcast %cst_59 : f32 to vector<16x128xf32>
    %137 = arith.mulf %136, %135 : vector<16x128xf32>
    %138 = arith.addf %117, %137 : vector<16x128xf32>
    %139 = arith.truncf %138 : vector<16x128xf32> to vector<16x128xbf16>
    %cst_60 = arith.constant dense<0.000000e+00> : vector<16x128xf32>
    %140 = tpu.matmul %139, %19, %cst_60 {dimension_numbers = #tpu.dot_dimension_numbers<[1], [0], [0], [1], [0, 0, 1, 1], [], []>} : vector<16x128xbf16>, vector<128x128xbf16>, vector<16x128xf32> -> vector<16x128xf32>
    %141 = arith.truncf %140 : vector<16x128xf32> to vector<16x128xbf16>
    %cst_61 = arith.constant dense<0.000000e+00> : vector<16x128xf32>
    %142 = tpu.matmul %0, %141, %cst_61 {dimension_numbers = #tpu.dot_dimension_numbers<[1], [0], [0], [1], [0, 0, 1, 1], [], []>} : vector<16x16xbf16>, vector<16x128xbf16>, vector<16x128xf32> -> vector<16x128xf32>
    %143 = arith.addf %142, %23 : vector<16x128xf32>
    %cst_62 = arith.constant 0.000000e+00 : f32
    %144 = vector.broadcast %cst_62 : f32 to vector<16x128xf32>
    %145 = arith.maximumf %143, %144 : vector<16x128xf32>
    %146 = math.absf %143 : vector<16x128xf32>
    %cst_63 = arith.constant 0.000000e+00 : f32
    %147 = vector.broadcast %cst_63 : f32 to vector<16x128xf32>
    %148 = arith.subf %147, %146 : vector<16x128xf32>
    %149 = math.exp %148 : vector<16x128xf32>
    %150 = math.log1p %149 : vector<16x128xf32>
    %151 = arith.addf %145, %150 : vector<16x128xf32>
    %152 = arith.truncf %151 : vector<16x128xf32> to vector<16x128xbf16>
    %cst_64 = arith.constant dense<0.000000e+00> : vector<16x128xf32>
    %153 = tpu.matmul %152, %20, %cst_64 {dimension_numbers = #tpu.dot_dimension_numbers<[1], [0], [0], [1], [0, 0, 1, 1], [], []>} : vector<16x128xbf16>, vector<128x128xbf16>, vector<16x128xf32> -> vector<16x128xf32>
    %154 = arith.truncf %153 : vector<16x128xf32> to vector<16x128xbf16>
    %cst_65 = arith.constant dense<0.000000e+00> : vector<16x128xf32>
    %155 = tpu.matmul %0, %154, %cst_65 {dimension_numbers = #tpu.dot_dimension_numbers<[1], [0], [0], [1], [0, 0, 1, 1], [], []>} : vector<16x16xbf16>, vector<16x128xbf16>, vector<16x128xf32> -> vector<16x128xf32>
    %156 = arith.addf %155, %26 : vector<16x128xf32>
    %cst_66 = arith.constant 1.250000e-01 : f32
    %157 = vector.broadcast %cst_66 : f32 to vector<16x128xf32>
    %158 = arith.mulf %157, %156 : vector<16x128xf32>
    %159 = arith.addf %117, %158 : vector<16x128xf32>
    %160 = arith.truncf %159 : vector<16x128xf32> to vector<16x128xbf16>
    %cst_67 = arith.constant dense<0.000000e+00> : vector<16x128xf32>
    %161 = tpu.matmul %160, %19, %cst_67 {dimension_numbers = #tpu.dot_dimension_numbers<[1], [0], [0], [1], [0, 0, 1, 1], [], []>} : vector<16x128xbf16>, vector<128x128xbf16>, vector<16x128xf32> -> vector<16x128xf32>
    %162 = arith.truncf %161 : vector<16x128xf32> to vector<16x128xbf16>
    %cst_68 = arith.constant dense<0.000000e+00> : vector<16x128xf32>
    %163 = tpu.matmul %0, %162, %cst_68 {dimension_numbers = #tpu.dot_dimension_numbers<[1], [0], [0], [1], [0, 0, 1, 1], [], []>} : vector<16x16xbf16>, vector<16x128xbf16>, vector<16x128xf32> -> vector<16x128xf32>
    %164 = arith.addf %163, %23 : vector<16x128xf32>
    %cst_69 = arith.constant 0.000000e+00 : f32
    %165 = vector.broadcast %cst_69 : f32 to vector<16x128xf32>
    %166 = arith.maximumf %164, %165 : vector<16x128xf32>
    %167 = math.absf %164 : vector<16x128xf32>
    %cst_70 = arith.constant 0.000000e+00 : f32
    %168 = vector.broadcast %cst_70 : f32 to vector<16x128xf32>
    %169 = arith.subf %168, %167 : vector<16x128xf32>
    %170 = math.exp %169 : vector<16x128xf32>
    %171 = math.log1p %170 : vector<16x128xf32>
    %172 = arith.addf %166, %171 : vector<16x128xf32>
    %173 = arith.truncf %172 : vector<16x128xf32> to vector<16x128xbf16>
    %cst_71 = arith.constant dense<0.000000e+00> : vector<16x128xf32>
    %174 = tpu.matmul %173, %20, %cst_71 {dimension_numbers = #tpu.dot_dimension_numbers<[1], [0], [0], [1], [0, 0, 1, 1], [], []>} : vector<16x128xbf16>, vector<128x128xbf16>, vector<16x128xf32> -> vector<16x128xf32>
    %175 = arith.truncf %174 : vector<16x128xf32> to vector<16x128xbf16>
    %cst_72 = arith.constant dense<0.000000e+00> : vector<16x128xf32>
    %176 = tpu.matmul %0, %175, %cst_72 {dimension_numbers = #tpu.dot_dimension_numbers<[1], [0], [0], [1], [0, 0, 1, 1], [], []>} : vector<16x16xbf16>, vector<16x128xbf16>, vector<16x128xf32> -> vector<16x128xf32>
    %177 = arith.addf %176, %26 : vector<16x128xf32>
    %cst_73 = arith.constant 2.500000e-01 : f32
    %178 = vector.broadcast %cst_73 : f32 to vector<16x128xf32>
    %179 = arith.mulf %178, %177 : vector<16x128xf32>
    %180 = arith.addf %117, %179 : vector<16x128xf32>
    %181 = arith.truncf %180 : vector<16x128xf32> to vector<16x128xbf16>
    %cst_74 = arith.constant dense<0.000000e+00> : vector<16x128xf32>
    %182 = tpu.matmul %181, %19, %cst_74 {dimension_numbers = #tpu.dot_dimension_numbers<[1], [0], [0], [1], [0, 0, 1, 1], [], []>} : vector<16x128xbf16>, vector<128x128xbf16>, vector<16x128xf32> -> vector<16x128xf32>
    %183 = arith.truncf %182 : vector<16x128xf32> to vector<16x128xbf16>
    %cst_75 = arith.constant dense<0.000000e+00> : vector<16x128xf32>
    %184 = tpu.matmul %0, %183, %cst_75 {dimension_numbers = #tpu.dot_dimension_numbers<[1], [0], [0], [1], [0, 0, 1, 1], [], []>} : vector<16x16xbf16>, vector<16x128xbf16>, vector<16x128xf32> -> vector<16x128xf32>
    %185 = arith.addf %184, %23 : vector<16x128xf32>
    %cst_76 = arith.constant 0.000000e+00 : f32
    %186 = vector.broadcast %cst_76 : f32 to vector<16x128xf32>
    %187 = arith.maximumf %185, %186 : vector<16x128xf32>
    %188 = math.absf %185 : vector<16x128xf32>
    %cst_77 = arith.constant 0.000000e+00 : f32
    %189 = vector.broadcast %cst_77 : f32 to vector<16x128xf32>
    %190 = arith.subf %189, %188 : vector<16x128xf32>
    %191 = math.exp %190 : vector<16x128xf32>
    %192 = math.log1p %191 : vector<16x128xf32>
    %193 = arith.addf %187, %192 : vector<16x128xf32>
    %194 = arith.truncf %193 : vector<16x128xf32> to vector<16x128xbf16>
    %cst_78 = arith.constant dense<0.000000e+00> : vector<16x128xf32>
    %195 = tpu.matmul %194, %20, %cst_78 {dimension_numbers = #tpu.dot_dimension_numbers<[1], [0], [0], [1], [0, 0, 1, 1], [], []>} : vector<16x128xbf16>, vector<128x128xbf16>, vector<16x128xf32> -> vector<16x128xf32>
    %196 = arith.truncf %195 : vector<16x128xf32> to vector<16x128xbf16>
    %cst_79 = arith.constant dense<0.000000e+00> : vector<16x128xf32>
    %197 = tpu.matmul %0, %196, %cst_79 {dimension_numbers = #tpu.dot_dimension_numbers<[1], [0], [0], [1], [0, 0, 1, 1], [], []>} : vector<16x16xbf16>, vector<16x128xbf16>, vector<16x128xf32> -> vector<16x128xf32>
    %198 = arith.addf %197, %26 : vector<16x128xf32>
    %cst_80 = arith.constant 2.000000e+00 : f32
    %199 = vector.broadcast %cst_80 : f32 to vector<16x128xf32>
    %200 = arith.mulf %199, %156 : vector<16x128xf32>
    %201 = arith.addf %135, %200 : vector<16x128xf32>
    %cst_81 = arith.constant 2.000000e+00 : f32
    %202 = vector.broadcast %cst_81 : f32 to vector<16x128xf32>
    %203 = arith.mulf %202, %177 : vector<16x128xf32>
    %204 = arith.addf %201, %203 : vector<16x128xf32>
    %205 = arith.addf %204, %198 : vector<16x128xf32>
    %cst_82 = arith.constant 0.0416666679 : f32
    %206 = vector.broadcast %cst_82 : f32 to vector<16x128xf32>
    %207 = arith.mulf %206, %205 : vector<16x128xf32>
    %208 = arith.addf %117, %207 : vector<16x128xf32>
    %209 = arith.truncf %208 : vector<16x128xf32> to vector<16x128xbf16>
    %cst_83 = arith.constant dense<0.000000e+00> : vector<16x128xf32>
    %210 = tpu.matmul %209, %19, %cst_83 {dimension_numbers = #tpu.dot_dimension_numbers<[1], [0], [0], [1], [0, 0, 1, 1], [], []>} : vector<16x128xbf16>, vector<128x128xbf16>, vector<16x128xf32> -> vector<16x128xf32>
    %211 = arith.truncf %210 : vector<16x128xf32> to vector<16x128xbf16>
    %cst_84 = arith.constant dense<0.000000e+00> : vector<16x128xf32>
    %212 = tpu.matmul %0, %211, %cst_84 {dimension_numbers = #tpu.dot_dimension_numbers<[1], [0], [0], [1], [0, 0, 1, 1], [], []>} : vector<16x16xbf16>, vector<16x128xbf16>, vector<16x128xf32> -> vector<16x128xf32>
    %213 = arith.addf %212, %23 : vector<16x128xf32>
    %cst_85 = arith.constant 0.000000e+00 : f32
    %214 = vector.broadcast %cst_85 : f32 to vector<16x128xf32>
    %215 = arith.maximumf %213, %214 : vector<16x128xf32>
    %216 = math.absf %213 : vector<16x128xf32>
    %cst_86 = arith.constant 0.000000e+00 : f32
    %217 = vector.broadcast %cst_86 : f32 to vector<16x128xf32>
    %218 = arith.subf %217, %216 : vector<16x128xf32>
    %219 = math.exp %218 : vector<16x128xf32>
    %220 = math.log1p %219 : vector<16x128xf32>
    %221 = arith.addf %215, %220 : vector<16x128xf32>
    %222 = arith.truncf %221 : vector<16x128xf32> to vector<16x128xbf16>
    %cst_87 = arith.constant dense<0.000000e+00> : vector<16x128xf32>
    %223 = tpu.matmul %222, %20, %cst_87 {dimension_numbers = #tpu.dot_dimension_numbers<[1], [0], [0], [1], [0, 0, 1, 1], [], []>} : vector<16x128xbf16>, vector<128x128xbf16>, vector<16x128xf32> -> vector<16x128xf32>
    %224 = arith.truncf %223 : vector<16x128xf32> to vector<16x128xbf16>
    %cst_88 = arith.constant dense<0.000000e+00> : vector<16x128xf32>
    %225 = tpu.matmul %0, %224, %cst_88 {dimension_numbers = #tpu.dot_dimension_numbers<[1], [0], [0], [1], [0, 0, 1, 1], [], []>} : vector<16x16xbf16>, vector<16x128xbf16>, vector<16x128xf32> -> vector<16x128xf32>
    %226 = arith.addf %225, %26 : vector<16x128xf32>
    %cst_89 = arith.constant 1.250000e-01 : f32
    %227 = vector.broadcast %cst_89 : f32 to vector<16x128xf32>
    %228 = arith.mulf %227, %226 : vector<16x128xf32>
    %229 = arith.addf %208, %228 : vector<16x128xf32>
    %230 = arith.truncf %229 : vector<16x128xf32> to vector<16x128xbf16>
    %cst_90 = arith.constant dense<0.000000e+00> : vector<16x128xf32>
    %231 = tpu.matmul %230, %19, %cst_90 {dimension_numbers = #tpu.dot_dimension_numbers<[1], [0], [0], [1], [0, 0, 1, 1], [], []>} : vector<16x128xbf16>, vector<128x128xbf16>, vector<16x128xf32> -> vector<16x128xf32>
    %232 = arith.truncf %231 : vector<16x128xf32> to vector<16x128xbf16>
    %cst_91 = arith.constant dense<0.000000e+00> : vector<16x128xf32>
    %233 = tpu.matmul %0, %232, %cst_91 {dimension_numbers = #tpu.dot_dimension_numbers<[1], [0], [0], [1], [0, 0, 1, 1], [], []>} : vector<16x16xbf16>, vector<16x128xbf16>, vector<16x128xf32> -> vector<16x128xf32>
    %234 = arith.addf %233, %23 : vector<16x128xf32>
    %cst_92 = arith.constant 0.000000e+00 : f32
    %235 = vector.broadcast %cst_92 : f32 to vector<16x128xf32>
    %236 = arith.maximumf %234, %235 : vector<16x128xf32>
    %237 = math.absf %234 : vector<16x128xf32>
    %cst_93 = arith.constant 0.000000e+00 : f32
    %238 = vector.broadcast %cst_93 : f32 to vector<16x128xf32>
    %239 = arith.subf %238, %237 : vector<16x128xf32>
    %240 = math.exp %239 : vector<16x128xf32>
    %241 = math.log1p %240 : vector<16x128xf32>
    %242 = arith.addf %236, %241 : vector<16x128xf32>
    %243 = arith.truncf %242 : vector<16x128xf32> to vector<16x128xbf16>
    %cst_94 = arith.constant dense<0.000000e+00> : vector<16x128xf32>
    %244 = tpu.matmul %243, %20, %cst_94 {dimension_numbers = #tpu.dot_dimension_numbers<[1], [0], [0], [1], [0, 0, 1, 1], [], []>} : vector<16x128xbf16>, vector<128x128xbf16>, vector<16x128xf32> -> vector<16x128xf32>
    %245 = arith.truncf %244 : vector<16x128xf32> to vector<16x128xbf16>
    %cst_95 = arith.constant dense<0.000000e+00> : vector<16x128xf32>
    %246 = tpu.matmul %0, %245, %cst_95 {dimension_numbers = #tpu.dot_dimension_numbers<[1], [0], [0], [1], [0, 0, 1, 1], [], []>} : vector<16x16xbf16>, vector<16x128xbf16>, vector<16x128xf32> -> vector<16x128xf32>
    %247 = arith.addf %246, %26 : vector<16x128xf32>
    %cst_96 = arith.constant 1.250000e-01 : f32
    %248 = vector.broadcast %cst_96 : f32 to vector<16x128xf32>
    %249 = arith.mulf %248, %247 : vector<16x128xf32>
    %250 = arith.addf %208, %249 : vector<16x128xf32>
    %251 = arith.truncf %250 : vector<16x128xf32> to vector<16x128xbf16>
    %cst_97 = arith.constant dense<0.000000e+00> : vector<16x128xf32>
    %252 = tpu.matmul %251, %19, %cst_97 {dimension_numbers = #tpu.dot_dimension_numbers<[1], [0], [0], [1], [0, 0, 1, 1], [], []>} : vector<16x128xbf16>, vector<128x128xbf16>, vector<16x128xf32> -> vector<16x128xf32>
    %253 = arith.truncf %252 : vector<16x128xf32> to vector<16x128xbf16>
    %cst_98 = arith.constant dense<0.000000e+00> : vector<16x128xf32>
    %254 = tpu.matmul %0, %253, %cst_98 {dimension_numbers = #tpu.dot_dimension_numbers<[1], [0], [0], [1], [0, 0, 1, 1], [], []>} : vector<16x16xbf16>, vector<16x128xbf16>, vector<16x128xf32> -> vector<16x128xf32>
    %255 = arith.addf %254, %23 : vector<16x128xf32>
    %cst_99 = arith.constant 0.000000e+00 : f32
    %256 = vector.broadcast %cst_99 : f32 to vector<16x128xf32>
    %257 = arith.maximumf %255, %256 : vector<16x128xf32>
    %258 = math.absf %255 : vector<16x128xf32>
    %cst_100 = arith.constant 0.000000e+00 : f32
    %259 = vector.broadcast %cst_100 : f32 to vector<16x128xf32>
    %260 = arith.subf %259, %258 : vector<16x128xf32>
    %261 = math.exp %260 : vector<16x128xf32>
    %262 = math.log1p %261 : vector<16x128xf32>
    %263 = arith.addf %257, %262 : vector<16x128xf32>
    %264 = arith.truncf %263 : vector<16x128xf32> to vector<16x128xbf16>
    %cst_101 = arith.constant dense<0.000000e+00> : vector<16x128xf32>
    %265 = tpu.matmul %264, %20, %cst_101 {dimension_numbers = #tpu.dot_dimension_numbers<[1], [0], [0], [1], [0, 0, 1, 1], [], []>} : vector<16x128xbf16>, vector<128x128xbf16>, vector<16x128xf32> -> vector<16x128xf32>
    %266 = arith.truncf %265 : vector<16x128xf32> to vector<16x128xbf16>
    %cst_102 = arith.constant dense<0.000000e+00> : vector<16x128xf32>
    %267 = tpu.matmul %0, %266, %cst_102 {dimension_numbers = #tpu.dot_dimension_numbers<[1], [0], [0], [1], [0, 0, 1, 1], [], []>} : vector<16x16xbf16>, vector<16x128xbf16>, vector<16x128xf32> -> vector<16x128xf32>
    %268 = arith.addf %267, %26 : vector<16x128xf32>
    %cst_103 = arith.constant 2.500000e-01 : f32
    %269 = vector.broadcast %cst_103 : f32 to vector<16x128xf32>
    %270 = arith.mulf %269, %268 : vector<16x128xf32>
    %271 = arith.addf %208, %270 : vector<16x128xf32>
    %272 = arith.truncf %271 : vector<16x128xf32> to vector<16x128xbf16>
    %cst_104 = arith.constant dense<0.000000e+00> : vector<16x128xf32>
    %273 = tpu.matmul %272, %19, %cst_104 {dimension_numbers = #tpu.dot_dimension_numbers<[1], [0], [0], [1], [0, 0, 1, 1], [], []>} : vector<16x128xbf16>, vector<128x128xbf16>, vector<16x128xf32> -> vector<16x128xf32>
    %274 = arith.truncf %273 : vector<16x128xf32> to vector<16x128xbf16>
    %cst_105 = arith.constant dense<0.000000e+00> : vector<16x128xf32>
    %275 = tpu.matmul %0, %274, %cst_105 {dimension_numbers = #tpu.dot_dimension_numbers<[1], [0], [0], [1], [0, 0, 1, 1], [], []>} : vector<16x16xbf16>, vector<16x128xbf16>, vector<16x128xf32> -> vector<16x128xf32>
    %276 = arith.addf %275, %23 : vector<16x128xf32>
    %cst_106 = arith.constant 0.000000e+00 : f32
    %277 = vector.broadcast %cst_106 : f32 to vector<16x128xf32>
    %278 = arith.maximumf %276, %277 : vector<16x128xf32>
    %279 = math.absf %276 : vector<16x128xf32>
    %cst_107 = arith.constant 0.000000e+00 : f32
    %280 = vector.broadcast %cst_107 : f32 to vector<16x128xf32>
    %281 = arith.subf %280, %279 : vector<16x128xf32>
    %282 = math.exp %281 : vector<16x128xf32>
    %283 = math.log1p %282 : vector<16x128xf32>
    %284 = arith.addf %278, %283 : vector<16x128xf32>
    %285 = arith.truncf %284 : vector<16x128xf32> to vector<16x128xbf16>
    %cst_108 = arith.constant dense<0.000000e+00> : vector<16x128xf32>
    %286 = tpu.matmul %285, %20, %cst_108 {dimension_numbers = #tpu.dot_dimension_numbers<[1], [0], [0], [1], [0, 0, 1, 1], [], []>} : vector<16x128xbf16>, vector<128x128xbf16>, vector<16x128xf32> -> vector<16x128xf32>
    %287 = arith.truncf %286 : vector<16x128xf32> to vector<16x128xbf16>
    %cst_109 = arith.constant dense<0.000000e+00> : vector<16x128xf32>
    %288 = tpu.matmul %0, %287, %cst_109 {dimension_numbers = #tpu.dot_dimension_numbers<[1], [0], [0], [1], [0, 0, 1, 1], [], []>} : vector<16x16xbf16>, vector<16x128xbf16>, vector<16x128xf32> -> vector<16x128xf32>
    %289 = arith.addf %288, %26 : vector<16x128xf32>
    %cst_110 = arith.constant 2.000000e+00 : f32
    %290 = vector.broadcast %cst_110 : f32 to vector<16x128xf32>
    %291 = arith.mulf %290, %247 : vector<16x128xf32>
    %292 = arith.addf %226, %291 : vector<16x128xf32>
    %cst_111 = arith.constant 2.000000e+00 : f32
    %293 = vector.broadcast %cst_111 : f32 to vector<16x128xf32>
    %294 = arith.mulf %293, %268 : vector<16x128xf32>
    %295 = arith.addf %292, %294 : vector<16x128xf32>
    %296 = arith.addf %295, %289 : vector<16x128xf32>
    %cst_112 = arith.constant 0.0416666679 : f32
    %297 = vector.broadcast %cst_112 : f32 to vector<16x128xf32>
    %298 = arith.mulf %297, %296 : vector<16x128xf32>
    %299 = arith.addf %208, %298 : vector<16x128xf32>
    %300 = arith.truncf %299 : vector<16x128xf32> to vector<16x128xbf16>
    %cst_113 = arith.constant dense<0.000000e+00> : vector<16x128xf32>
    %301 = tpu.matmul %300, %19, %cst_113 {dimension_numbers = #tpu.dot_dimension_numbers<[1], [0], [0], [1], [0, 0, 1, 1], [], []>} : vector<16x128xbf16>, vector<128x128xbf16>, vector<16x128xf32> -> vector<16x128xf32>
    %302 = arith.truncf %301 : vector<16x128xf32> to vector<16x128xbf16>
    %cst_114 = arith.constant dense<0.000000e+00> : vector<16x128xf32>
    %303 = tpu.matmul %0, %302, %cst_114 {dimension_numbers = #tpu.dot_dimension_numbers<[1], [0], [0], [1], [0, 0, 1, 1], [], []>} : vector<16x16xbf16>, vector<16x128xbf16>, vector<16x128xf32> -> vector<16x128xf32>
    %304 = arith.addf %303, %23 : vector<16x128xf32>
    %cst_115 = arith.constant 0.000000e+00 : f32
    %305 = vector.broadcast %cst_115 : f32 to vector<16x128xf32>
    %306 = arith.maximumf %304, %305 : vector<16x128xf32>
    %307 = math.absf %304 : vector<16x128xf32>
    %cst_116 = arith.constant 0.000000e+00 : f32
    %308 = vector.broadcast %cst_116 : f32 to vector<16x128xf32>
    %309 = arith.subf %308, %307 : vector<16x128xf32>
    %310 = math.exp %309 : vector<16x128xf32>
    %311 = math.log1p %310 : vector<16x128xf32>
    %312 = arith.addf %306, %311 : vector<16x128xf32>
    %313 = arith.truncf %312 : vector<16x128xf32> to vector<16x128xbf16>
    %cst_117 = arith.constant dense<0.000000e+00> : vector<16x128xf32>
    %314 = tpu.matmul %313, %20, %cst_117 {dimension_numbers = #tpu.dot_dimension_numbers<[1], [0], [0], [1], [0, 0, 1, 1], [], []>} : vector<16x128xbf16>, vector<128x128xbf16>, vector<16x128xf32> -> vector<16x128xf32>
    %315 = arith.truncf %314 : vector<16x128xf32> to vector<16x128xbf16>
    %cst_118 = arith.constant dense<0.000000e+00> : vector<16x128xf32>
    %316 = tpu.matmul %0, %315, %cst_118 {dimension_numbers = #tpu.dot_dimension_numbers<[1], [0], [0], [1], [0, 0, 1, 1], [], []>} : vector<16x16xbf16>, vector<16x128xbf16>, vector<16x128xf32> -> vector<16x128xf32>
    %317 = arith.addf %316, %26 : vector<16x128xf32>
    %cst_119 = arith.constant 1.250000e-01 : f32
    %318 = vector.broadcast %cst_119 : f32 to vector<16x128xf32>
    %319 = arith.mulf %318, %317 : vector<16x128xf32>
    %320 = arith.addf %299, %319 : vector<16x128xf32>
    %321 = arith.truncf %320 : vector<16x128xf32> to vector<16x128xbf16>
    %cst_120 = arith.constant dense<0.000000e+00> : vector<16x128xf32>
    %322 = tpu.matmul %321, %19, %cst_120 {dimension_numbers = #tpu.dot_dimension_numbers<[1], [0], [0], [1], [0, 0, 1, 1], [], []>} : vector<16x128xbf16>, vector<128x128xbf16>, vector<16x128xf32> -> vector<16x128xf32>
    %323 = arith.truncf %322 : vector<16x128xf32> to vector<16x128xbf16>
    %cst_121 = arith.constant dense<0.000000e+00> : vector<16x128xf32>
    %324 = tpu.matmul %0, %323, %cst_121 {dimension_numbers = #tpu.dot_dimension_numbers<[1], [0], [0], [1], [0, 0, 1, 1], [], []>} : vector<16x16xbf16>, vector<16x128xbf16>, vector<16x128xf32> -> vector<16x128xf32>
    %325 = arith.addf %324, %23 : vector<16x128xf32>
    %cst_122 = arith.constant 0.000000e+00 : f32
    %326 = vector.broadcast %cst_122 : f32 to vector<16x128xf32>
    %327 = arith.maximumf %325, %326 : vector<16x128xf32>
    %328 = math.absf %325 : vector<16x128xf32>
    %cst_123 = arith.constant 0.000000e+00 : f32
    %329 = vector.broadcast %cst_123 : f32 to vector<16x128xf32>
    %330 = arith.subf %329, %328 : vector<16x128xf32>
    %331 = math.exp %330 : vector<16x128xf32>
    %332 = math.log1p %331 : vector<16x128xf32>
    %333 = arith.addf %327, %332 : vector<16x128xf32>
    %334 = arith.truncf %333 : vector<16x128xf32> to vector<16x128xbf16>
    %cst_124 = arith.constant dense<0.000000e+00> : vector<16x128xf32>
    %335 = tpu.matmul %334, %20, %cst_124 {dimension_numbers = #tpu.dot_dimension_numbers<[1], [0], [0], [1], [0, 0, 1, 1], [], []>} : vector<16x128xbf16>, vector<128x128xbf16>, vector<16x128xf32> -> vector<16x128xf32>
    %336 = arith.truncf %335 : vector<16x128xf32> to vector<16x128xbf16>
    %cst_125 = arith.constant dense<0.000000e+00> : vector<16x128xf32>
    %337 = tpu.matmul %0, %336, %cst_125 {dimension_numbers = #tpu.dot_dimension_numbers<[1], [0], [0], [1], [0, 0, 1, 1], [], []>} : vector<16x16xbf16>, vector<16x128xbf16>, vector<16x128xf32> -> vector<16x128xf32>
    %338 = arith.addf %337, %26 : vector<16x128xf32>
    %cst_126 = arith.constant 1.250000e-01 : f32
    %339 = vector.broadcast %cst_126 : f32 to vector<16x128xf32>
    %340 = arith.mulf %339, %338 : vector<16x128xf32>
    %341 = arith.addf %299, %340 : vector<16x128xf32>
    %342 = arith.truncf %341 : vector<16x128xf32> to vector<16x128xbf16>
    %cst_127 = arith.constant dense<0.000000e+00> : vector<16x128xf32>
    %343 = tpu.matmul %342, %19, %cst_127 {dimension_numbers = #tpu.dot_dimension_numbers<[1], [0], [0], [1], [0, 0, 1, 1], [], []>} : vector<16x128xbf16>, vector<128x128xbf16>, vector<16x128xf32> -> vector<16x128xf32>
    %344 = arith.truncf %343 : vector<16x128xf32> to vector<16x128xbf16>
    %cst_128 = arith.constant dense<0.000000e+00> : vector<16x128xf32>
    %345 = tpu.matmul %0, %344, %cst_128 {dimension_numbers = #tpu.dot_dimension_numbers<[1], [0], [0], [1], [0, 0, 1, 1], [], []>} : vector<16x16xbf16>, vector<16x128xbf16>, vector<16x128xf32> -> vector<16x128xf32>
    %346 = arith.addf %345, %23 : vector<16x128xf32>
    %cst_129 = arith.constant 0.000000e+00 : f32
    %347 = vector.broadcast %cst_129 : f32 to vector<16x128xf32>
    %348 = arith.maximumf %346, %347 : vector<16x128xf32>
    %349 = math.absf %346 : vector<16x128xf32>
    %cst_130 = arith.constant 0.000000e+00 : f32
    %350 = vector.broadcast %cst_130 : f32 to vector<16x128xf32>
    %351 = arith.subf %350, %349 : vector<16x128xf32>
    %352 = math.exp %351 : vector<16x128xf32>
    %353 = math.log1p %352 : vector<16x128xf32>
    %354 = arith.addf %348, %353 : vector<16x128xf32>
    %355 = arith.truncf %354 : vector<16x128xf32> to vector<16x128xbf16>
    %cst_131 = arith.constant dense<0.000000e+00> : vector<16x128xf32>
    %356 = tpu.matmul %355, %20, %cst_131 {dimension_numbers = #tpu.dot_dimension_numbers<[1], [0], [0], [1], [0, 0, 1, 1], [], []>} : vector<16x128xbf16>, vector<128x128xbf16>, vector<16x128xf32> -> vector<16x128xf32>
    %357 = arith.truncf %356 : vector<16x128xf32> to vector<16x128xbf16>
    %cst_132 = arith.constant dense<0.000000e+00> : vector<16x128xf32>
    %358 = tpu.matmul %0, %357, %cst_132 {dimension_numbers = #tpu.dot_dimension_numbers<[1], [0], [0], [1], [0, 0, 1, 1], [], []>} : vector<16x16xbf16>, vector<16x128xbf16>, vector<16x128xf32> -> vector<16x128xf32>
    %359 = arith.addf %358, %26 : vector<16x128xf32>
    %cst_133 = arith.constant 2.500000e-01 : f32
    %360 = vector.broadcast %cst_133 : f32 to vector<16x128xf32>
    %361 = arith.mulf %360, %359 : vector<16x128xf32>
    %362 = arith.addf %299, %361 : vector<16x128xf32>
    %363 = arith.truncf %362 : vector<16x128xf32> to vector<16x128xbf16>
    %cst_134 = arith.constant dense<0.000000e+00> : vector<16x128xf32>
    %364 = tpu.matmul %363, %19, %cst_134 {dimension_numbers = #tpu.dot_dimension_numbers<[1], [0], [0], [1], [0, 0, 1, 1], [], []>} : vector<16x128xbf16>, vector<128x128xbf16>, vector<16x128xf32> -> vector<16x128xf32>
    %365 = arith.truncf %364 : vector<16x128xf32> to vector<16x128xbf16>
    %cst_135 = arith.constant dense<0.000000e+00> : vector<16x128xf32>
    %366 = tpu.matmul %0, %365, %cst_135 {dimension_numbers = #tpu.dot_dimension_numbers<[1], [0], [0], [1], [0, 0, 1, 1], [], []>} : vector<16x16xbf16>, vector<16x128xbf16>, vector<16x128xf32> -> vector<16x128xf32>
    %367 = arith.addf %366, %23 : vector<16x128xf32>
    %cst_136 = arith.constant 0.000000e+00 : f32
    %368 = vector.broadcast %cst_136 : f32 to vector<16x128xf32>
    %369 = arith.maximumf %367, %368 : vector<16x128xf32>
    %370 = math.absf %367 : vector<16x128xf32>
    %cst_137 = arith.constant 0.000000e+00 : f32
    %371 = vector.broadcast %cst_137 : f32 to vector<16x128xf32>
    %372 = arith.subf %371, %370 : vector<16x128xf32>
    %373 = math.exp %372 : vector<16x128xf32>
    %374 = math.log1p %373 : vector<16x128xf32>
    %375 = arith.addf %369, %374 : vector<16x128xf32>
    %376 = arith.truncf %375 : vector<16x128xf32> to vector<16x128xbf16>
    %cst_138 = arith.constant dense<0.000000e+00> : vector<16x128xf32>
    %377 = tpu.matmul %376, %20, %cst_138 {dimension_numbers = #tpu.dot_dimension_numbers<[1], [0], [0], [1], [0, 0, 1, 1], [], []>} : vector<16x128xbf16>, vector<128x128xbf16>, vector<16x128xf32> -> vector<16x128xf32>
    %378 = arith.truncf %377 : vector<16x128xf32> to vector<16x128xbf16>
    %cst_139 = arith.constant dense<0.000000e+00> : vector<16x128xf32>
    %379 = tpu.matmul %0, %378, %cst_139 {dimension_numbers = #tpu.dot_dimension_numbers<[1], [0], [0], [1], [0, 0, 1, 1], [], []>} : vector<16x16xbf16>, vector<16x128xbf16>, vector<16x128xf32> -> vector<16x128xf32>
    %380 = arith.addf %379, %26 : vector<16x128xf32>
    %cst_140 = arith.constant 2.000000e+00 : f32
    %381 = vector.broadcast %cst_140 : f32 to vector<16x128xf32>
    %382 = arith.mulf %381, %338 : vector<16x128xf32>
    %383 = arith.addf %317, %382 : vector<16x128xf32>
    %cst_141 = arith.constant 2.000000e+00 : f32
    %384 = vector.broadcast %cst_141 : f32 to vector<16x128xf32>
    %385 = arith.mulf %384, %359 : vector<16x128xf32>
    %386 = arith.addf %383, %385 : vector<16x128xf32>
    %387 = arith.addf %386, %380 : vector<16x128xf32>
    %cst_142 = arith.constant 0.0416666679 : f32
    %388 = vector.broadcast %cst_142 : f32 to vector<16x128xf32>
    %389 = arith.mulf %388, %387 : vector<16x128xf32>
    %390 = arith.addf %299, %389 : vector<16x128xf32>
    %c0_143 = arith.constant 0 : index
    %c0_144 = arith.constant 0 : index
    %391 = vector.load %arg10[%c0_143, %c0_144] : memref<128x128xbf16, #tpu.memory_space<vmem>>, vector<128x128xbf16>
    %c0_145 = arith.constant 0 : index
    %c0_146 = arith.constant 0 : index
    %392 = vector.load %arg11[%c0_145, %c0_146] : memref<1x128xf32, #tpu.memory_space<vmem>>, vector<1x128xf32>
    %393 = arith.truncf %390 : vector<16x128xf32> to vector<16x128xbf16>
    %cst_147 = arith.constant dense<0.000000e+00> : vector<16x128xf32>
    %394 = tpu.matmul %393, %391, %cst_147 {dimension_numbers = #tpu.dot_dimension_numbers<[1], [0], [0], [1], [0, 0, 1, 1], [], []>} : vector<16x128xbf16>, vector<128x128xbf16>, vector<16x128xf32> -> vector<16x128xf32>
    %395 = arith.truncf %394 : vector<16x128xf32> to vector<16x128xbf16>
    %cst_148 = arith.constant dense<0.000000e+00> : vector<16x128xf32>
    %396 = tpu.matmul %0, %395, %cst_148 {dimension_numbers = #tpu.dot_dimension_numbers<[1], [0], [0], [1], [0, 0, 1, 1], [], []>} : vector<16x16xbf16>, vector<16x128xbf16>, vector<16x128xf32> -> vector<16x128xf32>
    %397 = vector.broadcast %392 : vector<1x128xf32> to vector<16x128xf32>
    %398 = arith.addf %396, %397 : vector<16x128xf32>
    %c0_149 = arith.constant 0 : index
    %c0_150 = arith.constant 0 : index
    %399 = vector.load %arg12[%c0_149, %c0_150] : memref<16x128xf32, #tpu.memory_space<vmem>>, vector<16x128xf32>
    tpu.vector_store %arg12[%c0_149, %c0_150], %398 {strides = array<i32>} : memref<16x128xf32, #tpu.memory_space<vmem>>, vector<16x128xf32>,
    return
  }
}

</mosaic_0001>

<llo_original>
// kernel: tpu_custom_call.1
$region0: #{tpu_custom_call.1}
  #allocation0 [shape = 'u32[]', space=smem, size = 0x4, offset = 0x4, fixed_abs, tag = 'smem constant byte address 0x4 - core index']
  #allocation1 [shape = 'u32[144,128]{1,0:T(1,128)}', space=vmem, size = 0x12000, scoped, tag = 'internal scratch']
  %s0 = inlined_call_operand.hbm [shape: bf16[16,16], index: 0, kind: input, shape index: {}]
  %s1 = inlined_call_operand.hbm [shape: bf16[16,128], index: 1, kind: input, shape index: {}]
  %s2 = inlined_call_operand.hbm [shape: bf16[128,128], index: 2, kind: input, shape index: {}]
  %s3 = inlined_call_operand.vmem [shape: f32[1,128], index: 3, kind: input, shape index: {}]
  %s4 = inlined_call_operand.hbm [shape: bf16[128,128], index: 4, kind: input, shape index: {}]
  %s5 = inlined_call_operand.vmem [shape: f32[1,128], index: 5, kind: input, shape index: {}]
  %s6 = inlined_call_operand.hbm [shape: bf16[128,128], index: 6, kind: input, shape index: {}]
  %s7 = inlined_call_operand.vmem [shape: f32[1,128], index: 7, kind: input, shape index: {}]
  %s8 = inlined_call_operand.hbm [shape: bf16[128,128], index: 8, kind: input, shape index: {}]
  %s9 = inlined_call_operand.vmem [shape: f32[1,128], index: 9, kind: input, shape index: {}]
  %s10 = inlined_call_operand.hbm [shape: bf16[128,128], index: 10, kind: input, shape index: {}]
  %s11 = inlined_call_operand.vmem [shape: f32[1,128], index: 11, kind: input, shape index: {}]
  %s12 = inlined_call_operand.hbm [shape: f32[16,128], index: 12, kind: output, shape index: {}]
  %s13 = sld [smem:[#allocation0]]
  $region86: #{tpu_custom_call.1} parent=0
    _
  %s15 = ssub.s32 1, %s13
  %s16 = scalar_select 0, %s15, %s13
  $region1: #{tpu_custom_call.1} parent=0
    #allocation2 [shape = 'u8[4096]{0}', space=vmem, size = 0x1000, scoped, tag = 'input window, operand 0, single buffered']
    #allocation3 [shape = 's32[1]{0}', space=sflag, size = 0x4, scoped, tag = 'scoped memory for tpu_custom_call.1']
    #allocation4 [shape = 's32[1]{0}', space=sflag, size = 0x4, scoped, tag = 'scoped memory for tpu_custom_call.1']
    #allocation5 [shape = 'u8[4096]{0}', space=vmem, size = 0x1000, scoped, tag = 'input window, operand 1, single buffered']
    #allocation6 [shape = 's32[1]{0}', space=sflag, size = 0x4, scoped, tag = 'scoped memory for tpu_custom_call.1']
    #allocation7 [shape = 'u8[32768]{0}', space=vmem, size = 0x8000, scoped, tag = 'input window, operand 2, single buffered']
    #allocation8 [shape = 'u8[32768]{0}', space=vmem, size = 0x8000, scoped, tag = 'input window, operand 4, single buffered']
    #allocation9 [shape = 's32[1]{0}', space=sflag, size = 0x4, scoped, tag = 'scoped memory for tpu_custom_call.1']
    #allocation10 [shape = 'u8[32768]{0}', space=vmem, size = 0x8000, scoped, tag = 'input window, operand 6, single buffered']
    #allocation11 [shape = 'u8[32768]{0}', space=vmem, size = 0x8000, scoped, tag = 'input window, operand 8, single buffered']
    #allocation12 [shape = 's32[1]{0}', space=sflag, size = 0x4, scoped, tag = 'scoped memory for tpu_custom_call.1']
    #allocation13 [shape = 'u8[32768]{0}', space=vmem, size = 0x8000, scoped, tag = 'input window, operand 10, single buffered']
    #allocation14 [shape = 'u8[8192]{0}', space=vmem, size = 0x2000, scoped, tag = 'output window, operand 0, single buffered']
    %17 = vsyncpa [#allocation3], 0
    %18 = vsyncpa [#allocation6], 0
    %19 = vsyncpa [#allocation9], 0
    %20 = vsyncpa [#allocation12], 0
    %21 = vsyncpa [#allocation4], 0
    // Predicated region
    $region2: #{tpu_custom_call.1} parent=1 // pred_check
      _
    $region3: #{tpu_custom_call.1} parent=1 // pred_check_branch
      %23 = sbr.rel (0) target = $region5
    $region4: #{tpu_custom_call.1} parent=1 // pred_region
      %s25 = ssub.s32 128, 128
      %26 = vsyncadd [#allocation3], %s25
      %s27 = sshll.u32 [#allocation2], 4
      %s28 = int_to_ptr.vmem [resolvable:$true] %s27
      %33 = dma.hbm_to_vmem [thread:$0]  %s0, 128, %s28, [#allocation3], 64, 64, 4
    $region5: #{tpu_custom_call.1} parent=1 // pred_fallthru
      _
    // Predicated region
    $region6: #{tpu_custom_call.1} parent=1 // pred_check
      _
    $region7: #{tpu_custom_call.1} parent=1 // pred_check_branch
      %35 = sbr.rel (0) target = $region9
    $region8: #{tpu_custom_call.1} parent=1 // pred_region
      %s37 = ssub.s32 128, 128
      %38 = vsyncadd [#allocation6], %s37
      %s39 = sshll.u32 [#allocation5], 4
      %s40 = int_to_ptr.vmem [resolvable:$true] %s39
      %45 = dma.hbm_to_vmem [thread:$0]  %s1, 128, %s40, [#allocation6], 64, 64, 4
    $region9: #{tpu_custom_call.1} parent=1 // pred_fallthru
      _
    // Predicated region
    $region10: #{tpu_custom_call.1} parent=1 // pred_check
      _
    $region11: #{tpu_custom_call.1} parent=1 // pred_check_branch
      %47 = sbr.rel (0) target = $region13
    $region12: #{tpu_custom_call.1} parent=1 // pred_region
      %s49 = ssub.s32 1024, 1024
      %50 = vsyncadd [#allocation6], %s49
      %s51 = sshll.u32 [#allocation7], 4
      %s52 = int_to_ptr.vmem [resolvable:$true] %s51
      %57 = dma.hbm_to_vmem [thread:$0]  %s2, 1024, %s52, [#allocation6], 64, 64, 4
    $region13: #{tpu_custom_call.1} parent=1 // pred_fallthru
      _
    // Predicated region
    $region14: #{tpu_custom_call.1} parent=1 // pred_check
      _
    $region15: #{tpu_custom_call.1} parent=1 // pred_check_branch
      %59 = sbr.rel (0) target = $region17
    $region16: #{tpu_custom_call.1} parent=1 // pred_region
      _
    $region17: #{tpu_custom_call.1} parent=1 // pred_fallthru
      _
    // Predicated region
    $region18: #{tpu_custom_call.1} parent=1 // pred_check
      _
    $region19: #{tpu_custom_call.1} parent=1 // pred_check_branch
      %61 = sbr.rel (0) target = $region21
    $region20: #{tpu_custom_call.1} parent=1 // pred_region
      %s63 = ssub.s32 1024, 1024
      %64 = vsyncadd [#allocation9], %s63
      %s65 = sshll.u32 [#allocation8], 4
      %s66 = int_to_ptr.vmem [resolvable:$true] %s65
      %71 = dma.hbm_to_vmem [thread:$0]  %s4, 1024, %s66, [#allocation9], 64, 64, 4
    $region21: #{tpu_custom_call.1} parent=1 // pred_fallthru
      _
    // Predicated region
    $region22: #{tpu_custom_call.1} parent=1 // pred_check
      _
    $region23: #{tpu_custom_call.1} parent=1 // pred_check_branch
      %73 = sbr.rel (0) target = $region25
    $region24: #{tpu_custom_call.1} parent=1 // pred_region
      _
    $region25: #{tpu_custom_call.1} parent=1 // pred_fallthru
      _
    // Predicated region
    $region26: #{tpu_custom_call.1} parent=1 // pred_check
      _
    $region27: #{tpu_custom_call.1} parent=1 // pred_check_branch
      %75 = sbr.rel (0) target = $region29
    $region28: #{tpu_custom_call.1} parent=1 // pred_region
      %s77 = ssub.s32 1024, 1024
      %78 = vsyncadd [#allocation9], %s77
      %s79 = sshll.u32 [#allocation10], 4
      %s80 = int_to_ptr.vmem [resolvable:$true] %s79
      %85 = dma.hbm_to_vmem [thread:$0]  %s6, 1024, %s80, [#allocation9], 64, 64, 4
    $region29: #{tpu_custom_call.1} parent=1 // pred_fallthru
      _
    // Predicated region
    $region30: #{tpu_custom_call.1} parent=1 // pred_check
      _
    $region31: #{tpu_custom_call.1} parent=1 // pred_check_branch
      %87 = sbr.rel (0) target = $region33
    $region32: #{tpu_custom_call.1} parent=1 // pred_region
      _
    $region33: #{tpu_custom_call.1} parent=1 // pred_fallthru
      _
    // Predicated region
    $region34: #{tpu_custom_call.1} parent=1 // pred_check
      _
    $region35: #{tpu_custom_call.1} parent=1 // pred_check_branch
      %89 = sbr.rel (0) target = $region37
    $region36: #{tpu_custom_call.1} parent=1 // pred_region
      %s91 = ssub.s32 1024, 1024
      %92 = vsyncadd [#allocation12], %s91
      %s93 = sshll.u32 [#allocation11], 4
      %s94 = int_to_ptr.vmem [resolvable:$true] %s93
      %99 = dma.hbm_to_vmem [thread:$0]  %s8, 1024, %s94, [#allocation12], 64, 64, 4
    $region37: #{tpu_custom_call.1} parent=1 // pred_fallthru
      _
    // Predicated region
    $region38: #{tpu_custom_call.1} parent=1 // pred_check
      _
    $region39: #{tpu_custom_call.1} parent=1 // pred_check_branch
      %101 = sbr.rel (0) target = $region41
    $region40: #{tpu_custom_call.1} parent=1 // pred_region
      _
    $region41: #{tpu_custom_call.1} parent=1 // pred_fallthru
      _
    // Predicated region
    $region42: #{tpu_custom_call.1} parent=1 // pred_check
      _
    $region43: #{tpu_custom_call.1} parent=1 // pred_check_branch
      %103 = sbr.rel (0) target = $region45
    $region44: #{tpu_custom_call.1} parent=1 // pred_region
      %s105 = ssub.s32 1024, 1024
      %106 = vsyncadd [#allocation12], %s105
      %s107 = sshll.u32 [#allocation13], 4
      %s108 = int_to_ptr.vmem [resolvable:$true] %s107
      %113 = dma.hbm_to_vmem [thread:$0]  %s10, 1024, %s108, [#allocation12], 64, 64, 4
    $region45: #{tpu_custom_call.1} parent=1 // pred_fallthru
      _
    // Predicated region
    $region46: #{tpu_custom_call.1} parent=1 // pred_check
      _
    $region47: #{tpu_custom_call.1} parent=1 // pred_check_branch
      %115 = sbr.rel (0) target = $region49
    $region48: #{tpu_custom_call.1} parent=1 // pred_region
      _
    $region49: #{tpu_custom_call.1} parent=1 // pred_fallthru
      _
    // Predicated region
    $region50: #{tpu_custom_call.1} parent=1 // pred_check
      _
    $region51: #{tpu_custom_call.1} parent=1 // pred_check_branch
      %117 = sbr.rel (0) target = $region53
    $region52: #{tpu_custom_call.1} parent=1 // pred_region
      %118 = dma.done [#allocation3], 128
    $region53: #{tpu_custom_call.1} parent=1 // pred_fallthru
      _
    // Predicated region
    $region54: #{tpu_custom_call.1} parent=1 // pred_check
      _
    $region55: #{tpu_custom_call.1} parent=1 // pred_check_branch
      %120 = sbr.rel (0) target = $region57
    $region56: #{tpu_custom_call.1} parent=1 // pred_region
      %121 = dma.done [#allocation6], 128
    $region57: #{tpu_custom_call.1} parent=1 // pred_fallthru
      _
    // Predicated region
    $region58: #{tpu_custom_call.1} parent=1 // pred_check
      _
    $region59: #{tpu_custom_call.1} parent=1 // pred_check_branch
      %123 = sbr.rel (0) target = $region61
    $region60: #{tpu_custom_call.1} parent=1 // pred_region
      %124 = dma.done [#allocation6], 1024
    $region61: #{tpu_custom_call.1} parent=1 // pred_fallthru
      _
    // Predicated region
    $region62: #{tpu_custom_call.1} parent=1 // pred_check
      _
    $region63: #{tpu_custom_call.1} parent=1 // pred_check_branch
      %126 = sbr.rel (0) target = $region65
    $region64: #{tpu_custom_call.1} parent=1 // pred_region
      %127 = dma.done [#allocation9], 1024
    $region65: #{tpu_custom_call.1} parent=1 // pred_fallthru
      _
    // Predicated region
    $region66: #{tpu_custom_call.1} parent=1 // pred_check
      _
    $region67: #{tpu_custom_call.1} parent=1 // pred_check_branch
      %129 = sbr.rel (0) target = $region69
    $region68: #{tpu_custom_call.1} parent=1 // pred_region
      %130 = dma.done [#allocation9], 1024
    $region69: #{tpu_custom_call.1} parent=1 // pred_fallthru
      _
    // Predicated region
    $region70: #{tpu_custom_call.1} parent=1 // pred_check
      _
    $region71: #{tpu_custom_call.1} parent=1 // pred_check_branch
      %132 = sbr.rel (0) target = $region73
    $region72: #{tpu_custom_call.1} parent=1 // pred_region
      %133 = dma.done [#allocation12], 1024
    $region73: #{tpu_custom_call.1} parent=1 // pred_fallthru
      _
    // Predicated region
    $region74: #{tpu_custom_call.1} parent=1 // pred_check
      _
    $region75: #{tpu_custom_call.1} parent=1 // pred_check_branch
      %135 = sbr.rel (0) target = $region77
    $region76: #{tpu_custom_call.1} parent=1 // pred_region
      %136 = dma.done [#allocation12], 1024
    $region77: #{tpu_custom_call.1} parent=1 // pred_fallthru
      _
    %v138 = vld [vmem:[#allocation2] sm:$0xf]
    %v139 = vld [vmem:[#allocation2 + $0x4] sm:$0xf]
    %v140 = vld [vmem:[#allocation5] sm:$0xf]
    %v141 = vld [vmem:[#allocation5 + $0x4] sm:$0xf]
    %v142 = vld [vmem:[#allocation7] sm:$0xf]
    %v143 = vld [vmem:[#allocation7 + $0x4] sm:$0xf]
    %v144 = vld [vmem:[#allocation7 + $0x8] sm:$0xf]
    %v145 = vld [vmem:[#allocation7 + $0xc] sm:$0xf]
    %v146 = vld [vmem:[#allocation7 + $0x10] sm:$0xf]
    %v147 = vld [vmem:[#allocation7 + $0x14] sm:$0xf]
    %v148 = vld [vmem:[#allocation7 + $0x18] sm:$0xf]
    %v149 = vld [vmem:[#allocation7 + $0x1c] sm:$0xf]
    %v150 = vld [vmem:[#allocation7 + $0x20] sm:$0xf]
    %v151 = vld [vmem:[#allocation7 + $0x24] sm:$0xf]
    %v152 = vld [vmem:[#allocation7 + $0x28] sm:$0xf]
    %v153 = vld [vmem:[#allocation7 + $0x2c] sm:$0xf]
    %v154 = vld [vmem:[#allocation7 + $0x30] sm:$0xf]
    %v155 = vld [vmem:[#allocation7 + $0x34] sm:$0xf]
    %v156 = vld [vmem:[#allocation7 + $0x38] sm:$0xf]
    %v157 = vld [vmem:[#allocation7 + $0x3c] sm:$0xf]
    %v158 = vld [vmem:[%s3] sm:$0x1]
    %v161 = vunpack.c.l.b16 %v140
    %v162 = vunpack.c.l.b16 %v141
    %v163 = vpack.c.b16 %v162, %v161
    %v181 = vunpack.c.l.b16 %v142
    %v182 = vunpack.c.l.b16 %v143
    %v183 = vunpack.c.l.b16 %v144
    %v184 = vunpack.c.l.b16 %v145
    %v185 = vunpack.c.l.b16 %v146
    %v186 = vunpack.c.l.b16 %v147
    %v187 = vunpack.c.l.b16 %v148
    %v188 = vunpack.c.l.b16 %v149
    %v189 = vunpack.c.l.b16 %v150
    %v190 = vunpack.c.l.b16 %v151
    %v191 = vunpack.c.l.b16 %v152
    %v192 = vunpack.c.l.b16 %v153
    %v193 = vunpack.c.l.b16 %v154
    %v194 = vunpack.c.l.b16 %v155
    %v195 = vunpack.c.l.b16 %v156
    %v196 = vunpack.c.l.b16 %v157
    %v197 = vpack.c.b16 %v182, %v181
    %v198 = vpack.c.b16 %v184, %v183
    %v199 = vpack.c.b16 %v186, %v185
    %v200 = vpack.c.b16 %v188, %v187
    %v201 = vpack.c.b16 %v190, %v189
    %v202 = vpack.c.b16 %v192, %v191
    %v203 = vpack.c.b16 %v194, %v193
    %v204 = vpack.c.b16 %v196, %v195
    %213 = vmatprep.subr.bf16.mxu0 0
    %214 = vmatpush1.bf16.msra.mxu0 %v204
    %215 = vmatprep.subr.bf16.mxu0 0
    %216 = vmatpush1.bf16.msra.mxu0 %v203
    %217 = vmatprep.subr.bf16.mxu0 0
    %218 = vmatpush1.bf16.msra.mxu0 %v202
    %219 = vmatprep.subr.bf16.mxu0 0
    %220 = vmatpush1.bf16.msra.mxu0 %v201
    %221 = vmatprep.subr.bf16.mxu0 0
    %222 = vmatpush1.bf16.msra.mxu0 %v200
    %223 = vmatprep.subr.bf16.mxu0 0
    %224 = vmatpush1.bf16.msra.mxu0 %v199
    %225 = vmatprep.subr.bf16.mxu0 0
    %226 = vmatpush1.bf16.msra.mxu0 %v198
    %227 = vmatprep.subr.bf16.mxu0 0
    %228 = vmatpush1.bf16.msra.mxu0 %v197
    %229 = vmatprep.subr.bf16.mxu0 0
    %230 = vmatpush2.bf16.msra.mxu0 0
    %231 = vmatprep.subr.bf16.mxu0 0
    %232 = vmatpush2.bf16.msra.mxu0 0
    %233 = vmatprep.subr.bf16.mxu0 0
    %234 = vmatpush2.bf16.msra.mxu0 0
    %235 = vmatprep.subr.bf16.mxu0 0
    %236 = vmatpush2.bf16.msra.mxu0 0
    %237 = vmatprep.subr.bf16.mxu0 0
    %238 = vmatpush2.bf16.msra.mxu0 0
    %239 = vmatprep.subr.bf16.mxu0 0
    %240 = vmatpush2.bf16.msra.mxu0 0
    %241 = vmatprep.subr.bf16.mxu0 0
    %242 = vmatpush2.bf16.msra.mxu0 0
    %243 = vmatprep.subr.bf16.mxu0 0
    %244 = vmatpush2.bf16.msra.mxu0 0
    %245 = vmatprep.mubr.bf16.mxu0 0
    %246 = vmatmul.mubr.bf16.gmra.mxu0 %v163
    %v247 = vpop.f32.mrf.mxu0
    %v248 = vadd.f32 0.0, %v247
    %v249 = vpop.f32.mrf.mxu0
    %v250 = vpop.f32.mrf.mxu0
    %v251 = vadd.f32 0.0, %v250
    %v252 = vpop.f32.mrf.mxu0
    %253 = vdwg.mxu0
    %v254 = vpack.c.bf16 %v251, %v248
    %v256 = vlaneseq
    %v257 = vshrl.u32 %v256, 7
    %v258 = vsub.s32 0, %v257
    %v259 = vrot.slane %v158, %v258
    %v263 = vunpack.c.l.b16 %v138
    %v264 = vunpack.c.l.b16 %v139
    %v265 = vpack.c.b16 %v264, %v263
    %vm266 = vcmask 130048
    %v268 = vsel %vm266, %v265, 0
    %270 = vmatprep.subr.bf16.mxu0 0
    %271 = vmatpush1.bf16.msra.mxu0 0
    %272 = vmatprep.subr.bf16.mxu0 0
    %273 = vmatpush1.bf16.msra.mxu0 0
    %274 = vmatprep.subr.bf16.mxu0 0
    %275 = vmatpush1.bf16.msra.mxu0 0
    %276 = vmatprep.subr.bf16.mxu0 0
    %277 = vmatpush1.bf16.msra.mxu0 0
    %278 = vmatprep.subr.bf16.mxu0 0
    %279 = vmatpush1.bf16.msra.mxu0 0
    %280 = vmatprep.subr.bf16.mxu0 0
    %281 = vmatpush1.bf16.msra.mxu0 0
    %282 = vmatprep.subr.bf16.mxu0 0
    %283 = vmatpush1.bf16.msra.mxu0 0
    %284 = vmatprep.subr.bf16.mxu0 0
    %285 = vmatpush1.bf16.msra.mxu0 %v254
    %286 = vmatprep.subr.bf16.mxu0 0
    %287 = vmatpush2.bf16.msra.mxu0 0
    %288 = vmatprep.subr.bf16.mxu0 0
    %289 = vmatpush2.bf16.msra.mxu0 0
    %290 = vmatprep.subr.bf16.mxu0 0
    %291 = vmatpush2.bf16.msra.mxu0 0
    %292 = vmatprep.subr.bf16.mxu0 0
    %293 = vmatpush2.bf16.msra.mxu0 0
    %294 = vmatprep.subr.bf16.mxu0 0
    %295 = vmatpush2.bf16.msra.mxu0 0
    %296 = vmatprep.subr.bf16.mxu0 0
    %297 = vmatpush2.bf16.msra.mxu0 0
    %298 = vmatprep.subr.bf16.mxu0 0
    %299 = vmatpush2.bf16.msra.mxu0 0
    %300 = vmatprep.subr.bf16.mxu0 0
    %301 = vmatpush2.bf16.msra.mxu0 0
    %302 = vmatprep.mubr.bf16.mxu0 0
    %303 = vmatmul.mubr.bf16.gmra.mxu0 %v268
    %v304 = vpop.f32.mrf.mxu0
    %v305 = vadd.f32 %v259, %v304
    %v306 = vpop.f32.mrf.mxu0
    %v307 = vpop.f32.mrf.mxu0
    %v308 = vadd.f32 %v259, %v307
    %v309 = vpop.f32.mrf.mxu0
    %310 = vdwg.mxu0
    %v311 = vld [vmem:[#allocation8] sm:$0xf]
    %v312 = vld [vmem:[#allocation8 + $0x4] sm:$0xf]
    %v313 = vld [vmem:[#allocation8 + $0x8] sm:$0xf]
    %v314 = vld [vmem:[#allocation8 + $0xc] sm:$0xf]
    %v315 = vld [vmem:[#allocation8 + $0x10] sm:$0xf]
    %v316 = vld [vmem:[#allocation8 + $0x14] sm:$0xf]
    %v317 = vld [vmem:[#allocation8 + $0x18] sm:$0xf]
    %v318 = vld [vmem:[#allocation8 + $0x1c] sm:$0xf]
    %v319 = vld [vmem:[#allocation8 + $0x20] sm:$0xf]
    %v320 = vld [vmem:[#allocation8 + $0x24] sm:$0xf]
    %v321 = vld [vmem:[#allocation8 + $0x28] sm:$0xf]
    %v322 = vld [vmem:[#allocation8 + $0x2c] sm:$0xf]
    %v323 = vld [vmem:[#allocation8 + $0x30] sm:$0xf]
    %v324 = vld [vmem:[#allocation8 + $0x34] sm:$0xf]
    %v325 = vld [vmem:[#allocation8 + $0x38] sm:$0xf]
    %v326 = vld [vmem:[#allocation8 + $0x3c] sm:$0xf]
    %v327 = vld [vmem:[%s5] sm:$0x1]
    %v328 = vpack.c.bf16 %v308, %v305
    %v345 = vunpack.c.l.b16 %v311
    %v346 = vunpack.c.l.b16 %v312
    %v347 = vunpack.c.l.b16 %v313
    %v348 = vunpack.c.l.b16 %v314
    %v349 = vunpack.c.l.b16 %v315
    %v350 = vunpack.c.l.b16 %v316
    %v351 = vunpack.c.l.b16 %v317
    %v352 = vunpack.c.l.b16 %v318
    %v353 = vunpack.c.l.b16 %v319
    %v354 = vunpack.c.l.b16 %v320
    %v355 = vunpack.c.l.b16 %v321
    %v356 = vunpack.c.l.b16 %v322
    %v357 = vunpack.c.l.b16 %v323
    %v358 = vunpack.c.l.b16 %v324
    %v359 = vunpack.c.l.b16 %v325
    %v360 = vunpack.c.l.b16 %v326
    %v361 = vpack.c.b16 %v346, %v345
    %v362 = vpack.c.b16 %v348, %v347
    %v363 = vpack.c.b16 %v350, %v349
    %v364 = vpack.c.b16 %v352, %v351
    %v365 = vpack.c.b16 %v354, %v353
    %v366 = vpack.c.b16 %v356, %v355
    %v367 = vpack.c.b16 %v358, %v357
    %v368 = vpack.c.b16 %v360, %v359
    %377 = vmatprep.subr.bf16.mxu0 0
    %378 = vmatpush1.bf16.msra.mxu0 %v368
    %379 = vmatprep.subr.bf16.mxu0 0
    %380 = vmatpush1.bf16.msra.mxu0 %v367
    %381 = vmatprep.subr.bf16.mxu0 0
    %382 = vmatpush1.bf16.msra.mxu0 %v366
    %383 = vmatprep.subr.bf16.mxu0 0
    %384 = vmatpush1.bf16.msra.mxu0 %v365
    %385 = vmatprep.subr.bf16.mxu0 0
    %386 = vmatpush1.bf16.msra.mxu0 %v364
    %387 = vmatprep.subr.bf16.mxu0 0
    %388 = vmatpush1.bf16.msra.mxu0 %v363
    %389 = vmatprep.subr.bf16.mxu0 0
    %390 = vmatpush1.bf16.msra.mxu0 %v362
    %391 = vmatprep.subr.bf16.mxu0 0
    %392 = vmatpush1.bf16.msra.mxu0 %v361
    %393 = vmatprep.subr.bf16.mxu0 0
    %394 = vmatpush2.bf16.msra.mxu0 0
    %395 = vmatprep.subr.bf16.mxu0 0
    %396 = vmatpush2.bf16.msra.mxu0 0
    %397 = vmatprep.subr.bf16.mxu0 0
    %398 = vmatpush2.bf16.msra.mxu0 0
    %399 = vmatprep.subr.bf16.mxu0 0
    %400 = vmatpush2.bf16.msra.mxu0 0
    %401 = vmatprep.subr.bf16.mxu0 0
    %402 = vmatpush2.bf16.msra.mxu0 0
    %403 = vmatprep.subr.bf16.mxu0 0
    %404 = vmatpush2.bf16.msra.mxu0 0
    %405 = vmatprep.subr.bf16.mxu0 0
    %406 = vmatpush2.bf16.msra.mxu0 0
    %407 = vmatprep.subr.bf16.mxu0 0
    %408 = vmatpush2.bf16.msra.mxu0 0
    %409 = vmatprep.mubr.bf16.mxu0 0
    %410 = vmatmul.mubr.bf16.gmra.mxu0 %v328
    %v411 = vpop.f32.mrf.mxu0
    %v412 = vadd.f32 0.0, %v411
    %v413 = vpop.f32.mrf.mxu0
    %v414 = vpop.f32.mrf.mxu0
    %v415 = vadd.f32 0.0, %v414
    %v416 = vpop.f32.mrf.mxu0
    %417 = vdwg.mxu0
    %v418 = vpack.c.bf16 %v415, %v412
    %v420 = vlaneseq
    %v421 = vshrl.u32 %v420, 7
    %v422 = vsub.s32 0, %v421
    %v423 = vrot.slane %v327, %v422
    %425 = vmatprep.subr.bf16.mxu0 0
    %426 = vmatpush1.bf16.msra.mxu0 0
    %427 = vmatprep.subr.bf16.mxu0 0
    %428 = vmatpush1.bf16.msra.mxu0 0
    %429 = vmatprep.subr.bf16.mxu0 0
    %430 = vmatpush1.bf16.msra.mxu0 0
    %431 = vmatprep.subr.bf16.mxu0 0
    %432 = vmatpush1.bf16.msra.mxu0 0
    %433 = vmatprep.subr.bf16.mxu0 0
    %434 = vmatpush1.bf16.msra.mxu0 0
    %435 = vmatprep.subr.bf16.mxu0 0
    %436 = vmatpush1.bf16.msra.mxu0 0
    %437 = vmatprep.subr.bf16.mxu0 0
    %438 = vmatpush1.bf16.msra.mxu0 0
    %439 = vmatprep.subr.bf16.mxu0 0
    %440 = vmatpush1.bf16.msra.mxu0 %v418
    %441 = vmatprep.subr.bf16.mxu0 0
    %442 = vmatpush2.bf16.msra.mxu0 0
    %443 = vmatprep.subr.bf16.mxu0 0
    %444 = vmatpush2.bf16.msra.mxu0 0
    %445 = vmatprep.subr.bf16.mxu0 0
    %446 = vmatpush2.bf16.msra.mxu0 0
    %447 = vmatprep.subr.bf16.mxu0 0
    %448 = vmatpush2.bf16.msra.mxu0 0
    %449 = vmatprep.subr.bf16.mxu0 0
    %450 = vmatpush2.bf16.msra.mxu0 0
    %451 = vmatprep.subr.bf16.mxu0 0
    %452 = vmatpush2.bf16.msra.mxu0 0
    %453 = vmatprep.subr.bf16.mxu0 0
    %454 = vmatpush2.bf16.msra.mxu0 0
    %455 = vmatprep.subr.bf16.mxu0 0
    %456 = vmatpush2.bf16.msra.mxu0 0
    %457 = vmatprep.mubr.bf16.mxu0 0
    %458 = vmatmul.mubr.bf16.gmra.mxu0 %v268
    %v459 = vpop.f32.mrf.mxu0
    %v460 = vadd.f32 %v423, %v459
    %v461 = vpop.f32.mrf.mxu0
    %v462 = vpop.f32.mrf.mxu0
    %v463 = vadd.f32 %v423, %v462
    %v464 = vpop.f32.mrf.mxu0
    %465 = vdwg.mxu0
    %v466 = vmax.f32 %v460, 0.0
    %v467 = vmax.f32 %v463, 0.0
    %v468 = vld [vmem:[#allocation10] sm:$0xf]
    %v469 = vld [vmem:[#allocation10 + $0x4] sm:$0xf]
    %v470 = vld [vmem:[#allocation10 + $0x8] sm:$0xf]
    %v471 = vld [vmem:[#allocation10 + $0xc] sm:$0xf]
    %v472 = vld [vmem:[#allocation10 + $0x10] sm:$0xf]
    %v473 = vld [vmem:[#allocation10 + $0x14] sm:$0xf]
    %v474 = vld [vmem:[#allocation10 + $0x18] sm:$0xf]
    %v475 = vld [vmem:[#allocation10 + $0x1c] sm:$0xf]
    %v476 = vld [vmem:[#allocation10 + $0x20] sm:$0xf]
    %v477 = vld [vmem:[#allocation10 + $0x24] sm:$0xf]
    %v478 = vld [vmem:[#allocation10 + $0x28] sm:$0xf]
    %v479 = vld [vmem:[#allocation10 + $0x2c] sm:$0xf]
    %v480 = vld [vmem:[#allocation10 + $0x30] sm:$0xf]
    %v481 = vld [vmem:[#allocation10 + $0x34] sm:$0xf]
    %v482 = vld [vmem:[#allocation10 + $0x38] sm:$0xf]
    %v483 = vld [vmem:[#allocation10 + $0x3c] sm:$0xf]
    %v484 = vld [vmem:[#allocation11] sm:$0xf]
    %v485 = vld [vmem:[#allocation11 + $0x4] sm:$0xf]
    %v486 = vld [vmem:[#allocation11 + $0x8] sm:$0xf]
    %v487 = vld [vmem:[#allocation11 + $0xc] sm:$0xf]
    %v488 = vld [vmem:[#allocation11 + $0x10] sm:$0xf]
    %v489 = vld [vmem:[#allocation11 + $0x14] sm:$0xf]
    %v490 = vld [vmem:[#allocation11 + $0x18] sm:$0xf]
    %v491 = vld [vmem:[#allocation11 + $0x1c] sm:$0xf]
    %v492 = vld [vmem:[#allocation11 + $0x20] sm:$0xf]
    %v493 = vld [vmem:[#allocation11 + $0x24] sm:$0xf]
    %v494 = vld [vmem:[#allocation11 + $0x28] sm:$0xf]
    %v495 = vld [vmem:[#allocation11 + $0x2c] sm:$0xf]
    %v496 = vld [vmem:[#allocation11 + $0x30] sm:$0xf]
    %v497 = vld [vmem:[#allocation11 + $0x34] sm:$0xf]
    %v498 = vld [vmem:[#allocation11 + $0x38] sm:$0xf]
    %v499 = vld [vmem:[#allocation11 + $0x3c] sm:$0xf]
    %v500 = vld [vmem:[%s7] sm:$0x1]
    %v502 = vlaneseq
    %v503 = vshrl.u32 %v502, 7
    %v504 = vsub.s32 0, %v503
    %v505 = vrot.slane %v500, %v504
    %v507 = vld [vmem:[%s9] sm:$0x1]
    %v509 = vlaneseq
    %v510 = vshrl.u32 %v509, 7
    %v511 = vsub.s32 0, %v510
    %v512 = vrot.slane %v507, %v511
    %v514 = vpack.c.bf16 %v467, %v466
    %v531 = vunpack.c.l.b16 %v468
    %v532 = vunpack.c.l.b16 %v469
    %v533 = vunpack.c.l.b16 %v470
    %v534 = vunpack.c.l.b16 %v471
    %v535 = vunpack.c.l.b16 %v472
    %v536 = vunpack.c.l.b16 %v473
    %v537 = vunpack.c.l.b16 %v474
    %v538 = vunpack.c.l.b16 %v475
    %v539 = vunpack.c.l.b16 %v476
    %v540 = vunpack.c.l.b16 %v477
    %v541 = vunpack.c.l.b16 %v478
    %v542 = vunpack.c.l.b16 %v479
    %v543 = vunpack.c.l.b16 %v480
    %v544 = vunpack.c.l.b16 %v481
    %v545 = vunpack.c.l.b16 %v482
    %v546 = vunpack.c.l.b16 %v483
    %v547 = vpack.c.b16 %v532, %v531
    %v548 = vpack.c.b16 %v534, %v533
    %v549 = vpack.c.b16 %v536, %v535
    %v550 = vpack.c.b16 %v538, %v537
    %v551 = vpack.c.b16 %v540, %v539
    %v552 = vpack.c.b16 %v542, %v541
    %v553 = vpack.c.b16 %v544, %v543
    %v554 = vpack.c.b16 %v546, %v545
    %563 = vmatprep.subr.bf16.mxu0 0
    %564 = vmatpush1.bf16.msra.mxu0 %v554
    %565 = vmatprep.subr.bf16.mxu0 0
    %566 = vmatpush1.bf16.msra.mxu0 %v553
    %567 = vmatprep.subr.bf16.mxu0 0
    %568 = vmatpush1.bf16.msra.mxu0 %v552
    %569 = vmatprep.subr.bf16.mxu0 0
    %570 = vmatpush1.bf16.msra.mxu0 %v551
    %571 = vmatprep.subr.bf16.mxu0 0
    %572 = vmatpush1.bf16.msra.mxu0 %v550
    %573 = vmatprep.subr.bf16.mxu0 0
    %574 = vmatpush1.bf16.msra.mxu0 %v549
    %575 = vmatprep.subr.bf16.mxu0 0
    %576 = vmatpush1.bf16.msra.mxu0 %v548
    %577 = vmatprep.subr.bf16.mxu0 0
    %578 = vmatpush1.bf16.msra.mxu0 %v547
    %579 = vmatprep.subr.bf16.mxu0 0
    %580 = vmatpush2.bf16.msra.mxu0 0
    %581 = vmatprep.subr.bf16.mxu0 0
    %582 = vmatpush2.bf16.msra.mxu0 0
    %583 = vmatprep.subr.bf16.mxu0 0
    %584 = vmatpush2.bf16.msra.mxu0 0
    %585 = vmatprep.subr.bf16.mxu0 0
    %586 = vmatpush2.bf16.msra.mxu0 0
    %587 = vmatprep.subr.bf16.mxu0 0
    %588 = vmatpush2.bf16.msra.mxu0 0
    %589 = vmatprep.subr.bf16.mxu0 0
    %590 = vmatpush2.bf16.msra.mxu0 0
    %591 = vmatprep.subr.bf16.mxu0 0
    %592 = vmatpush2.bf16.msra.mxu0 0
    %593 = vmatprep.subr.bf16.mxu0 0
    %594 = vmatpush2.bf16.msra.mxu0 0
    %595 = vmatprep.mubr.bf16.mxu0 0
    %596 = vmatmul.mubr.bf16.gmra.mxu0 %v514
    %v597 = vpop.f32.mrf.mxu0
    %v598 = vadd.f32 0.0, %v597
    %v599 = vpop.f32.mrf.mxu0
    %v600 = vpop.f32.mrf.mxu0
    %v601 = vadd.f32 0.0, %v600
    %v602 = vpop.f32.mrf.mxu0
    %603 = vdwg.mxu0
    %v604 = vpack.c.bf16 %v601, %v598
    %605 = vmatprep.subr.bf16.mxu0 0
    %606 = vmatpush1.bf16.msra.mxu0 0
    %607 = vmatprep.subr.bf16.mxu0 0
    %608 = vmatpush1.bf16.msra.mxu0 0
    %609 = vmatprep.subr.bf16.mxu0 0
    %610 = vmatpush1.bf16.msra.mxu0 0
    %611 = vmatprep.subr.bf16.mxu0 0
    %612 = vmatpush1.bf16.msra.mxu0 0
    %613 = vmatprep.subr.bf16.mxu0 0
    %614 = vmatpush1.bf16.msra.mxu0 0
    %615 = vmatprep.subr.bf16.mxu0 0
    %616 = vmatpush1.bf16.msra.mxu0 0
    %617 = vmatprep.subr.bf16.mxu0 0
    %618 = vmatpush1.bf16.msra.mxu0 0
    %619 = vmatprep.subr.bf16.mxu0 0
    %620 = vmatpush1.bf16.msra.mxu0 %v604
    %621 = vmatprep.subr.bf16.mxu0 0
    %622 = vmatpush2.bf16.msra.mxu0 0
    %623 = vmatprep.subr.bf16.mxu0 0
    %624 = vmatpush2.bf16.msra.mxu0 0
    %625 = vmatprep.subr.bf16.mxu0 0
    %626 = vmatpush2.bf16.msra.mxu0 0
    %627 = vmatprep.subr.bf16.mxu0 0
    %628 = vmatpush2.bf16.msra.mxu0 0
    %629 = vmatprep.subr.bf16.mxu0 0
    %630 = vmatpush2.bf16.msra.mxu0 0
    %631 = vmatprep.subr.bf16.mxu0 0
    %632 = vmatpush2.bf16.msra.mxu0 0
    %633 = vmatprep.subr.bf16.mxu0 0
    %634 = vmatpush2.bf16.msra.mxu0 0
    %635 = vmatprep.subr.bf16.mxu0 0
    %636 = vmatpush2.bf16.msra.mxu0 0
    %637 = vmatprep.mubr.bf16.mxu0 0
    %638 = vmatmul.mubr.bf16.gmra.mxu0 %v268
    %v639 = vpop.f32.mrf.mxu0
    %v640 = vadd.f32 %v505, %v639
    %v641 = vpop.f32.mrf.mxu0
    %v642 = vpop.f32.mrf.mxu0
    %v643 = vadd.f32 %v505, %v642
    %v644 = vpop.f32.mrf.mxu0
    %645 = vdwg.mxu0
    %v646 = vmax.f32 %v640, 0.0
    %v647 = vmax.f32 %v643, 0.0
    %v648 = vand.u32 2147483647, %v640
    %v649 = vand.u32 2147483647, %v643
    %v650 = vsub.f32 0.0, %v648
    %v651 = vsub.f32 0.0, %v649
    %v652 = vmul.f32 %v650, 1.442695
    %v653 = vpow.pop %v652
    %v654 = vmul.f32 %v651, 1.442695
    %v655 = vpow.pop %v654
    %v656 = vadd.f32 %v653, 1.0
    %v657 = vlog2.pop %v656
    %v658 = vmul.f32 %v657, 0.6931472
    %v659 = vmul.f32 -0.5, %v653
    %v660 = vadd.f32 %v659, 1.0
    %v661 = vmul.f32 %v660, %v653
    %v662 = vand.u32 2147483647, %v653
    %vm663 = vcmp.lt.f32.partialorder %v662, 0.0004427343
    %v664 = vsel %vm663, %v661, %v658
    %v665 = vadd.f32 %v655, 1.0
    %v666 = vlog2.pop %v665
    %v667 = vmul.f32 %v666, 0.6931472
    %v668 = vmul.f32 -0.5, %v655
    %v669 = vadd.f32 %v668, 1.0
    %v670 = vmul.f32 %v669, %v655
    %v671 = vand.u32 2147483647, %v655
    %vm672 = vcmp.lt.f32.partialorder %v671, 0.0004427343
    %v673 = vsel %vm672, %v670, %v667
    %v674 = vadd.f32 %v646, %v664
    %v675 = vadd.f32 %v647, %v673
    %v676 = vpack.c.bf16 %v675, %v674
    %v693 = vunpack.c.l.b16 %v484
    %v694 = vunpack.c.l.b16 %v485
    %v695 = vunpack.c.l.b16 %v486
    %v696 = vunpack.c.l.b16 %v487
    %v697 = vunpack.c.l.b16 %v488
    %v698 = vunpack.c.l.b16 %v489
    %v699 = vunpack.c.l.b16 %v490
    %v700 = vunpack.c.l.b16 %v491
    %v701 = vunpack.c.l.b16 %v492
    %v702 = vunpack.c.l.b16 %v493
    %v703 = vunpack.c.l.b16 %v494
    %v704 = vunpack.c.l.b16 %v495
    %v705 = vunpack.c.l.b16 %v496
    %v706 = vunpack.c.l.b16 %v497
    %v707 = vunpack.c.l.b16 %v498
    %v708 = vunpack.c.l.b16 %v499
    %v709 = vpack.c.b16 %v694, %v693
    %v710 = vpack.c.b16 %v696, %v695
    %v711 = vpack.c.b16 %v698, %v697
    %v712 = vpack.c.b16 %v700, %v699
    %v713 = vpack.c.b16 %v702, %v701
    %v714 = vpack.c.b16 %v704, %v703
    %v715 = vpack.c.b16 %v706, %v705
    %v716 = vpack.c.b16 %v708, %v707
    %725 = vmatprep.subr.bf16.mxu0 0
    %726 = vmatpush1.bf16.msra.mxu0 %v716
    %727 = vmatprep.subr.bf16.mxu0 0
    %728 = vmatpush1.bf16.msra.mxu0 %v715
    %729 = vmatprep.subr.bf16.mxu0 0
    %730 = vmatpush1.bf16.msra.mxu0 %v714
    %731 = vmatprep.subr.bf16.mxu0 0
    %732 = vmatpush1.bf16.msra.mxu0 %v713
    %733 = vmatprep.subr.bf16.mxu0 0
    %734 = vmatpush1.bf16.msra.mxu0 %v712
    %735 = vmatprep.subr.bf16.mxu0 0
    %736 = vmatpush1.bf16.msra.mxu0 %v711
    %737 = vmatprep.subr.bf16.mxu0 0
    %738 = vmatpush1.bf16.msra.mxu0 %v710
    %739 = vmatprep.subr.bf16.mxu0 0
    %740 = vmatpush1.bf16.msra.mxu0 %v709
    %741 = vmatprep.subr.bf16.mxu0 0
    %742 = vmatpush2.bf16.msra.mxu0 0
    %743 = vmatprep.subr.bf16.mxu0 0
    %744 = vmatpush2.bf16.msra.mxu0 0
    %745 = vmatprep.subr.bf16.mxu0 0
    %746 = vmatpush2.bf16.msra.mxu0 0
    %747 = vmatprep.subr.bf16.mxu0 0
    %748 = vmatpush2.bf16.msra.mxu0 0
    %749 = vmatprep.subr.bf16.mxu0 0
    %750 = vmatpush2.bf16.msra.mxu0 0
    %751 = vmatprep.subr.bf16.mxu0 0
    %752 = vmatpush2.bf16.msra.mxu0 0
    %753 = vmatprep.subr.bf16.mxu0 0
    %754 = vmatpush2.bf16.msra.mxu0 0
    %755 = vmatprep.subr.bf16.mxu0 0
    %756 = vmatpush2.bf16.msra.mxu0 0
    %757 = vmatprep.mubr.bf16.mxu0 0
    %758 = vmatmul.mubr.bf16.gmra.mxu0 %v676
    %v759 = vpop.f32.mrf.mxu0
    %v760 = vadd.f32 0.0, %v759
    %v761 = vpop.f32.mrf.mxu0
    %v762 = vpop.f32.mrf.mxu0
    %v763 = vadd.f32 0.0, %v762
    %v764 = vpop.f32.mrf.mxu0
    %765 = vdwg.mxu0
    %v766 = vpack.c.bf16 %v763, %v760
    %767 = vmatprep.subr.bf16.mxu0 0
    %768 = vmatpush1.bf16.msra.mxu0 0
    %769 = vmatprep.subr.bf16.mxu0 0
    %770 = vmatpush1.bf16.msra.mxu0 0
    %771 = vmatprep.subr.bf16.mxu0 0
    %772 = vmatpush1.bf16.msra.mxu0 0
    %773 = vmatprep.subr.bf16.mxu0 0
    %774 = vmatpush1.bf16.msra.mxu0 0
    %775 = vmatprep.subr.bf16.mxu0 0
    %776 = vmatpush1.bf16.msra.mxu0 0
    %777 = vmatprep.subr.bf16.mxu0 0
    %778 = vmatpush1.bf16.msra.mxu0 0
    %779 = vmatprep.subr.bf16.mxu0 0
    %780 = vmatpush1.bf16.msra.mxu0 0
    %781 = vmatprep.subr.bf16.mxu0 0
    %782 = vmatpush1.bf16.msra.mxu0 %v766
    %783 = vmatprep.subr.bf16.mxu0 0
    %784 = vmatpush2.bf16.msra.mxu0 0
    %785 = vmatprep.subr.bf16.mxu0 0
    %786 = vmatpush2.bf16.msra.mxu0 0
    %787 = vmatprep.subr.bf16.mxu0 0
    %788 = vmatpush2.bf16.msra.mxu0 0
    %789 = vmatprep.subr.bf16.mxu0 0
    %790 = vmatpush2.bf16.msra.mxu0 0
    %791 = vmatprep.subr.bf16.mxu0 0
    %792 = vmatpush2.bf16.msra.mxu0 0
    %793 = vmatprep.subr.bf16.mxu0 0
    %794 = vmatpush2.bf16.msra.mxu0 0
    %795 = vmatprep.subr.bf16.mxu0 0
    %796 = vmatpush2.bf16.msra.mxu0 0
    %797 = vmatprep.subr.bf16.mxu0 0
    %798 = vmatpush2.bf16.msra.mxu0 0
    %799 = vmatprep.mubr.bf16.mxu0 0
    %800 = vmatmul.mubr.bf16.gmra.mxu0 %v268
    %v801 = vpop.f32.mrf.mxu0
    %v802 = vadd.f32 %v512, %v801
    %v803 = vpop.f32.mrf.mxu0
    %v804 = vpop.f32.mrf.mxu0
    %v805 = vadd.f32 %v512, %v804
    %v806 = vpop.f32.mrf.mxu0
    %807 = vdwg.mxu0
    %v808 = vmul.f32 %v802, 0.125
    %v809 = vmul.f32 %v805, 0.125
    %v810 = vadd.f32 %v466, %v808
    %v811 = vadd.f32 %v467, %v809
    %v812 = vpack.c.bf16 %v811, %v810
    %813 = vmatprep.subr.bf16.mxu0 0
    %814 = vmatpush1.bf16.msra.mxu0 %v554
    %815 = vmatprep.subr.bf16.mxu0 0
    %816 = vmatpush1.bf16.msra.mxu0 %v553
    %817 = vmatprep.subr.bf16.mxu0 0
    %818 = vmatpush1.bf16.msra.mxu0 %v552
    %819 = vmatprep.subr.bf16.mxu0 0
    %820 = vmatpush1.bf16.msra.mxu0 %v551
    %821 = vmatprep.subr.bf16.mxu0 0
    %822 = vmatpush1.bf16.msra.mxu0 %v550
    %823 = vmatprep.subr.bf16.mxu0 0
    %824 = vmatpush1.bf16.msra.mxu0 %v549
    %825 = vmatprep.subr.bf16.mxu0 0
    %826 = vmatpush1.bf16.msra.mxu0 %v548
    %827 = vmatprep.subr.bf16.mxu0 0
    %828 = vmatpush1.bf16.msra.mxu0 %v547
    %829 = vmatprep.subr.bf16.mxu0 0
    %830 = vmatpush2.bf16.msra.mxu0 0
    %831 = vmatprep.subr.bf16.mxu0 0
    %832 = vmatpush2.bf16.msra.mxu0 0
    %833 = vmatprep.subr.bf16.mxu0 0
    %834 = vmatpush2.bf16.msra.mxu0 0
    %835 = vmatprep.subr.bf16.mxu0 0
    %836 = vmatpush2.bf16.msra.mxu0 0
    %837 = vmatprep.subr.bf16.mxu0 0
    %838 = vmatpush2.bf16.msra.mxu0 0
    %839 = vmatprep.subr.bf16.mxu0 0
    %840 = vmatpush2.bf16.msra.mxu0 0
    %841 = vmatprep.subr.bf16.mxu0 0
    %842 = vmatpush2.bf16.msra.mxu0 0
    %843 = vmatprep.subr.bf16.mxu0 0
    %844 = vmatpush2.bf16.msra.mxu0 0
    %845 = vmatprep.mubr.bf16.mxu0 0
    %846 = vmatmul.mubr.bf16.gmra.mxu0 %v812
    %v847 = vpop.f32.mrf.mxu0
    %v848 = vadd.f32 0.0, %v847
    %v849 = vpop.f32.mrf.mxu0
    %v850 = vpop.f32.mrf.mxu0
    %v851 = vadd.f32 0.0, %v850
    %v852 = vpop.f32.mrf.mxu0
    %853 = vdwg.mxu0
    %v854 = vpack.c.bf16 %v851, %v848
    %855 = vmatprep.subr.bf16.mxu0 0
    %856 = vmatpush1.bf16.msra.mxu0 0
    %857 = vmatprep.subr.bf16.mxu0 0
    %858 = vmatpush1.bf16.msra.mxu0 0
    %859 = vmatprep.subr.bf16.mxu0 0
    %860 = vmatpush1.bf16.msra.mxu0 0
    %861 = vmatprep.subr.bf16.mxu0 0
    %862 = vmatpush1.bf16.msra.mxu0 0
    %863 = vmatprep.subr.bf16.mxu0 0
    %864 = vmatpush1.bf16.msra.mxu0 0
    %865 = vmatprep.subr.bf16.mxu0 0
    %866 = vmatpush1.bf16.msra.mxu0 0
    %867 = vmatprep.subr.bf16.mxu0 0
    %868 = vmatpush1.bf16.msra.mxu0 0
    %869 = vmatprep.subr.bf16.mxu0 0
    %870 = vmatpush1.bf16.msra.mxu0 %v854
    %871 = vmatprep.subr.bf16.mxu0 0
    %872 = vmatpush2.bf16.msra.mxu0 0
    %873 = vmatprep.subr.bf16.mxu0 0
    %874 = vmatpush2.bf16.msra.mxu0 0
    %875 = vmatprep.subr.bf16.mxu0 0
    %876 = vmatpush2.bf16.msra.mxu0 0
    %877 = vmatprep.subr.bf16.mxu0 0
    %878 = vmatpush2.bf16.msra.mxu0 0
    %879 = vmatprep.subr.bf16.mxu0 0
    %880 = vmatpush2.bf16.msra.mxu0 0
    %881 = vmatprep.subr.bf16.mxu0 0
    %882 = vmatpush2.bf16.msra.mxu0 0
    %883 = vmatprep.subr.bf16.mxu0 0
    %884 = vmatpush2.bf16.msra.mxu0 0
    %885 = vmatprep.subr.bf16.mxu0 0
    %886 = vmatpush2.bf16.msra.mxu0 0
    %887 = vmatprep.mubr.bf16.mxu0 0
    %888 = vmatmul.mubr.bf16.gmra.mxu0 %v268
    %v889 = vpop.f32.mrf.mxu0
    %v890 = vadd.f32 %v505, %v889
    %v891 = vpop.f32.mrf.mxu0
    %v892 = vpop.f32.mrf.mxu0
    %v893 = vadd.f32 %v505, %v892
    %v894 = vpop.f32.mrf.mxu0
    %895 = vdwg.mxu0
    %v896 = vmax.f32 %v890, 0.0
    %v897 = vmax.f32 %v893, 0.0
    %v898 = vand.u32 2147483647, %v890
    %v899 = vand.u32 2147483647, %v893
    %v900 = vsub.f32 0.0, %v898
    %v901 = vsub.f32 0.0, %v899
    %v902 = vmul.f32 %v900, 1.442695
    %v903 = vpow.pop %v902
    %v904 = vmul.f32 %v901, 1.442695
    %v905 = vpow.pop %v904
    %v906 = vadd.f32 %v903, 1.0
    %v907 = vlog2.pop %v906
    %v908 = vmul.f32 %v907, 0.6931472
    %v909 = vmul.f32 -0.5, %v903
    %v910 = vadd.f32 %v909, 1.0
    %v911 = vmul.f32 %v910, %v903
    %v912 = vand.u32 2147483647, %v903
    %vm913 = vcmp.lt.f32.partialorder %v912, 0.0004427343
    %v914 = vsel %vm913, %v911, %v908
    %v915 = vadd.f32 %v905, 1.0
    %v916 = vlog2.pop %v915
    %v917 = vmul.f32 %v916, 0.6931472
    %v918 = vmul.f32 -0.5, %v905
    %v919 = vadd.f32 %v918, 1.0
    %v920 = vmul.f32 %v919, %v905
    %v921 = vand.u32 2147483647, %v905
    %vm922 = vcmp.lt.f32.partialorder %v921, 0.0004427343
    %v923 = vsel %vm922, %v920, %v917
    %v924 = vadd.f32 %v896, %v914
    %v925 = vadd.f32 %v897, %v923
    %v926 = vpack.c.bf16 %v925, %v924
    %927 = vmatprep.subr.bf16.mxu0 0
    %928 = vmatpush1.bf16.msra.mxu0 %v716
    %929 = vmatprep.subr.bf16.mxu0 0
    %930 = vmatpush1.bf16.msra.mxu0 %v715
    %931 = vmatprep.subr.bf16.mxu0 0
    %932 = vmatpush1.bf16.msra.mxu0 %v714
    %933 = vmatprep.subr.bf16.mxu0 0
    %934 = vmatpush1.bf16.msra.mxu0 %v713
    %935 = vmatprep.subr.bf16.mxu0 0
    %936 = vmatpush1.bf16.msra.mxu0 %v712
    %937 = vmatprep.subr.bf16.mxu0 0
    %938 = vmatpush1.bf16.msra.mxu0 %v711
    %939 = vmatprep.subr.bf16.mxu0 0
    %940 = vmatpush1.bf16.msra.mxu0 %v710
    %941 = vmatprep.subr.bf16.mxu0 0
    %942 = vmatpush1.bf16.msra.mxu0 %v709
    %943 = vmatprep.subr.bf16.mxu0 0
    %944 = vmatpush2.bf16.msra.mxu0 0
    %945 = vmatprep.subr.bf16.mxu0 0
    %946 = vmatpush2.bf16.msra.mxu0 0
    %947 = vmatprep.subr.bf16.mxu0 0
    %948 = vmatpush2.bf16.msra.mxu0 0
    %949 = vmatprep.subr.bf16.mxu0 0
    %950 = vmatpush2.bf16.msra.mxu0 0
    %951 = vmatprep.subr.bf16.mxu0 0
    %952 = vmatpush2.bf16.msra.mxu0 0
    %953 = vmatprep.subr.bf16.mxu0 0
    %954 = vmatpush2.bf16.msra.mxu0 0
    %955 = vmatprep.subr.bf16.mxu0 0
    %956 = vmatpush2.bf16.msra.mxu0 0
    %957 = vmatprep.subr.bf16.mxu0 0
    %958 = vmatpush2.bf16.msra.mxu0 0
    %959 = vmatprep.mubr.bf16.mxu0 0
    %960 = vmatmul.mubr.bf16.gmra.mxu0 %v926
    %v961 = vpop.f32.mrf.mxu0
    %v962 = vadd.f32 0.0, %v961
    %v963 = vpop.f32.mrf.mxu0
    %v964 = vpop.f32.mrf.mxu0
    %v965 = vadd.f32 0.0, %v964
    %v966 = vpop.f32.mrf.mxu0
    %967 = vdwg.mxu0
    %v968 = vpack.c.bf16 %v965, %v962
    %969 = vmatprep.subr.bf16.mxu0 0
    %970 = vmatpush1.bf16.msra.mxu0 0
    %971 = vmatprep.subr.bf16.mxu0 0
    %972 = vmatpush1.bf16.msra.mxu0 0
    %973 = vmatprep.subr.bf16.mxu0 0
    %974 = vmatpush1.bf16.msra.mxu0 0
    %975 = vmatprep.subr.bf16.mxu0 0
    %976 = vmatpush1.bf16.msra.mxu0 0
    %977 = vmatprep.subr.bf16.mxu0 0
    %978 = vmatpush1.bf16.msra.mxu0 0
    %979 = vmatprep.subr.bf16.mxu0 0
    %980 = vmatpush1.bf16.msra.mxu0 0
    %981 = vmatprep.subr.bf16.mxu0 0
    %982 = vmatpush1.bf16.msra.mxu0 0
    %983 = vmatprep.subr.bf16.mxu0 0
    %984 = vmatpush1.bf16.msra.mxu0 %v968
    %985 = vmatprep.subr.bf16.mxu0 0
    %986 = vmatpush2.bf16.msra.mxu0 0
    %987 = vmatprep.subr.bf16.mxu0 0
    %988 = vmatpush2.bf16.msra.mxu0 0
    %989 = vmatprep.subr.bf16.mxu0 0
    %990 = vmatpush2.bf16.msra.mxu0 0
    %991 = vmatprep.subr.bf16.mxu0 0
    %992 = vmatpush2.bf16.msra.mxu0 0
    %993 = vmatprep.subr.bf16.mxu0 0
    %994 = vmatpush2.bf16.msra.mxu0 0
    %995 = vmatprep.subr.bf16.mxu0 0
    %996 = vmatpush2.bf16.msra.mxu0 0
    %997 = vmatprep.subr.bf16.mxu0 0
    %998 = vmatpush2.bf16.msra.mxu0 0
    %999 = vmatprep.subr.bf16.mxu0 0
    %1000 = vmatpush2.bf16.msra.mxu0 0
    %1001 = vmatprep.mubr.bf16.mxu0 0
    %1002 = vmatmul.mubr.bf16.gmra.mxu0 %v268
    %v1003 = vpop.f32.mrf.mxu0
    %v1004 = vadd.f32 %v512, %v1003
    %v1005 = vpop.f32.mrf.mxu0
    %v1006 = vpop.f32.mrf.mxu0
    %v1007 = vadd.f32 %v512, %v1006
    %v1008 = vpop.f32.mrf.mxu0
    %1009 = vdwg.mxu0
    %v1010 = vmul.f32 %v1004, 0.125
    %v1011 = vmul.f32 %v1007, 0.125
    %v1012 = vadd.f32 %v466, %v1010
    %v1013 = vadd.f32 %v467, %v1011
    %v1014 = vpack.c.bf16 %v1013, %v1012
    %1015 = vmatprep.subr.bf16.mxu0 0
    %1016 = vmatpush1.bf16.msra.mxu0 %v554
    %1017 = vmatprep.subr.bf16.mxu0 0
    %1018 = vmatpush1.bf16.msra.mxu0 %v553
    %1019 = vmatprep.subr.bf16.mxu0 0
    %1020 = vmatpush1.bf16.msra.mxu0 %v552
    %1021 = vmatprep.subr.bf16.mxu0 0
    %1022 = vmatpush1.bf16.msra.mxu0 %v551
    %1023 = vmatprep.subr.bf16.mxu0 0
    %1024 = vmatpush1.bf16.msra.mxu0 %v550
    %1025 = vmatprep.subr.bf16.mxu0 0
    %1026 = vmatpush1.bf16.msra.mxu0 %v549
    %1027 = vmatprep.subr.bf16.mxu0 0
    %1028 = vmatpush1.bf16.msra.mxu0 %v548
    %1029 = vmatprep.subr.bf16.mxu0 0
    %1030 = vmatpush1.bf16.msra.mxu0 %v547
    %1031 = vmatprep.subr.bf16.mxu0 0
    %1032 = vmatpush2.bf16.msra.mxu0 0
    %1033 = vmatprep.subr.bf16.mxu0 0
    %1034 = vmatpush2.bf16.msra.mxu0 0
    %1035 = vmatprep.subr.bf16.mxu0 0
    %1036 = vmatpush2.bf16.msra.mxu0 0
    %1037 = vmatprep.subr.bf16.mxu0 0
    %1038 = vmatpush2.bf16.msra.mxu0 0
    %1039 = vmatprep.subr.bf16.mxu0 0
    %1040 = vmatpush2.bf16.msra.mxu0 0
    %1041 = vmatprep.subr.bf16.mxu0 0
    %1042 = vmatpush2.bf16.msra.mxu0 0
    %1043 = vmatprep.subr.bf16.mxu0 0
    %1044 = vmatpush2.bf16.msra.mxu0 0
    %1045 = vmatprep.subr.bf16.mxu0 0
    %1046 = vmatpush2.bf16.msra.mxu0 0
    %1047 = vmatprep.mubr.bf16.mxu0 0
    %1048 = vmatmul.mubr.bf16.gmra.mxu0 %v1014
    %v1049 = vpop.f32.mrf.mxu0
    %v1050 = vadd.f32 0.0, %v1049
    %v1051 = vpop.f32.mrf.mxu0
    %v1052 = vpop.f32.mrf.mxu0
    %v1053 = vadd.f32 0.0, %v1052
    %v1054 = vpop.f32.mrf.mxu0
    %1055 = vdwg.mxu0
    %v1056 = vpack.c.bf16 %v1053, %v1050
    %1057 = vmatprep.subr.bf16.mxu0 0
    %1058 = vmatpush1.bf16.msra.mxu0 0
    %1059 = vmatprep.subr.bf16.mxu0 0
    %1060 = vmatpush1.bf16.msra.mxu0 0
    %1061 = vmatprep.subr.bf16.mxu0 0
    %1062 = vmatpush1.bf16.msra.mxu0 0
    %1063 = vmatprep.subr.bf16.mxu0 0
    %1064 = vmatpush1.bf16.msra.mxu0 0
    %1065 = vmatprep.subr.bf16.mxu0 0
    %1066 = vmatpush1.bf16.msra.mxu0 0
    %1067 = vmatprep.subr.bf16.mxu0 0
    %1068 = vmatpush1.bf16.msra.mxu0 0
    %1069 = vmatprep.subr.bf16.mxu0 0
    %1070 = vmatpush1.bf16.msra.mxu0 0
    %1071 = vmatprep.subr.bf16.mxu0 0
    %1072 = vmatpush1.bf16.msra.mxu0 %v1056
    %1073 = vmatprep.subr.bf16.mxu0 0
    %1074 = vmatpush2.bf16.msra.mxu0 0
    %1075 = vmatprep.subr.bf16.mxu0 0
    %1076 = vmatpush2.bf16.msra.mxu0 0
    %1077 = vmatprep.subr.bf16.mxu0 0
    %1078 = vmatpush2.bf16.msra.mxu0 0
    %1079 = vmatprep.subr.bf16.mxu0 0
    %1080 = vmatpush2.bf16.msra.mxu0 0
    %1081 = vmatprep.subr.bf16.mxu0 0
    %1082 = vmatpush2.bf16.msra.mxu0 0
    %1083 = vmatprep.subr.bf16.mxu0 0
    %1084 = vmatpush2.bf16.msra.mxu0 0
    %1085 = vmatprep.subr.bf16.mxu0 0
    %1086 = vmatpush2.bf16.msra.mxu0 0
    %1087 = vmatprep.subr.bf16.mxu0 0
    %1088 = vmatpush2.bf16.msra.mxu0 0
    %1089 = vmatprep.mubr.bf16.mxu0 0
    %1090 = vmatmul.mubr.bf16.gmra.mxu0 %v268
    %v1091 = vpop.f32.mrf.mxu0
    %v1092 = vadd.f32 %v505, %v1091
    %v1093 = vpop.f32.mrf.mxu0
    %v1094 = vpop.f32.mrf.mxu0
    %v1095 = vadd.f32 %v505, %v1094
    %v1096 = vpop.f32.mrf.mxu0
    %1097 = vdwg.mxu0
    %v1098 = vmax.f32 %v1092, 0.0
    %v1099 = vmax.f32 %v1095, 0.0
    %v1100 = vand.u32 2147483647, %v1092
    %v1101 = vand.u32 2147483647, %v1095
    %v1102 = vsub.f32 0.0, %v1100
    %v1103 = vsub.f32 0.0, %v1101
    %v1104 = vmul.f32 %v1102, 1.442695
    %v1105 = vpow.pop %v1104
    %v1106 = vmul.f32 %v1103, 1.442695
    %v1107 = vpow.pop %v1106
    %v1108 = vadd.f32 %v1105, 1.0
    %v1109 = vlog2.pop %v1108
    %v1110 = vmul.f32 %v1109, 0.6931472
    %v1111 = vmul.f32 -0.5, %v1105
    %v1112 = vadd.f32 %v1111, 1.0
    %v1113 = vmul.f32 %v1112, %v1105
    %v1114 = vand.u32 2147483647, %v1105
    %vm1115 = vcmp.lt.f32.partialorder %v1114, 0.0004427343
    %v1116 = vsel %vm1115, %v1113, %v1110
    %v1117 = vadd.f32 %v1107, 1.0
    %v1118 = vlog2.pop %v1117
    %v1119 = vmul.f32 %v1118, 0.6931472
    %v1120 = vmul.f32 -0.5, %v1107
    %v1121 = vadd.f32 %v1120, 1.0
    %v1122 = vmul.f32 %v1121, %v1107
    %v1123 = vand.u32 2147483647, %v1107
    %vm1124 = vcmp.lt.f32.partialorder %v1123, 0.0004427343
    %v1125 = vsel %vm1124, %v1122, %v1119
    %v1126 = vadd.f32 %v1098, %v1116
    %v1127 = vadd.f32 %v1099, %v1125
    %v1128 = vpack.c.bf16 %v1127, %v1126
    %1129 = vmatprep.subr.bf16.mxu0 0
    %1130 = vmatpush1.bf16.msra.mxu0 %v716
    %1131 = vmatprep.subr.bf16.mxu0 0
    %1132 = vmatpush1.bf16.msra.mxu0 %v715
    %1133 = vmatprep.subr.bf16.mxu0 0
    %1134 = vmatpush1.bf16.msra.mxu0 %v714
    %1135 = vmatprep.subr.bf16.mxu0 0
    %1136 = vmatpush1.bf16.msra.mxu0 %v713
    %1137 = vmatprep.subr.bf16.mxu0 0
    %1138 = vmatpush1.bf16.msra.mxu0 %v712
    %1139 = vmatprep.subr.bf16.mxu0 0
    %1140 = vmatpush1.bf16.msra.mxu0 %v711
    %1141 = vmatprep.subr.bf16.mxu0 0
    %1142 = vmatpush1.bf16.msra.mxu0 %v710
    %1143 = vmatprep.subr.bf16.mxu0 0
    %1144 = vmatpush1.bf16.msra.mxu0 %v709
    %1145 = vmatprep.subr.bf16.mxu0 0
    %1146 = vmatpush2.bf16.msra.mxu0 0
    %1147 = vmatprep.subr.bf16.mxu0 0
    %1148 = vmatpush2.bf16.msra.mxu0 0
    %1149 = vmatprep.subr.bf16.mxu0 0
    %1150 = vmatpush2.bf16.msra.mxu0 0
    %1151 = vmatprep.subr.bf16.mxu0 0
    %1152 = vmatpush2.bf16.msra.mxu0 0
    %1153 = vmatprep.subr.bf16.mxu0 0
    %1154 = vmatpush2.bf16.msra.mxu0 0
    %1155 = vmatprep.subr.bf16.mxu0 0
    %1156 = vmatpush2.bf16.msra.mxu0 0
    %1157 = vmatprep.subr.bf16.mxu0 0
    %1158 = vmatpush2.bf16.msra.mxu0 0
    %1159 = vmatprep.subr.bf16.mxu0 0
    %1160 = vmatpush2.bf16.msra.mxu0 0
    %1161 = vmatprep.mubr.bf16.mxu0 0
    %1162 = vmatmul.mubr.bf16.gmra.mxu0 %v1128
    %v1163 = vpop.f32.mrf.mxu0
    %v1164 = vadd.f32 0.0, %v1163
    %v1165 = vpop.f32.mrf.mxu0
    %v1166 = vpop.f32.mrf.mxu0
    %v1167 = vadd.f32 0.0, %v1166
    %v1168 = vpop.f32.mrf.mxu0
    %1169 = vdwg.mxu0
    %v1170 = vpack.c.bf16 %v1167, %v1164
    %1171 = vmatprep.subr.bf16.mxu0 0
    %1172 = vmatpush1.bf16.msra.mxu0 0
    %1173 = vmatprep.subr.bf16.mxu0 0
    %1174 = vmatpush1.bf16.msra.mxu0 0
    %1175 = vmatprep.subr.bf16.mxu0 0
    %1176 = vmatpush1.bf16.msra.mxu0 0
    %1177 = vmatprep.subr.bf16.mxu0 0
    %1178 = vmatpush1.bf16.msra.mxu0 0
    %1179 = vmatprep.subr.bf16.mxu0 0
    %1180 = vmatpush1.bf16.msra.mxu0 0
    %1181 = vmatprep.subr.bf16.mxu0 0
    %1182 = vmatpush1.bf16.msra.mxu0 0
    %1183 = vmatprep.subr.bf16.mxu0 0
    %1184 = vmatpush1.bf16.msra.mxu0 0
    %1185 = vmatprep.subr.bf16.mxu0 0
    %1186 = vmatpush1.bf16.msra.mxu0 %v1170
    %1187 = vmatprep.subr.bf16.mxu0 0
    %1188 = vmatpush2.bf16.msra.mxu0 0
    %1189 = vmatprep.subr.bf16.mxu0 0
    %1190 = vmatpush2.bf16.msra.mxu0 0
    %1191 = vmatprep.subr.bf16.mxu0 0
    %1192 = vmatpush2.bf16.msra.mxu0 0
    %1193 = vmatprep.subr.bf16.mxu0 0
    %1194 = vmatpush2.bf16.msra.mxu0 0
    %1195 = vmatprep.subr.bf16.mxu0 0
    %1196 = vmatpush2.bf16.msra.mxu0 0
    %1197 = vmatprep.subr.bf16.mxu0 0
    %1198 = vmatpush2.bf16.msra.mxu0 0
    %1199 = vmatprep.subr.bf16.mxu0 0
    %1200 = vmatpush2.bf16.msra.mxu0 0
    %1201 = vmatprep.subr.bf16.mxu0 0
    %1202 = vmatpush2.bf16.msra.mxu0 0
    %1203 = vmatprep.mubr.bf16.mxu0 0
    %1204 = vmatmul.mubr.bf16.gmra.mxu0 %v268
    %v1205 = vpop.f32.mrf.mxu0
    %v1206 = vadd.f32 %v512, %v1205
    %v1207 = vpop.f32.mrf.mxu0
    %v1208 = vpop.f32.mrf.mxu0
    %v1209 = vadd.f32 %v512, %v1208
    %v1210 = vpop.f32.mrf.mxu0
    %1211 = vdwg.mxu0
    %v1212 = vmul.f32 %v1206, 0.25
    %v1213 = vmul.f32 %v1209, 0.25
    %v1214 = vadd.f32 %v466, %v1212
    %v1215 = vadd.f32 %v467, %v1213
    %v1216 = vpack.c.bf16 %v1215, %v1214
    %1217 = vmatprep.subr.bf16.mxu0 0
    %1218 = vmatpush1.bf16.msra.mxu0 %v554
    %1219 = vmatprep.subr.bf16.mxu0 0
    %1220 = vmatpush1.bf16.msra.mxu0 %v553
    %1221 = vmatprep.subr.bf16.mxu0 0
    %1222 = vmatpush1.bf16.msra.mxu0 %v552
    %1223 = vmatprep.subr.bf16.mxu0 0
    %1224 = vmatpush1.bf16.msra.mxu0 %v551
    %1225 = vmatprep.subr.bf16.mxu0 0
    %1226 = vmatpush1.bf16.msra.mxu0 %v550
    %1227 = vmatprep.subr.bf16.mxu0 0
    %1228 = vmatpush1.bf16.msra.mxu0 %v549
    %1229 = vmatprep.subr.bf16.mxu0 0
    %1230 = vmatpush1.bf16.msra.mxu0 %v548
    %1231 = vmatprep.subr.bf16.mxu0 0
    %1232 = vmatpush1.bf16.msra.mxu0 %v547
    %1233 = vmatprep.subr.bf16.mxu0 0
    %1234 = vmatpush2.bf16.msra.mxu0 0
    %1235 = vmatprep.subr.bf16.mxu0 0
    %1236 = vmatpush2.bf16.msra.mxu0 0
    %1237 = vmatprep.subr.bf16.mxu0 0
    %1238 = vmatpush2.bf16.msra.mxu0 0
    %1239 = vmatprep.subr.bf16.mxu0 0
    %1240 = vmatpush2.bf16.msra.mxu0 0
    %1241 = vmatprep.subr.bf16.mxu0 0
    %1242 = vmatpush2.bf16.msra.mxu0 0
    %1243 = vmatprep.subr.bf16.mxu0 0
    %1244 = vmatpush2.bf16.msra.mxu0 0
    %1245 = vmatprep.subr.bf16.mxu0 0
    %1246 = vmatpush2.bf16.msra.mxu0 0
    %1247 = vmatprep.subr.bf16.mxu0 0
    %1248 = vmatpush2.bf16.msra.mxu0 0
    %1249 = vmatprep.mubr.bf16.mxu0 0
    %1250 = vmatmul.mubr.bf16.gmra.mxu0 %v1216
    %v1251 = vpop.f32.mrf.mxu0
    %v1252 = vadd.f32 0.0, %v1251
    %v1253 = vpop.f32.mrf.mxu0
    %v1254 = vpop.f32.mrf.mxu0
    %v1255 = vadd.f32 0.0, %v1254
    %v1256 = vpop.f32.mrf.mxu0
    %1257 = vdwg.mxu0
    %v1258 = vpack.c.bf16 %v1255, %v1252
    %1259 = vmatprep.subr.bf16.mxu0 0
    %1260 = vmatpush1.bf16.msra.mxu0 0
    %1261 = vmatprep.subr.bf16.mxu0 0
    %1262 = vmatpush1.bf16.msra.mxu0 0
    %1263 = vmatprep.subr.bf16.mxu0 0
    %1264 = vmatpush1.bf16.msra.mxu0 0
    %1265 = vmatprep.subr.bf16.mxu0 0
    %1266 = vmatpush1.bf16.msra.mxu0 0
    %1267 = vmatprep.subr.bf16.mxu0 0
    %1268 = vmatpush1.bf16.msra.mxu0 0
    %1269 = vmatprep.subr.bf16.mxu0 0
    %1270 = vmatpush1.bf16.msra.mxu0 0
    %1271 = vmatprep.subr.bf16.mxu0 0
    %1272 = vmatpush1.bf16.msra.mxu0 0
    %1273 = vmatprep.subr.bf16.mxu0 0
    %1274 = vmatpush1.bf16.msra.mxu0 %v1258
    %1275 = vmatprep.subr.bf16.mxu0 0
    %1276 = vmatpush2.bf16.msra.mxu0 0
    %1277 = vmatprep.subr.bf16.mxu0 0
    %1278 = vmatpush2.bf16.msra.mxu0 0
    %1279 = vmatprep.subr.bf16.mxu0 0
    %1280 = vmatpush2.bf16.msra.mxu0 0
    %1281 = vmatprep.subr.bf16.mxu0 0
    %1282 = vmatpush2.bf16.msra.mxu0 0
    %1283 = vmatprep.subr.bf16.mxu0 0
    %1284 = vmatpush2.bf16.msra.mxu0 0
    %1285 = vmatprep.subr.bf16.mxu0 0
    %1286 = vmatpush2.bf16.msra.mxu0 0
    %1287 = vmatprep.subr.bf16.mxu0 0
    %1288 = vmatpush2.bf16.msra.mxu0 0
    %1289 = vmatprep.subr.bf16.mxu0 0
    %1290 = vmatpush2.bf16.msra.mxu0 0
    %1291 = vmatprep.mubr.bf16.mxu0 0
    %1292 = vmatmul.mubr.bf16.gmra.mxu0 %v268
    %v1293 = vpop.f32.mrf.mxu0
    %v1294 = vadd.f32 %v505, %v1293
    %v1295 = vpop.f32.mrf.mxu0
    %v1296 = vpop.f32.mrf.mxu0
    %v1297 = vadd.f32 %v505, %v1296
    %v1298 = vpop.f32.mrf.mxu0
    %1299 = vdwg.mxu0
    %v1300 = vmax.f32 %v1294, 0.0
    %v1301 = vmax.f32 %v1297, 0.0
    %v1302 = vand.u32 2147483647, %v1294
    %v1303 = vand.u32 2147483647, %v1297
    %v1304 = vsub.f32 0.0, %v1302
    %v1305 = vsub.f32 0.0, %v1303
    %v1306 = vmul.f32 %v1304, 1.442695
    %v1307 = vpow.pop %v1306
    %v1308 = vmul.f32 %v1305, 1.442695
    %v1309 = vpow.pop %v1308
    %v1310 = vadd.f32 %v1307, 1.0
    %v1311 = vlog2.pop %v1310
    %v1312 = vmul.f32 %v1311, 0.6931472
    %v1313 = vmul.f32 -0.5, %v1307
    %v1314 = vadd.f32 %v1313, 1.0
    %v1315 = vmul.f32 %v1314, %v1307
    %v1316 = vand.u32 2147483647, %v1307
    %vm1317 = vcmp.lt.f32.partialorder %v1316, 0.0004427343
    %v1318 = vsel %vm1317, %v1315, %v1312
    %v1319 = vadd.f32 %v1309, 1.0
    %v1320 = vlog2.pop %v1319
    %v1321 = vmul.f32 %v1320, 0.6931472
    %v1322 = vmul.f32 -0.5, %v1309
    %v1323 = vadd.f32 %v1322, 1.0
    %v1324 = vmul.f32 %v1323, %v1309
    %v1325 = vand.u32 2147483647, %v1309
    %vm1326 = vcmp.lt.f32.partialorder %v1325, 0.0004427343
    %v1327 = vsel %vm1326, %v1324, %v1321
    %v1328 = vadd.f32 %v1300, %v1318
    %v1329 = vadd.f32 %v1301, %v1327
    %v1330 = vpack.c.bf16 %v1329, %v1328
    %1331 = vmatprep.subr.bf16.mxu0 0
    %1332 = vmatpush1.bf16.msra.mxu0 %v716
    %1333 = vmatprep.subr.bf16.mxu0 0
    %1334 = vmatpush1.bf16.msra.mxu0 %v715
    %1335 = vmatprep.subr.bf16.mxu0 0
    %1336 = vmatpush1.bf16.msra.mxu0 %v714
    %1337 = vmatprep.subr.bf16.mxu0 0
    %1338 = vmatpush1.bf16.msra.mxu0 %v713
    %1339 = vmatprep.subr.bf16.mxu0 0
    %1340 = vmatpush1.bf16.msra.mxu0 %v712
    %1341 = vmatprep.subr.bf16.mxu0 0
    %1342 = vmatpush1.bf16.msra.mxu0 %v711
    %1343 = vmatprep.subr.bf16.mxu0 0
    %1344 = vmatpush1.bf16.msra.mxu0 %v710
    %1345 = vmatprep.subr.bf16.mxu0 0
    %1346 = vmatpush1.bf16.msra.mxu0 %v709
    %1347 = vmatprep.subr.bf16.mxu0 0
    %1348 = vmatpush2.bf16.msra.mxu0 0
    %1349 = vmatprep.subr.bf16.mxu0 0
    %1350 = vmatpush2.bf16.msra.mxu0 0
    %1351 = vmatprep.subr.bf16.mxu0 0
    %1352 = vmatpush2.bf16.msra.mxu0 0
    %1353 = vmatprep.subr.bf16.mxu0 0
    %1354 = vmatpush2.bf16.msra.mxu0 0
    %1355 = vmatprep.subr.bf16.mxu0 0
    %1356 = vmatpush2.bf16.msra.mxu0 0
    %1357 = vmatprep.subr.bf16.mxu0 0
    %1358 = vmatpush2.bf16.msra.mxu0 0
    %1359 = vmatprep.subr.bf16.mxu0 0
    %1360 = vmatpush2.bf16.msra.mxu0 0
    %1361 = vmatprep.subr.bf16.mxu0 0
    %1362 = vmatpush2.bf16.msra.mxu0 0
    %1363 = vmatprep.mubr.bf16.mxu0 0
    %1364 = vmatmul.mubr.bf16.gmra.mxu0 %v1330
    %v1365 = vpop.f32.mrf.mxu0
    %v1366 = vadd.f32 0.0, %v1365
    %v1367 = vpop.f32.mrf.mxu0
    %v1368 = vpop.f32.mrf.mxu0
    %v1369 = vadd.f32 0.0, %v1368
    %v1370 = vpop.f32.mrf.mxu0
    %1371 = vdwg.mxu0
    %v1372 = vpack.c.bf16 %v1369, %v1366
    %1373 = vmatprep.subr.bf16.mxu0 0
    %1374 = vmatpush1.bf16.msra.mxu0 0
    %1375 = vmatprep.subr.bf16.mxu0 0
    %1376 = vmatpush1.bf16.msra.mxu0 0
    %1377 = vmatprep.subr.bf16.mxu0 0
    %1378 = vmatpush1.bf16.msra.mxu0 0
    %1379 = vmatprep.subr.bf16.mxu0 0
    %1380 = vmatpush1.bf16.msra.mxu0 0
    %1381 = vmatprep.subr.bf16.mxu0 0
    %1382 = vmatpush1.bf16.msra.mxu0 0
    %1383 = vmatprep.subr.bf16.mxu0 0
    %1384 = vmatpush1.bf16.msra.mxu0 0
    %1385 = vmatprep.subr.bf16.mxu0 0
    %1386 = vmatpush1.bf16.msra.mxu0 0
    %1387 = vmatprep.subr.bf16.mxu0 0
    %1388 = vmatpush1.bf16.msra.mxu0 %v1372
    %1389 = vmatprep.subr.bf16.mxu0 0
    %1390 = vmatpush2.bf16.msra.mxu0 0
    %1391 = vmatprep.subr.bf16.mxu0 0
    %1392 = vmatpush2.bf16.msra.mxu0 0
    %1393 = vmatprep.subr.bf16.mxu0 0
    %1394 = vmatpush2.bf16.msra.mxu0 0
    %1395 = vmatprep.subr.bf16.mxu0 0
    %1396 = vmatpush2.bf16.msra.mxu0 0
    %1397 = vmatprep.subr.bf16.mxu0 0
    %1398 = vmatpush2.bf16.msra.mxu0 0
    %1399 = vmatprep.subr.bf16.mxu0 0
    %1400 = vmatpush2.bf16.msra.mxu0 0
    %1401 = vmatprep.subr.bf16.mxu0 0
    %1402 = vmatpush2.bf16.msra.mxu0 0
    %1403 = vmatprep.subr.bf16.mxu0 0
    %1404 = vmatpush2.bf16.msra.mxu0 0
    %1405 = vmatprep.mubr.bf16.mxu0 0
    %1406 = vmatmul.mubr.bf16.gmra.mxu0 %v268
    %v1407 = vpop.f32.mrf.mxu0
    %v1408 = vadd.f32 %v512, %v1407
    %v1409 = vpop.f32.mrf.mxu0
    %v1410 = vpop.f32.mrf.mxu0
    %v1411 = vadd.f32 %v512, %v1410
    %v1412 = vpop.f32.mrf.mxu0
    %1413 = vdwg.mxu0
    %v1414 = vmul.f32 %v1004, 2.0
    %v1415 = vmul.f32 %v1007, 2.0
    %v1416 = vadd.f32 %v802, %v1414
    %v1417 = vadd.f32 %v805, %v1415
    %v1418 = vmul.f32 %v1206, 2.0
    %v1419 = vmul.f32 %v1209, 2.0
    %v1420 = vadd.f32 %v1416, %v1418
    %v1421 = vadd.f32 %v1417, %v1419
    %v1422 = vadd.f32 %v1420, %v1408
    %v1423 = vadd.f32 %v1421, %v1411
    %v1424 = vmul.f32 %v1422, 0.041666668
    %v1425 = vmul.f32 %v1423, 0.041666668
    %v1426 = vadd.f32 %v466, %v1424
    %v1427 = vadd.f32 %v467, %v1425
    %v1428 = vpack.c.bf16 %v1427, %v1426
    %1429 = vmatprep.subr.bf16.mxu0 0
    %1430 = vmatpush1.bf16.msra.mxu0 %v554
    %1431 = vmatprep.subr.bf16.mxu0 0
    %1432 = vmatpush1.bf16.msra.mxu0 %v553
    %1433 = vmatprep.subr.bf16.mxu0 0
    %1434 = vmatpush1.bf16.msra.mxu0 %v552
    %1435 = vmatprep.subr.bf16.mxu0 0
    %1436 = vmatpush1.bf16.msra.mxu0 %v551
    %1437 = vmatprep.subr.bf16.mxu0 0
    %1438 = vmatpush1.bf16.msra.mxu0 %v550
    %1439 = vmatprep.subr.bf16.mxu0 0
    %1440 = vmatpush1.bf16.msra.mxu0 %v549
    %1441 = vmatprep.subr.bf16.mxu0 0
    %1442 = vmatpush1.bf16.msra.mxu0 %v548
    %1443 = vmatprep.subr.bf16.mxu0 0
    %1444 = vmatpush1.bf16.msra.mxu0 %v547
    %1445 = vmatprep.subr.bf16.mxu0 0
    %1446 = vmatpush2.bf16.msra.mxu0 0
    %1447 = vmatprep.subr.bf16.mxu0 0
    %1448 = vmatpush2.bf16.msra.mxu0 0
    %1449 = vmatprep.subr.bf16.mxu0 0
    %1450 = vmatpush2.bf16.msra.mxu0 0
    %1451 = vmatprep.subr.bf16.mxu0 0
    %1452 = vmatpush2.bf16.msra.mxu0 0
    %1453 = vmatprep.subr.bf16.mxu0 0
    %1454 = vmatpush2.bf16.msra.mxu0 0
    %1455 = vmatprep.subr.bf16.mxu0 0
    %1456 = vmatpush2.bf16.msra.mxu0 0
    %1457 = vmatprep.subr.bf16.mxu0 0
    %1458 = vmatpush2.bf16.msra.mxu0 0
    %1459 = vmatprep.subr.bf16.mxu0 0
    %1460 = vmatpush2.bf16.msra.mxu0 0
    %1461 = vmatprep.mubr.bf16.mxu0 0
    %1462 = vmatmul.mubr.bf16.gmra.mxu0 %v1428
    %v1463 = vpop.f32.mrf.mxu0
    %v1464 = vadd.f32 0.0, %v1463
    %v1465 = vpop.f32.mrf.mxu0
    %v1466 = vpop.f32.mrf.mxu0
    %v1467 = vadd.f32 0.0, %v1466
    %v1468 = vpop.f32.mrf.mxu0
    %1469 = vdwg.mxu0
    %v1470 = vpack.c.bf16 %v1467, %v1464
    %1471 = vmatprep.subr.bf16.mxu0 0
    %1472 = vmatpush1.bf16.msra.mxu0 0
    %1473 = vmatprep.subr.bf16.mxu0 0
    %1474 = vmatpush1.bf16.msra.mxu0 0
    %1475 = vmatprep.subr.bf16.mxu0 0
    %1476 = vmatpush1.bf16.msra.mxu0 0
    %1477 = vmatprep.subr.bf16.mxu0 0
    %1478 = vmatpush1.bf16.msra.mxu0 0
    %1479 = vmatprep.subr.bf16.mxu0 0
    %1480 = vmatpush1.bf16.msra.mxu0 0
    %1481 = vmatprep.subr.bf16.mxu0 0
    %1482 = vmatpush1.bf16.msra.mxu0 0
    %1483 = vmatprep.subr.bf16.mxu0 0
    %1484 = vmatpush1.bf16.msra.mxu0 0
    %1485 = vmatprep.subr.bf16.mxu0 0
    %1486 = vmatpush1.bf16.msra.mxu0 %v1470
    %1487 = vmatprep.subr.bf16.mxu0 0
    %1488 = vmatpush2.bf16.msra.mxu0 0
    %1489 = vmatprep.subr.bf16.mxu0 0
    %1490 = vmatpush2.bf16.msra.mxu0 0
    %1491 = vmatprep.subr.bf16.mxu0 0
    %1492 = vmatpush2.bf16.msra.mxu0 0
    %1493 = vmatprep.subr.bf16.mxu0 0
    %1494 = vmatpush2.bf16.msra.mxu0 0
    %1495 = vmatprep.subr.bf16.mxu0 0
    %1496 = vmatpush2.bf16.msra.mxu0 0
    %1497 = vmatprep.subr.bf16.mxu0 0
    %1498 = vmatpush2.bf16.msra.mxu0 0
    %1499 = vmatprep.subr.bf16.mxu0 0
    %1500 = vmatpush2.bf16.msra.mxu0 0
    %1501 = vmatprep.subr.bf16.mxu0 0
    %1502 = vmatpush2.bf16.msra.mxu0 0
    %1503 = vmatprep.mubr.bf16.mxu0 0
    %1504 = vmatmul.mubr.bf16.gmra.mxu0 %v268
    %v1505 = vpop.f32.mrf.mxu0
    %v1506 = vadd.f32 %v505, %v1505
    %v1507 = vpop.f32.mrf.mxu0
    %v1508 = vpop.f32.mrf.mxu0
    %v1509 = vadd.f32 %v505, %v1508
    %v1510 = vpop.f32.mrf.mxu0
    %1511 = vdwg.mxu0
    %v1512 = vmax.f32 %v1506, 0.0
    %v1513 = vmax.f32 %v1509, 0.0
    %v1514 = vand.u32 2147483647, %v1506
    %v1515 = vand.u32 2147483647, %v1509
    %v1516 = vsub.f32 0.0, %v1514
    %v1517 = vsub.f32 0.0, %v1515
    %v1518 = vmul.f32 %v1516, 1.442695
    %v1519 = vpow.pop %v1518
    %v1520 = vmul.f32 %v1517, 1.442695
    %v1521 = vpow.pop %v1520
    %v1522 = vadd.f32 %v1519, 1.0
    %v1523 = vlog2.pop %v1522
    %v1524 = vmul.f32 %v1523, 0.6931472
    %v1525 = vmul.f32 -0.5, %v1519
    %v1526 = vadd.f32 %v1525, 1.0
    %v1527 = vmul.f32 %v1526, %v1519
    %v1528 = vand.u32 2147483647, %v1519
    %vm1529 = vcmp.lt.f32.partialorder %v1528, 0.0004427343
    %v1530 = vsel %vm1529, %v1527, %v1524
    %v1531 = vadd.f32 %v1521, 1.0
    %v1532 = vlog2.pop %v1531
    %v1533 = vmul.f32 %v1532, 0.6931472
    %v1534 = vmul.f32 -0.5, %v1521
    %v1535 = vadd.f32 %v1534, 1.0
    %v1536 = vmul.f32 %v1535, %v1521
    %v1537 = vand.u32 2147483647, %v1521
    %vm1538 = vcmp.lt.f32.partialorder %v1537, 0.0004427343
    %v1539 = vsel %vm1538, %v1536, %v1533
    %v1540 = vadd.f32 %v1512, %v1530
    %v1541 = vadd.f32 %v1513, %v1539
    %v1542 = vpack.c.bf16 %v1541, %v1540
    %1543 = vmatprep.subr.bf16.mxu0 0
    %1544 = vmatpush1.bf16.msra.mxu0 %v716
    %1545 = vmatprep.subr.bf16.mxu0 0
    %1546 = vmatpush1.bf16.msra.mxu0 %v715
    %1547 = vmatprep.subr.bf16.mxu0 0
    %1548 = vmatpush1.bf16.msra.mxu0 %v714
    %1549 = vmatprep.subr.bf16.mxu0 0
    %1550 = vmatpush1.bf16.msra.mxu0 %v713
    %1551 = vmatprep.subr.bf16.mxu0 0
    %1552 = vmatpush1.bf16.msra.mxu0 %v712
    %1553 = vmatprep.subr.bf16.mxu0 0
    %1554 = vmatpush1.bf16.msra.mxu0 %v711
    %1555 = vmatprep.subr.bf16.mxu0 0
    %1556 = vmatpush1.bf16.msra.mxu0 %v710
    %1557 = vmatprep.subr.bf16.mxu0 0
    %1558 = vmatpush1.bf16.msra.mxu0 %v709
    %1559 = vmatprep.subr.bf16.mxu0 0
    %1560 = vmatpush2.bf16.msra.mxu0 0
    %1561 = vmatprep.subr.bf16.mxu0 0
    %1562 = vmatpush2.bf16.msra.mxu0 0
    %1563 = vmatprep.subr.bf16.mxu0 0
    %1564 = vmatpush2.bf16.msra.mxu0 0
    %1565 = vmatprep.subr.bf16.mxu0 0
    %1566 = vmatpush2.bf16.msra.mxu0 0
    %1567 = vmatprep.subr.bf16.mxu0 0
    %1568 = vmatpush2.bf16.msra.mxu0 0
    %1569 = vmatprep.subr.bf16.mxu0 0
    %1570 = vmatpush2.bf16.msra.mxu0 0
    %1571 = vmatprep.subr.bf16.mxu0 0
    %1572 = vmatpush2.bf16.msra.mxu0 0
    %1573 = vmatprep.subr.bf16.mxu0 0
    %1574 = vmatpush2.bf16.msra.mxu0 0
    %1575 = vmatprep.mubr.bf16.mxu0 0
    %1576 = vmatmul.mubr.bf16.gmra.mxu0 %v1542
    %v1577 = vpop.f32.mrf.mxu0
    %v1578 = vadd.f32 0.0, %v1577
    %v1579 = vpop.f32.mrf.mxu0
    %v1580 = vpop.f32.mrf.mxu0
    %v1581 = vadd.f32 0.0, %v1580
    %v1582 = vpop.f32.mrf.mxu0
    %1583 = vdwg.mxu0
    %v1584 = vpack.c.bf16 %v1581, %v1578
    %1585 = vmatprep.subr.bf16.mxu0 0
    %1586 = vmatpush1.bf16.msra.mxu0 0
    %1587 = vmatprep.subr.bf16.mxu0 0
    %1588 = vmatpush1.bf16.msra.mxu0 0
    %1589 = vmatprep.subr.bf16.mxu0 0
    %1590 = vmatpush1.bf16.msra.mxu0 0
    %1591 = vmatprep.subr.bf16.mxu0 0
    %1592 = vmatpush1.bf16.msra.mxu0 0
    %1593 = vmatprep.subr.bf16.mxu0 0
    %1594 = vmatpush1.bf16.msra.mxu0 0
    %1595 = vmatprep.subr.bf16.mxu0 0
    %1596 = vmatpush1.bf16.msra.mxu0 0
    %1597 = vmatprep.subr.bf16.mxu0 0
    %1598 = vmatpush1.bf16.msra.mxu0 0
    %1599 = vmatprep.subr.bf16.mxu0 0
    %1600 = vmatpush1.bf16.msra.mxu0 %v1584
    %1601 = vmatprep.subr.bf16.mxu0 0
    %1602 = vmatpush2.bf16.msra.mxu0 0
    %1603 = vmatprep.subr.bf16.mxu0 0
    %1604 = vmatpush2.bf16.msra.mxu0 0
    %1605 = vmatprep.subr.bf16.mxu0 0
    %1606 = vmatpush2.bf16.msra.mxu0 0
    %1607 = vmatprep.subr.bf16.mxu0 0
    %1608 = vmatpush2.bf16.msra.mxu0 0
    %1609 = vmatprep.subr.bf16.mxu0 0
    %1610 = vmatpush2.bf16.msra.mxu0 0
    %1611 = vmatprep.subr.bf16.mxu0 0
    %1612 = vmatpush2.bf16.msra.mxu0 0
    %1613 = vmatprep.subr.bf16.mxu0 0
    %1614 = vmatpush2.bf16.msra.mxu0 0
    %1615 = vmatprep.subr.bf16.mxu0 0
    %1616 = vmatpush2.bf16.msra.mxu0 0
    %1617 = vmatprep.mubr.bf16.mxu0 0
    %1618 = vmatmul.mubr.bf16.gmra.mxu0 %v268
    %v1619 = vpop.f32.mrf.mxu0
    %v1620 = vadd.f32 %v512, %v1619
    %v1621 = vpop.f32.mrf.mxu0
    %v1622 = vpop.f32.mrf.mxu0
    %v1623 = vadd.f32 %v512, %v1622
    %v1624 = vpop.f32.mrf.mxu0
    %1625 = vdwg.mxu0
    %v1626 = vmul.f32 %v1620, 0.125
    %v1627 = vmul.f32 %v1623, 0.125
    %v1628 = vadd.f32 %v1426, %v1626
    %v1629 = vadd.f32 %v1427, %v1627
    %v1630 = vpack.c.bf16 %v1629, %v1628
    %1631 = vmatprep.subr.bf16.mxu0 0
    %1632 = vmatpush1.bf16.msra.mxu0 %v554
    %1633 = vmatprep.subr.bf16.mxu0 0
    %1634 = vmatpush1.bf16.msra.mxu0 %v553
    %1635 = vmatprep.subr.bf16.mxu0 0
    %1636 = vmatpush1.bf16.msra.mxu0 %v552
    %1637 = vmatprep.subr.bf16.mxu0 0
    %1638 = vmatpush1.bf16.msra.mxu0 %v551
    %1639 = vmatprep.subr.bf16.mxu0 0
    %1640 = vmatpush1.bf16.msra.mxu0 %v550
    %1641 = vmatprep.subr.bf16.mxu0 0
    %1642 = vmatpush1.bf16.msra.mxu0 %v549
    %1643 = vmatprep.subr.bf16.mxu0 0
    %1644 = vmatpush1.bf16.msra.mxu0 %v548
    %1645 = vmatprep.subr.bf16.mxu0 0
    %1646 = vmatpush1.bf16.msra.mxu0 %v547
    %1647 = vmatprep.subr.bf16.mxu0 0
    %1648 = vmatpush2.bf16.msra.mxu0 0
    %1649 = vmatprep.subr.bf16.mxu0 0
    %1650 = vmatpush2.bf16.msra.mxu0 0
    %1651 = vmatprep.subr.bf16.mxu0 0
    %1652 = vmatpush2.bf16.msra.mxu0 0
    %1653 = vmatprep.subr.bf16.mxu0 0
    %1654 = vmatpush2.bf16.msra.mxu0 0
    %1655 = vmatprep.subr.bf16.mxu0 0
    %1656 = vmatpush2.bf16.msra.mxu0 0
    %1657 = vmatprep.subr.bf16.mxu0 0
    %1658 = vmatpush2.bf16.msra.mxu0 0
    %1659 = vmatprep.subr.bf16.mxu0 0
    %1660 = vmatpush2.bf16.msra.mxu0 0
    %1661 = vmatprep.subr.bf16.mxu0 0
    %1662 = vmatpush2.bf16.msra.mxu0 0
    %1663 = vmatprep.mubr.bf16.mxu0 0
    %1664 = vmatmul.mubr.bf16.gmra.mxu0 %v1630
    %v1665 = vpop.f32.mrf.mxu0
    %v1666 = vadd.f32 0.0, %v1665
    %v1667 = vpop.f32.mrf.mxu0
    %v1668 = vpop.f32.mrf.mxu0
    %v1669 = vadd.f32 0.0, %v1668
    %v1670 = vpop.f32.mrf.mxu0
    %1671 = vdwg.mxu0
    %v1672 = vpack.c.bf16 %v1669, %v1666
    %1673 = vmatprep.subr.bf16.mxu0 0
    %1674 = vmatpush1.bf16.msra.mxu0 0
    %1675 = vmatprep.subr.bf16.mxu0 0
    %1676 = vmatpush1.bf16.msra.mxu0 0
    %1677 = vmatprep.subr.bf16.mxu0 0
    %1678 = vmatpush1.bf16.msra.mxu0 0
    %1679 = vmatprep.subr.bf16.mxu0 0
    %1680 = vmatpush1.bf16.msra.mxu0 0
    %1681 = vmatprep.subr.bf16.mxu0 0
    %1682 = vmatpush1.bf16.msra.mxu0 0
    %1683 = vmatprep.subr.bf16.mxu0 0
    %1684 = vmatpush1.bf16.msra.mxu0 0
    %1685 = vmatprep.subr.bf16.mxu0 0
    %1686 = vmatpush1.bf16.msra.mxu0 0
    %1687 = vmatprep.subr.bf16.mxu0 0
    %1688 = vmatpush1.bf16.msra.mxu0 %v1672
    %1689 = vmatprep.subr.bf16.mxu0 0
    %1690 = vmatpush2.bf16.msra.mxu0 0
    %1691 = vmatprep.subr.bf16.mxu0 0
    %1692 = vmatpush2.bf16.msra.mxu0 0
    %1693 = vmatprep.subr.bf16.mxu0 0
    %1694 = vmatpush2.bf16.msra.mxu0 0
    %1695 = vmatprep.subr.bf16.mxu0 0
    %1696 = vmatpush2.bf16.msra.mxu0 0
    %1697 = vmatprep.subr.bf16.mxu0 0
    %1698 = vmatpush2.bf16.msra.mxu0 0
    %1699 = vmatprep.subr.bf16.mxu0 0
    %1700 = vmatpush2.bf16.msra.mxu0 0
    %1701 = vmatprep.subr.bf16.mxu0 0
    %1702 = vmatpush2.bf16.msra.mxu0 0
    %1703 = vmatprep.subr.bf16.mxu0 0
    %1704 = vmatpush2.bf16.msra.mxu0 0
    %1705 = vmatprep.mubr.bf16.mxu0 0
    %1706 = vmatmul.mubr.bf16.gmra.mxu0 %v268
    %v1707 = vpop.f32.mrf.mxu0
    %v1708 = vadd.f32 %v505, %v1707
    %v1709 = vpop.f32.mrf.mxu0
    %v1710 = vpop.f32.mrf.mxu0
    %v1711 = vadd.f32 %v505, %v1710
    %v1712 = vpop.f32.mrf.mxu0
    %1713 = vdwg.mxu0
    %v1714 = vmax.f32 %v1708, 0.0
    %v1715 = vmax.f32 %v1711, 0.0
    %v1716 = vand.u32 2147483647, %v1708
    %v1717 = vand.u32 2147483647, %v1711
    %v1718 = vsub.f32 0.0, %v1716
    %v1719 = vsub.f32 0.0, %v1717
    %v1720 = vmul.f32 %v1718, 1.442695
    %v1721 = vpow.pop %v1720
    %v1722 = vmul.f32 %v1719, 1.442695
    %v1723 = vpow.pop %v1722
    %v1724 = vadd.f32 %v1721, 1.0
    %v1725 = vlog2.pop %v1724
    %v1726 = vmul.f32 %v1725, 0.6931472
    %v1727 = vmul.f32 -0.5, %v1721
    %v1728 = vadd.f32 %v1727, 1.0
    %v1729 = vmul.f32 %v1728, %v1721
    %v1730 = vand.u32 2147483647, %v1721
    %vm1731 = vcmp.lt.f32.partialorder %v1730, 0.0004427343
    %v1732 = vsel %vm1731, %v1729, %v1726
    %v1733 = vadd.f32 %v1723, 1.0
    %v1734 = vlog2.pop %v1733
    %v1735 = vmul.f32 %v1734, 0.6931472
    %v1736 = vmul.f32 -0.5, %v1723
    %v1737 = vadd.f32 %v1736, 1.0
    %v1738 = vmul.f32 %v1737, %v1723
    %v1739 = vand.u32 2147483647, %v1723
    %vm1740 = vcmp.lt.f32.partialorder %v1739, 0.0004427343
    %v1741 = vsel %vm1740, %v1738, %v1735
    %v1742 = vadd.f32 %v1714, %v1732
    %v1743 = vadd.f32 %v1715, %v1741
    %v1744 = vpack.c.bf16 %v1743, %v1742
    %1745 = vmatprep.subr.bf16.mxu0 0
    %1746 = vmatpush1.bf16.msra.mxu0 %v716
    %1747 = vmatprep.subr.bf16.mxu0 0
    %1748 = vmatpush1.bf16.msra.mxu0 %v715
    %1749 = vmatprep.subr.bf16.mxu0 0
    %1750 = vmatpush1.bf16.msra.mxu0 %v714
    %1751 = vmatprep.subr.bf16.mxu0 0
    %1752 = vmatpush1.bf16.msra.mxu0 %v713
    %1753 = vmatprep.subr.bf16.mxu0 0
    %1754 = vmatpush1.bf16.msra.mxu0 %v712
    %1755 = vmatprep.subr.bf16.mxu0 0
    %1756 = vmatpush1.bf16.msra.mxu0 %v711
    %1757 = vmatprep.subr.bf16.mxu0 0
    %1758 = vmatpush1.bf16.msra.mxu0 %v710
    %1759 = vmatprep.subr.bf16.mxu0 0
    %1760 = vmatpush1.bf16.msra.mxu0 %v709
    %1761 = vmatprep.subr.bf16.mxu0 0
    %1762 = vmatpush2.bf16.msra.mxu0 0
    %1763 = vmatprep.subr.bf16.mxu0 0
    %1764 = vmatpush2.bf16.msra.mxu0 0
    %1765 = vmatprep.subr.bf16.mxu0 0
    %1766 = vmatpush2.bf16.msra.mxu0 0
    %1767 = vmatprep.subr.bf16.mxu0 0
    %1768 = vmatpush2.bf16.msra.mxu0 0
    %1769 = vmatprep.subr.bf16.mxu0 0
    %1770 = vmatpush2.bf16.msra.mxu0 0
    %1771 = vmatprep.subr.bf16.mxu0 0
    %1772 = vmatpush2.bf16.msra.mxu0 0
    %1773 = vmatprep.subr.bf16.mxu0 0
    %1774 = vmatpush2.bf16.msra.mxu0 0
    %1775 = vmatprep.subr.bf16.mxu0 0
    %1776 = vmatpush2.bf16.msra.mxu0 0
    %1777 = vmatprep.mubr.bf16.mxu0 0
    %1778 = vmatmul.mubr.bf16.gmra.mxu0 %v1744
    %v1779 = vpop.f32.mrf.mxu0
    %v1780 = vadd.f32 0.0, %v1779
    %v1781 = vpop.f32.mrf.mxu0
    %v1782 = vpop.f32.mrf.mxu0
    %v1783 = vadd.f32 0.0, %v1782
    %v1784 = vpop.f32.mrf.mxu0
    %1785 = vdwg.mxu0
    %v1786 = vpack.c.bf16 %v1783, %v1780
    %1787 = vmatprep.subr.bf16.mxu0 0
    %1788 = vmatpush1.bf16.msra.mxu0 0
    %1789 = vmatprep.subr.bf16.mxu0 0
    %1790 = vmatpush1.bf16.msra.mxu0 0
    %1791 = vmatprep.subr.bf16.mxu0 0
    %1792 = vmatpush1.bf16.msra.mxu0 0
    %1793 = vmatprep.subr.bf16.mxu0 0
    %1794 = vmatpush1.bf16.msra.mxu0 0
    %1795 = vmatprep.subr.bf16.mxu0 0
    %1796 = vmatpush1.bf16.msra.mxu0 0
    %1797 = vmatprep.subr.bf16.mxu0 0
    %1798 = vmatpush1.bf16.msra.mxu0 0
    %1799 = vmatprep.subr.bf16.mxu0 0
    %1800 = vmatpush1.bf16.msra.mxu0 0
    %1801 = vmatprep.subr.bf16.mxu0 0
    %1802 = vmatpush1.bf16.msra.mxu0 %v1786
    %1803 = vmatprep.subr.bf16.mxu0 0
    %1804 = vmatpush2.bf16.msra.mxu0 0
    %1805 = vmatprep.subr.bf16.mxu0 0
    %1806 = vmatpush2.bf16.msra.mxu0 0
    %1807 = vmatprep.subr.bf16.mxu0 0
    %1808 = vmatpush2.bf16.msra.mxu0 0
    %1809 = vmatprep.subr.bf16.mxu0 0
    %1810 = vmatpush2.bf16.msra.mxu0 0
    %1811 = vmatprep.subr.bf16.mxu0 0
    %1812 = vmatpush2.bf16.msra.mxu0 0
    %1813 = vmatprep.subr.bf16.mxu0 0
    %1814 = vmatpush2.bf16.msra.mxu0 0
    %1815 = vmatprep.subr.bf16.mxu0 0
    %1816 = vmatpush2.bf16.msra.mxu0 0
    %1817 = vmatprep.subr.bf16.mxu0 0
    %1818 = vmatpush2.bf16.msra.mxu0 0
    %1819 = vmatprep.mubr.bf16.mxu0 0
    %1820 = vmatmul.mubr.bf16.gmra.mxu0 %v268
    %v1821 = vpop.f32.mrf.mxu0
    %v1822 = vadd.f32 %v512, %v1821
    %v1823 = vpop.f32.mrf.mxu0
    %v1824 = vpop.f32.mrf.mxu0
    %v1825 = vadd.f32 %v512, %v1824
    %v1826 = vpop.f32.mrf.mxu0
    %1827 = vdwg.mxu0
    %v1828 = vmul.f32 %v1822, 0.125
    %v1829 = vmul.f32 %v1825, 0.125
    %v1830 = vadd.f32 %v1426, %v1828
    %v1831 = vadd.f32 %v1427, %v1829
    %v1832 = vpack.c.bf16 %v1831, %v1830
    %1833 = vmatprep.subr.bf16.mxu0 0
    %1834 = vmatpush1.bf16.msra.mxu0 %v554
    %1835 = vmatprep.subr.bf16.mxu0 0
    %1836 = vmatpush1.bf16.msra.mxu0 %v553
    %1837 = vmatprep.subr.bf16.mxu0 0
    %1838 = vmatpush1.bf16.msra.mxu0 %v552
    %1839 = vmatprep.subr.bf16.mxu0 0
    %1840 = vmatpush1.bf16.msra.mxu0 %v551
    %1841 = vmatprep.subr.bf16.mxu0 0
    %1842 = vmatpush1.bf16.msra.mxu0 %v550
    %1843 = vmatprep.subr.bf16.mxu0 0
    %1844 = vmatpush1.bf16.msra.mxu0 %v549
    %1845 = vmatprep.subr.bf16.mxu0 0
    %1846 = vmatpush1.bf16.msra.mxu0 %v548
    %1847 = vmatprep.subr.bf16.mxu0 0
    %1848 = vmatpush1.bf16.msra.mxu0 %v547
    %1849 = vmatprep.subr.bf16.mxu0 0
    %1850 = vmatpush2.bf16.msra.mxu0 0
    %1851 = vmatprep.subr.bf16.mxu0 0
    %1852 = vmatpush2.bf16.msra.mxu0 0
    %1853 = vmatprep.subr.bf16.mxu0 0
    %1854 = vmatpush2.bf16.msra.mxu0 0
    %1855 = vmatprep.subr.bf16.mxu0 0
    %1856 = vmatpush2.bf16.msra.mxu0 0
    %1857 = vmatprep.subr.bf16.mxu0 0
    %1858 = vmatpush2.bf16.msra.mxu0 0
    %1859 = vmatprep.subr.bf16.mxu0 0
    %1860 = vmatpush2.bf16.msra.mxu0 0
    %1861 = vmatprep.subr.bf16.mxu0 0
    %1862 = vmatpush2.bf16.msra.mxu0 0
    %1863 = vmatprep.subr.bf16.mxu0 0
    %1864 = vmatpush2.bf16.msra.mxu0 0
    %1865 = vmatprep.mubr.bf16.mxu0 0
    %1866 = vmatmul.mubr.bf16.gmra.mxu0 %v1832
    %v1867 = vpop.f32.mrf.mxu0
    %v1868 = vadd.f32 0.0, %v1867
    %v1869 = vpop.f32.mrf.mxu0
    %v1870 = vpop.f32.mrf.mxu0
    %v1871 = vadd.f32 0.0, %v1870
    %v1872 = vpop.f32.mrf.mxu0
    %1873 = vdwg.mxu0
    %v1874 = vpack.c.bf16 %v1871, %v1868
    %1875 = vmatprep.subr.bf16.mxu0 0
    %1876 = vmatpush1.bf16.msra.mxu0 0
    %1877 = vmatprep.subr.bf16.mxu0 0
    %1878 = vmatpush1.bf16.msra.mxu0 0
    %1879 = vmatprep.subr.bf16.mxu0 0
    %1880 = vmatpush1.bf16.msra.mxu0 0
    %1881 = vmatprep.subr.bf16.mxu0 0
    %1882 = vmatpush1.bf16.msra.mxu0 0
    %1883 = vmatprep.subr.bf16.mxu0 0
    %1884 = vmatpush1.bf16.msra.mxu0 0
    %1885 = vmatprep.subr.bf16.mxu0 0
    %1886 = vmatpush1.bf16.msra.mxu0 0
    %1887 = vmatprep.subr.bf16.mxu0 0
    %1888 = vmatpush1.bf16.msra.mxu0 0
    %1889 = vmatprep.subr.bf16.mxu0 0
    %1890 = vmatpush1.bf16.msra.mxu0 %v1874
    %1891 = vmatprep.subr.bf16.mxu0 0
    %1892 = vmatpush2.bf16.msra.mxu0 0
    %1893 = vmatprep.subr.bf16.mxu0 0
    %1894 = vmatpush2.bf16.msra.mxu0 0
    %1895 = vmatprep.subr.bf16.mxu0 0
    %1896 = vmatpush2.bf16.msra.mxu0 0
    %1897 = vmatprep.subr.bf16.mxu0 0
    %1898 = vmatpush2.bf16.msra.mxu0 0
    %1899 = vmatprep.subr.bf16.mxu0 0
    %1900 = vmatpush2.bf16.msra.mxu0 0
    %1901 = vmatprep.subr.bf16.mxu0 0
    %1902 = vmatpush2.bf16.msra.mxu0 0
    %1903 = vmatprep.subr.bf16.mxu0 0
    %1904 = vmatpush2.bf16.msra.mxu0 0
    %1905 = vmatprep.subr.bf16.mxu0 0
    %1906 = vmatpush2.bf16.msra.mxu0 0
    %1907 = vmatprep.mubr.bf16.mxu0 0
    %1908 = vmatmul.mubr.bf16.gmra.mxu0 %v268
    %v1909 = vpop.f32.mrf.mxu0
    %v1910 = vadd.f32 %v505, %v1909
    %v1911 = vpop.f32.mrf.mxu0
    %v1912 = vpop.f32.mrf.mxu0
    %v1913 = vadd.f32 %v505, %v1912
    %v1914 = vpop.f32.mrf.mxu0
    %1915 = vdwg.mxu0
    %v1916 = vmax.f32 %v1910, 0.0
    %v1917 = vmax.f32 %v1913, 0.0
    %v1918 = vand.u32 2147483647, %v1910
    %v1919 = vand.u32 2147483647, %v1913
    %v1920 = vsub.f32 0.0, %v1918
    %v1921 = vsub.f32 0.0, %v1919
    %v1922 = vmul.f32 %v1920, 1.442695
    %v1923 = vpow.pop %v1922
    %v1924 = vmul.f32 %v1921, 1.442695
    %v1925 = vpow.pop %v1924
    %v1926 = vadd.f32 %v1923, 1.0
    %v1927 = vlog2.pop %v1926
    %v1928 = vmul.f32 %v1927, 0.6931472
    %v1929 = vmul.f32 -0.5, %v1923
    %v1930 = vadd.f32 %v1929, 1.0
    %v1931 = vmul.f32 %v1930, %v1923
    %v1932 = vand.u32 2147483647, %v1923
    %vm1933 = vcmp.lt.f32.partialorder %v1932, 0.0004427343
    %v1934 = vsel %vm1933, %v1931, %v1928
    %v1935 = vadd.f32 %v1925, 1.0
    %v1936 = vlog2.pop %v1935
    %v1937 = vmul.f32 %v1936, 0.6931472
    %v1938 = vmul.f32 -0.5, %v1925
    %v1939 = vadd.f32 %v1938, 1.0
    %v1940 = vmul.f32 %v1939, %v1925
    %v1941 = vand.u32 2147483647, %v1925
    %vm1942 = vcmp.lt.f32.partialorder %v1941, 0.0004427343
    %v1943 = vsel %vm1942, %v1940, %v1937
    %v1944 = vadd.f32 %v1916, %v1934
    %v1945 = vadd.f32 %v1917, %v1943
    %v1946 = vpack.c.bf16 %v1945, %v1944
    %1947 = vmatprep.subr.bf16.mxu0 0
    %1948 = vmatpush1.bf16.msra.mxu0 %v716
    %1949 = vmatprep.subr.bf16.mxu0 0
    %1950 = vmatpush1.bf16.msra.mxu0 %v715
    %1951 = vmatprep.subr.bf16.mxu0 0
    %1952 = vmatpush1.bf16.msra.mxu0 %v714
    %1953 = vmatprep.subr.bf16.mxu0 0
    %1954 = vmatpush1.bf16.msra.mxu0 %v713
    %1955 = vmatprep.subr.bf16.mxu0 0
    %1956 = vmatpush1.bf16.msra.mxu0 %v712
    %1957 = vmatprep.subr.bf16.mxu0 0
    %1958 = vmatpush1.bf16.msra.mxu0 %v711
    %1959 = vmatprep.subr.bf16.mxu0 0
    %1960 = vmatpush1.bf16.msra.mxu0 %v710
    %1961 = vmatprep.subr.bf16.mxu0 0
    %1962 = vmatpush1.bf16.msra.mxu0 %v709
    %1963 = vmatprep.subr.bf16.mxu0 0
    %1964 = vmatpush2.bf16.msra.mxu0 0
    %1965 = vmatprep.subr.bf16.mxu0 0
    %1966 = vmatpush2.bf16.msra.mxu0 0
    %1967 = vmatprep.subr.bf16.mxu0 0
    %1968 = vmatpush2.bf16.msra.mxu0 0
    %1969 = vmatprep.subr.bf16.mxu0 0
    %1970 = vmatpush2.bf16.msra.mxu0 0
    %1971 = vmatprep.subr.bf16.mxu0 0
    %1972 = vmatpush2.bf16.msra.mxu0 0
    %1973 = vmatprep.subr.bf16.mxu0 0
    %1974 = vmatpush2.bf16.msra.mxu0 0
    %1975 = vmatprep.subr.bf16.mxu0 0
    %1976 = vmatpush2.bf16.msra.mxu0 0
    %1977 = vmatprep.subr.bf16.mxu0 0
    %1978 = vmatpush2.bf16.msra.mxu0 0
    %1979 = vmatprep.mubr.bf16.mxu0 0
    %1980 = vmatmul.mubr.bf16.gmra.mxu0 %v1946
    %v1981 = vpop.f32.mrf.mxu0
    %v1982 = vadd.f32 0.0, %v1981
    %v1983 = vpop.f32.mrf.mxu0
    %v1984 = vpop.f32.mrf.mxu0
    %v1985 = vadd.f32 0.0, %v1984
    %v1986 = vpop.f32.mrf.mxu0
    %1987 = vdwg.mxu0
    %v1988 = vpack.c.bf16 %v1985, %v1982
    %1989 = vmatprep.subr.bf16.mxu0 0
    %1990 = vmatpush1.bf16.msra.mxu0 0
    %1991 = vmatprep.subr.bf16.mxu0 0
    %1992 = vmatpush1.bf16.msra.mxu0 0
    %1993 = vmatprep.subr.bf16.mxu0 0
    %1994 = vmatpush1.bf16.msra.mxu0 0
    %1995 = vmatprep.subr.bf16.mxu0 0
    %1996 = vmatpush1.bf16.msra.mxu0 0
    %1997 = vmatprep.subr.bf16.mxu0 0
    %1998 = vmatpush1.bf16.msra.mxu0 0
    %1999 = vmatprep.subr.bf16.mxu0 0
    %2000 = vmatpush1.bf16.msra.mxu0 0
    %2001 = vmatprep.subr.bf16.mxu0 0
    %2002 = vmatpush1.bf16.msra.mxu0 0
    %2003 = vmatprep.subr.bf16.mxu0 0
    %2004 = vmatpush1.bf16.msra.mxu0 %v1988
    %2005 = vmatprep.subr.bf16.mxu0 0
    %2006 = vmatpush2.bf16.msra.mxu0 0
    %2007 = vmatprep.subr.bf16.mxu0 0
    %2008 = vmatpush2.bf16.msra.mxu0 0
    %2009 = vmatprep.subr.bf16.mxu0 0
    %2010 = vmatpush2.bf16.msra.mxu0 0
    %2011 = vmatprep.subr.bf16.mxu0 0
    %2012 = vmatpush2.bf16.msra.mxu0 0
    %2013 = vmatprep.subr.bf16.mxu0 0
    %2014 = vmatpush2.bf16.msra.mxu0 0
    %2015 = vmatprep.subr.bf16.mxu0 0
    %2016 = vmatpush2.bf16.msra.mxu0 0
    %2017 = vmatprep.subr.bf16.mxu0 0
    %2018 = vmatpush2.bf16.msra.mxu0 0
    %2019 = vmatprep.subr.bf16.mxu0 0
    %2020 = vmatpush2.bf16.msra.mxu0 0
    %2021 = vmatprep.mubr.bf16.mxu0 0
    %2022 = vmatmul.mubr.bf16.gmra.mxu0 %v268
    %v2023 = vpop.f32.mrf.mxu0
    %v2024 = vadd.f32 %v512, %v2023
    %v2025 = vpop.f32.mrf.mxu0
    %v2026 = vpop.f32.mrf.mxu0
    %v2027 = vadd.f32 %v512, %v2026
    %v2028 = vpop.f32.mrf.mxu0
    %2029 = vdwg.mxu0
    %v2030 = vmul.f32 %v2024, 0.25
    %v2031 = vmul.f32 %v2027, 0.25
    %v2032 = vadd.f32 %v1426, %v2030
    %v2033 = vadd.f32 %v1427, %v2031
    %v2034 = vpack.c.bf16 %v2033, %v2032
    %2035 = vmatprep.subr.bf16.mxu0 0
    %2036 = vmatpush1.bf16.msra.mxu0 %v554
    %2037 = vmatprep.subr.bf16.mxu0 0
    %2038 = vmatpush1.bf16.msra.mxu0 %v553
    %2039 = vmatprep.subr.bf16.mxu0 0
    %2040 = vmatpush1.bf16.msra.mxu0 %v552
    %2041 = vmatprep.subr.bf16.mxu0 0
    %2042 = vmatpush1.bf16.msra.mxu0 %v551
    %2043 = vmatprep.subr.bf16.mxu0 0
    %2044 = vmatpush1.bf16.msra.mxu0 %v550
    %2045 = vmatprep.subr.bf16.mxu0 0
    %2046 = vmatpush1.bf16.msra.mxu0 %v549
    %2047 = vmatprep.subr.bf16.mxu0 0
    %2048 = vmatpush1.bf16.msra.mxu0 %v548
    %2049 = vmatprep.subr.bf16.mxu0 0
    %2050 = vmatpush1.bf16.msra.mxu0 %v547
    %2051 = vmatprep.subr.bf16.mxu0 0
    %2052 = vmatpush2.bf16.msra.mxu0 0
    %2053 = vmatprep.subr.bf16.mxu0 0
    %2054 = vmatpush2.bf16.msra.mxu0 0
    %2055 = vmatprep.subr.bf16.mxu0 0
    %2056 = vmatpush2.bf16.msra.mxu0 0
    %2057 = vmatprep.subr.bf16.mxu0 0
    %2058 = vmatpush2.bf16.msra.mxu0 0
    %2059 = vmatprep.subr.bf16.mxu0 0
    %2060 = vmatpush2.bf16.msra.mxu0 0
    %2061 = vmatprep.subr.bf16.mxu0 0
    %2062 = vmatpush2.bf16.msra.mxu0 0
    %2063 = vmatprep.subr.bf16.mxu0 0
    %2064 = vmatpush2.bf16.msra.mxu0 0
    %2065 = vmatprep.subr.bf16.mxu0 0
    %2066 = vmatpush2.bf16.msra.mxu0 0
    %2067 = vmatprep.mubr.bf16.mxu0 0
    %2068 = vmatmul.mubr.bf16.gmra.mxu0 %v2034
    %v2069 = vpop.f32.mrf.mxu0
    %v2070 = vadd.f32 0.0, %v2069
    %v2071 = vpop.f32.mrf.mxu0
    %v2072 = vpop.f32.mrf.mxu0
    %v2073 = vadd.f32 0.0, %v2072
    %v2074 = vpop.f32.mrf.mxu0
    %2075 = vdwg.mxu0
    %v2076 = vpack.c.bf16 %v2073, %v2070
    %2077 = vmatprep.subr.bf16.mxu0 0
    %2078 = vmatpush1.bf16.msra.mxu0 0
    %2079 = vmatprep.subr.bf16.mxu0 0
    %2080 = vmatpush1.bf16.msra.mxu0 0
    %2081 = vmatprep.subr.bf16.mxu0 0
    %2082 = vmatpush1.bf16.msra.mxu0 0
    %2083 = vmatprep.subr.bf16.mxu0 0
    %2084 = vmatpush1.bf16.msra.mxu0 0
    %2085 = vmatprep.subr.bf16.mxu0 0
    %2086 = vmatpush1.bf16.msra.mxu0 0
    %2087 = vmatprep.subr.bf16.mxu0 0
    %2088 = vmatpush1.bf16.msra.mxu0 0
    %2089 = vmatprep.subr.bf16.mxu0 0
    %2090 = vmatpush1.bf16.msra.mxu0 0
    %2091 = vmatprep.subr.bf16.mxu0 0
    %2092 = vmatpush1.bf16.msra.mxu0 %v2076
    %2093 = vmatprep.subr.bf16.mxu0 0
    %2094 = vmatpush2.bf16.msra.mxu0 0
    %2095 = vmatprep.subr.bf16.mxu0 0
    %2096 = vmatpush2.bf16.msra.mxu0 0
    %2097 = vmatprep.subr.bf16.mxu0 0
    %2098 = vmatpush2.bf16.msra.mxu0 0
    %2099 = vmatprep.subr.bf16.mxu0 0
    %2100 = vmatpush2.bf16.msra.mxu0 0
    %2101 = vmatprep.subr.bf16.mxu0 0
    %2102 = vmatpush2.bf16.msra.mxu0 0
    %2103 = vmatprep.subr.bf16.mxu0 0
    %2104 = vmatpush2.bf16.msra.mxu0 0
    %2105 = vmatprep.subr.bf16.mxu0 0
    %2106 = vmatpush2.bf16.msra.mxu0 0
    %2107 = vmatprep.subr.bf16.mxu0 0
    %2108 = vmatpush2.bf16.msra.mxu0 0
    %2109 = vmatprep.mubr.bf16.mxu0 0
    %2110 = vmatmul.mubr.bf16.gmra.mxu0 %v268
    %v2111 = vpop.f32.mrf.mxu0
    %v2112 = vadd.f32 %v505, %v2111
    %v2113 = vpop.f32.mrf.mxu0
    %v2114 = vpop.f32.mrf.mxu0
    %v2115 = vadd.f32 %v505, %v2114
    %v2116 = vpop.f32.mrf.mxu0
    %2117 = vdwg.mxu0
    %v2118 = vmax.f32 %v2112, 0.0
    %v2119 = vmax.f32 %v2115, 0.0
    %v2120 = vand.u32 2147483647, %v2112
    %v2121 = vand.u32 2147483647, %v2115
    %v2122 = vsub.f32 0.0, %v2120
    %v2123 = vsub.f32 0.0, %v2121
    %v2124 = vmul.f32 %v2122, 1.442695
    %v2125 = vpow.pop %v2124
    %v2126 = vmul.f32 %v2123, 1.442695
    %v2127 = vpow.pop %v2126
    %v2128 = vadd.f32 %v2125, 1.0
    %v2129 = vlog2.pop %v2128
    %v2130 = vmul.f32 %v2129, 0.6931472
    %v2131 = vmul.f32 -0.5, %v2125
    %v2132 = vadd.f32 %v2131, 1.0
    %v2133 = vmul.f32 %v2132, %v2125
    %v2134 = vand.u32 2147483647, %v2125
    %vm2135 = vcmp.lt.f32.partialorder %v2134, 0.0004427343
    %v2136 = vsel %vm2135, %v2133, %v2130
    %v2137 = vadd.f32 %v2127, 1.0
    %v2138 = vlog2.pop %v2137
    %v2139 = vmul.f32 %v2138, 0.6931472
    %v2140 = vmul.f32 -0.5, %v2127
    %v2141 = vadd.f32 %v2140, 1.0
    %v2142 = vmul.f32 %v2141, %v2127
    %v2143 = vand.u32 2147483647, %v2127
    %vm2144 = vcmp.lt.f32.partialorder %v2143, 0.0004427343
    %v2145 = vsel %vm2144, %v2142, %v2139
    %v2146 = vadd.f32 %v2118, %v2136
    %v2147 = vadd.f32 %v2119, %v2145
    %v2148 = vpack.c.bf16 %v2147, %v2146
    %2149 = vmatprep.subr.bf16.mxu0 0
    %2150 = vmatpush1.bf16.msra.mxu0 %v716
    %2151 = vmatprep.subr.bf16.mxu0 0
    %2152 = vmatpush1.bf16.msra.mxu0 %v715
    %2153 = vmatprep.subr.bf16.mxu0 0
    %2154 = vmatpush1.bf16.msra.mxu0 %v714
    %2155 = vmatprep.subr.bf16.mxu0 0
    %2156 = vmatpush1.bf16.msra.mxu0 %v713
    %2157 = vmatprep.subr.bf16.mxu0 0
    %2158 = vmatpush1.bf16.msra.mxu0 %v712
    %2159 = vmatprep.subr.bf16.mxu0 0
    %2160 = vmatpush1.bf16.msra.mxu0 %v711
    %2161 = vmatprep.subr.bf16.mxu0 0
    %2162 = vmatpush1.bf16.msra.mxu0 %v710
    %2163 = vmatprep.subr.bf16.mxu0 0
    %2164 = vmatpush1.bf16.msra.mxu0 %v709
    %2165 = vmatprep.subr.bf16.mxu0 0
    %2166 = vmatpush2.bf16.msra.mxu0 0
    %2167 = vmatprep.subr.bf16.mxu0 0
    %2168 = vmatpush2.bf16.msra.mxu0 0
    %2169 = vmatprep.subr.bf16.mxu0 0
    %2170 = vmatpush2.bf16.msra.mxu0 0
    %2171 = vmatprep.subr.bf16.mxu0 0
    %2172 = vmatpush2.bf16.msra.mxu0 0
    %2173 = vmatprep.subr.bf16.mxu0 0
    %2174 = vmatpush2.bf16.msra.mxu0 0
    %2175 = vmatprep.subr.bf16.mxu0 0
    %2176 = vmatpush2.bf16.msra.mxu0 0
    %2177 = vmatprep.subr.bf16.mxu0 0
    %2178 = vmatpush2.bf16.msra.mxu0 0
    %2179 = vmatprep.subr.bf16.mxu0 0
    %2180 = vmatpush2.bf16.msra.mxu0 0
    %2181 = vmatprep.mubr.bf16.mxu0 0
    %2182 = vmatmul.mubr.bf16.gmra.mxu0 %v2148
    %v2183 = vpop.f32.mrf.mxu0
    %v2184 = vadd.f32 0.0, %v2183
    %v2185 = vpop.f32.mrf.mxu0
    %v2186 = vpop.f32.mrf.mxu0
    %v2187 = vadd.f32 0.0, %v2186
    %v2188 = vpop.f32.mrf.mxu0
    %2189 = vdwg.mxu0
    %v2190 = vpack.c.bf16 %v2187, %v2184
    %2191 = vmatprep.subr.bf16.mxu0 0
    %2192 = vmatpush1.bf16.msra.mxu0 0
    %2193 = vmatprep.subr.bf16.mxu0 0
    %2194 = vmatpush1.bf16.msra.mxu0 0
    %2195 = vmatprep.subr.bf16.mxu0 0
    %2196 = vmatpush1.bf16.msra.mxu0 0
    %2197 = vmatprep.subr.bf16.mxu0 0
    %2198 = vmatpush1.bf16.msra.mxu0 0
    %2199 = vmatprep.subr.bf16.mxu0 0
    %2200 = vmatpush1.bf16.msra.mxu0 0
    %2201 = vmatprep.subr.bf16.mxu0 0
    %2202 = vmatpush1.bf16.msra.mxu0 0
    %2203 = vmatprep.subr.bf16.mxu0 0
    %2204 = vmatpush1.bf16.msra.mxu0 0
    %2205 = vmatprep.subr.bf16.mxu0 0
    %2206 = vmatpush1.bf16.msra.mxu0 %v2190
    %2207 = vmatprep.subr.bf16.mxu0 0
    %2208 = vmatpush2.bf16.msra.mxu0 0
    %2209 = vmatprep.subr.bf16.mxu0 0
    %2210 = vmatpush2.bf16.msra.mxu0 0
    %2211 = vmatprep.subr.bf16.mxu0 0
    %2212 = vmatpush2.bf16.msra.mxu0 0
    %2213 = vmatprep.subr.bf16.mxu0 0
    %2214 = vmatpush2.bf16.msra.mxu0 0
    %2215 = vmatprep.subr.bf16.mxu0 0
    %2216 = vmatpush2.bf16.msra.mxu0 0
    %2217 = vmatprep.subr.bf16.mxu0 0
    %2218 = vmatpush2.bf16.msra.mxu0 0
    %2219 = vmatprep.subr.bf16.mxu0 0
    %2220 = vmatpush2.bf16.msra.mxu0 0
    %2221 = vmatprep.subr.bf16.mxu0 0
    %2222 = vmatpush2.bf16.msra.mxu0 0
    %2223 = vmatprep.mubr.bf16.mxu0 0
    %2224 = vmatmul.mubr.bf16.gmra.mxu0 %v268
    %v2225 = vpop.f32.mrf.mxu0
    %v2226 = vadd.f32 %v512, %v2225
    %v2227 = vpop.f32.mrf.mxu0
    %v2228 = vpop.f32.mrf.mxu0
    %v2229 = vadd.f32 %v512, %v2228
    %v2230 = vpop.f32.mrf.mxu0
    %2231 = vdwg.mxu0
    %v2232 = vmul.f32 %v1822, 2.0
    %v2233 = vmul.f32 %v1825, 2.0
    %v2234 = vadd.f32 %v1620, %v2232
    %v2235 = vadd.f32 %v1623, %v2233
    %v2236 = vmul.f32 %v2024, 2.0
    %v2237 = vmul.f32 %v2027, 2.0
    %v2238 = vadd.f32 %v2234, %v2236
    %v2239 = vadd.f32 %v2235, %v2237
    %v2240 = vadd.f32 %v2238, %v2226
    %v2241 = vadd.f32 %v2239, %v2229
    %v2242 = vmul.f32 %v2240, 0.041666668
    %v2243 = vmul.f32 %v2241, 0.041666668
    %v2244 = vadd.f32 %v1426, %v2242
    %v2245 = vadd.f32 %v1427, %v2243
    %v2246 = vpack.c.bf16 %v2245, %v2244
    %2247 = vmatprep.subr.bf16.mxu0 0
    %2248 = vmatpush1.bf16.msra.mxu0 %v554
    %2249 = vmatprep.subr.bf16.mxu0 0
    %2250 = vmatpush1.bf16.msra.mxu0 %v553
    %2251 = vmatprep.subr.bf16.mxu0 0
    %2252 = vmatpush1.bf16.msra.mxu0 %v552
    %2253 = vmatprep.subr.bf16.mxu0 0
    %2254 = vmatpush1.bf16.msra.mxu0 %v551
    %2255 = vmatprep.subr.bf16.mxu0 0
    %2256 = vmatpush1.bf16.msra.mxu0 %v550
    %2257 = vmatprep.subr.bf16.mxu0 0
    %2258 = vmatpush1.bf16.msra.mxu0 %v549
    %2259 = vmatprep.subr.bf16.mxu0 0
    %2260 = vmatpush1.bf16.msra.mxu0 %v548
    %2261 = vmatprep.subr.bf16.mxu0 0
    %2262 = vmatpush1.bf16.msra.mxu0 %v547
    %2263 = vmatprep.subr.bf16.mxu0 0
    %2264 = vmatpush2.bf16.msra.mxu0 0
    %2265 = vmatprep.subr.bf16.mxu0 0
    %2266 = vmatpush2.bf16.msra.mxu0 0
    %2267 = vmatprep.subr.bf16.mxu0 0
    %2268 = vmatpush2.bf16.msra.mxu0 0
    %2269 = vmatprep.subr.bf16.mxu0 0
    %2270 = vmatpush2.bf16.msra.mxu0 0
    %2271 = vmatprep.subr.bf16.mxu0 0
    %2272 = vmatpush2.bf16.msra.mxu0 0
    %2273 = vmatprep.subr.bf16.mxu0 0
    %2274 = vmatpush2.bf16.msra.mxu0 0
    %2275 = vmatprep.subr.bf16.mxu0 0
    %2276 = vmatpush2.bf16.msra.mxu0 0
    %2277 = vmatprep.subr.bf16.mxu0 0
    %2278 = vmatpush2.bf16.msra.mxu0 0
    %2279 = vmatprep.mubr.bf16.mxu0 0
    %2280 = vmatmul.mubr.bf16.gmra.mxu0 %v2246
    %v2281 = vpop.f32.mrf.mxu0
    %v2282 = vadd.f32 0.0, %v2281
    %v2283 = vpop.f32.mrf.mxu0
    %v2284 = vpop.f32.mrf.mxu0
    %v2285 = vadd.f32 0.0, %v2284
    %v2286 = vpop.f32.mrf.mxu0
    %2287 = vdwg.mxu0
    %v2288 = vpack.c.bf16 %v2285, %v2282
    %2289 = vmatprep.subr.bf16.mxu0 0
    %2290 = vmatpush1.bf16.msra.mxu0 0
    %2291 = vmatprep.subr.bf16.mxu0 0
    %2292 = vmatpush1.bf16.msra.mxu0 0
    %2293 = vmatprep.subr.bf16.mxu0 0
    %2294 = vmatpush1.bf16.msra.mxu0 0
    %2295 = vmatprep.subr.bf16.mxu0 0
    %2296 = vmatpush1.bf16.msra.mxu0 0
    %2297 = vmatprep.subr.bf16.mxu0 0
    %2298 = vmatpush1.bf16.msra.mxu0 0
    %2299 = vmatprep.subr.bf16.mxu0 0
    %2300 = vmatpush1.bf16.msra.mxu0 0
    %2301 = vmatprep.subr.bf16.mxu0 0
    %2302 = vmatpush1.bf16.msra.mxu0 0
    %2303 = vmatprep.subr.bf16.mxu0 0
    %2304 = vmatpush1.bf16.msra.mxu0 %v2288
    %2305 = vmatprep.subr.bf16.mxu0 0
    %2306 = vmatpush2.bf16.msra.mxu0 0
    %2307 = vmatprep.subr.bf16.mxu0 0
    %2308 = vmatpush2.bf16.msra.mxu0 0
    %2309 = vmatprep.subr.bf16.mxu0 0
    %2310 = vmatpush2.bf16.msra.mxu0 0
    %2311 = vmatprep.subr.bf16.mxu0 0
    %2312 = vmatpush2.bf16.msra.mxu0 0
    %2313 = vmatprep.subr.bf16.mxu0 0
    %2314 = vmatpush2.bf16.msra.mxu0 0
    %2315 = vmatprep.subr.bf16.mxu0 0
    %2316 = vmatpush2.bf16.msra.mxu0 0
    %2317 = vmatprep.subr.bf16.mxu0 0
    %2318 = vmatpush2.bf16.msra.mxu0 0
    %2319 = vmatprep.subr.bf16.mxu0 0
    %2320 = vmatpush2.bf16.msra.mxu0 0
    %2321 = vmatprep.mubr.bf16.mxu0 0
    %2322 = vmatmul.mubr.bf16.gmra.mxu0 %v268
    %v2323 = vpop.f32.mrf.mxu0
    %v2324 = vadd.f32 %v505, %v2323
    %v2325 = vpop.f32.mrf.mxu0
    %v2326 = vpop.f32.mrf.mxu0
    %v2327 = vadd.f32 %v505, %v2326
    %v2328 = vpop.f32.mrf.mxu0
    %2329 = vdwg.mxu0
    %v2330 = vmax.f32 %v2324, 0.0
    %v2331 = vmax.f32 %v2327, 0.0
    %v2332 = vand.u32 2147483647, %v2324
    %v2333 = vand.u32 2147483647, %v2327
    %v2334 = vsub.f32 0.0, %v2332
    %v2335 = vsub.f32 0.0, %v2333
    %v2336 = vmul.f32 %v2334, 1.442695
    %v2337 = vpow.pop %v2336
    %v2338 = vmul.f32 %v2335, 1.442695
    %v2339 = vpow.pop %v2338
    %v2340 = vadd.f32 %v2337, 1.0
    %v2341 = vlog2.pop %v2340
    %v2342 = vmul.f32 %v2341, 0.6931472
    %v2343 = vmul.f32 -0.5, %v2337
    %v2344 = vadd.f32 %v2343, 1.0
    %v2345 = vmul.f32 %v2344, %v2337
    %v2346 = vand.u32 2147483647, %v2337
    %vm2347 = vcmp.lt.f32.partialorder %v2346, 0.0004427343
    %v2348 = vsel %vm2347, %v2345, %v2342
    %v2349 = vadd.f32 %v2339, 1.0
    %v2350 = vlog2.pop %v2349
    %v2351 = vmul.f32 %v2350, 0.6931472
    %v2352 = vmul.f32 -0.5, %v2339
    %v2353 = vadd.f32 %v2352, 1.0
    %v2354 = vmul.f32 %v2353, %v2339
    %v2355 = vand.u32 2147483647, %v2339
    %vm2356 = vcmp.lt.f32.partialorder %v2355, 0.0004427343
    %v2357 = vsel %vm2356, %v2354, %v2351
    %v2358 = vadd.f32 %v2330, %v2348
    %v2359 = vadd.f32 %v2331, %v2357
    %v2360 = vpack.c.bf16 %v2359, %v2358
    %2361 = vmatprep.subr.bf16.mxu0 0
    %2362 = vmatpush1.bf16.msra.mxu0 %v716
    %2363 = vmatprep.subr.bf16.mxu0 0
    %2364 = vmatpush1.bf16.msra.mxu0 %v715
    %2365 = vmatprep.subr.bf16.mxu0 0
    %2366 = vmatpush1.bf16.msra.mxu0 %v714
    %2367 = vmatprep.subr.bf16.mxu0 0
    %2368 = vmatpush1.bf16.msra.mxu0 %v713
    %2369 = vmatprep.subr.bf16.mxu0 0
    %2370 = vmatpush1.bf16.msra.mxu0 %v712
    %2371 = vmatprep.subr.bf16.mxu0 0
    %2372 = vmatpush1.bf16.msra.mxu0 %v711
    %2373 = vmatprep.subr.bf16.mxu0 0
    %2374 = vmatpush1.bf16.msra.mxu0 %v710
    %2375 = vmatprep.subr.bf16.mxu0 0
    %2376 = vmatpush1.bf16.msra.mxu0 %v709
    %2377 = vmatprep.subr.bf16.mxu0 0
    %2378 = vmatpush2.bf16.msra.mxu0 0
    %2379 = vmatprep.subr.bf16.mxu0 0
    %2380 = vmatpush2.bf16.msra.mxu0 0
    %2381 = vmatprep.subr.bf16.mxu0 0
    %2382 = vmatpush2.bf16.msra.mxu0 0
    %2383 = vmatprep.subr.bf16.mxu0 0
    %2384 = vmatpush2.bf16.msra.mxu0 0
    %2385 = vmatprep.subr.bf16.mxu0 0
    %2386 = vmatpush2.bf16.msra.mxu0 0
    %2387 = vmatprep.subr.bf16.mxu0 0
    %2388 = vmatpush2.bf16.msra.mxu0 0
    %2389 = vmatprep.subr.bf16.mxu0 0
    %2390 = vmatpush2.bf16.msra.mxu0 0
    %2391 = vmatprep.subr.bf16.mxu0 0
    %2392 = vmatpush2.bf16.msra.mxu0 0
    %2393 = vmatprep.mubr.bf16.mxu0 0
    %2394 = vmatmul.mubr.bf16.gmra.mxu0 %v2360
    %v2395 = vpop.f32.mrf.mxu0
    %v2396 = vadd.f32 0.0, %v2395
    %v2397 = vpop.f32.mrf.mxu0
    %v2398 = vpop.f32.mrf.mxu0
    %v2399 = vadd.f32 0.0, %v2398
    %v2400 = vpop.f32.mrf.mxu0
    %2401 = vdwg.mxu0
    %v2402 = vpack.c.bf16 %v2399, %v2396
    %2403 = vmatprep.subr.bf16.mxu0 0
    %2404 = vmatpush1.bf16.msra.mxu0 0
    %2405 = vmatprep.subr.bf16.mxu0 0
    %2406 = vmatpush1.bf16.msra.mxu0 0
    %2407 = vmatprep.subr.bf16.mxu0 0
    %2408 = vmatpush1.bf16.msra.mxu0 0
    %2409 = vmatprep.subr.bf16.mxu0 0
    %2410 = vmatpush1.bf16.msra.mxu0 0
    %2411 = vmatprep.subr.bf16.mxu0 0
    %2412 = vmatpush1.bf16.msra.mxu0 0
    %2413 = vmatprep.subr.bf16.mxu0 0
    %2414 = vmatpush1.bf16.msra.mxu0 0
    %2415 = vmatprep.subr.bf16.mxu0 0
    %2416 = vmatpush1.bf16.msra.mxu0 0
    %2417 = vmatprep.subr.bf16.mxu0 0
    %2418 = vmatpush1.bf16.msra.mxu0 %v2402
    %2419 = vmatprep.subr.bf16.mxu0 0
    %2420 = vmatpush2.bf16.msra.mxu0 0
    %2421 = vmatprep.subr.bf16.mxu0 0
    %2422 = vmatpush2.bf16.msra.mxu0 0
    %2423 = vmatprep.subr.bf16.mxu0 0
    %2424 = vmatpush2.bf16.msra.mxu0 0
    %2425 = vmatprep.subr.bf16.mxu0 0
    %2426 = vmatpush2.bf16.msra.mxu0 0
    %2427 = vmatprep.subr.bf16.mxu0 0
    %2428 = vmatpush2.bf16.msra.mxu0 0
    %2429 = vmatprep.subr.bf16.mxu0 0
    %2430 = vmatpush2.bf16.msra.mxu0 0
    %2431 = vmatprep.subr.bf16.mxu0 0
    %2432 = vmatpush2.bf16.msra.mxu0 0
    %2433 = vmatprep.subr.bf16.mxu0 0
    %2434 = vmatpush2.bf16.msra.mxu0 0
    %2435 = vmatprep.mubr.bf16.mxu0 0
    %2436 = vmatmul.mubr.bf16.gmra.mxu0 %v268
    %v2437 = vpop.f32.mrf.mxu0
    %v2438 = vadd.f32 %v512, %v2437
    %v2439 = vpop.f32.mrf.mxu0
    %v2440 = vpop.f32.mrf.mxu0
    %v2441 = vadd.f32 %v512, %v2440
    %v2442 = vpop.f32.mrf.mxu0
    %2443 = vdwg.mxu0
    %v2444 = vmul.f32 %v2438, 0.125
    %v2445 = vmul.f32 %v2441, 0.125
    %v2446 = vadd.f32 %v2244, %v2444
    %v2447 = vadd.f32 %v2245, %v2445
    %v2448 = vpack.c.bf16 %v2447, %v2446
    %2449 = vmatprep.subr.bf16.mxu0 0
    %2450 = vmatpush1.bf16.msra.mxu0 %v554
    %2451 = vmatprep.subr.bf16.mxu0 0
    %2452 = vmatpush1.bf16.msra.mxu0 %v553
    %2453 = vmatprep.subr.bf16.mxu0 0
    %2454 = vmatpush1.bf16.msra.mxu0 %v552
    %2455 = vmatprep.subr.bf16.mxu0 0
    %2456 = vmatpush1.bf16.msra.mxu0 %v551
    %2457 = vmatprep.subr.bf16.mxu0 0
    %2458 = vmatpush1.bf16.msra.mxu0 %v550
    %2459 = vmatprep.subr.bf16.mxu0 0
    %2460 = vmatpush1.bf16.msra.mxu0 %v549
    %2461 = vmatprep.subr.bf16.mxu0 0
    %2462 = vmatpush1.bf16.msra.mxu0 %v548
    %2463 = vmatprep.subr.bf16.mxu0 0
    %2464 = vmatpush1.bf16.msra.mxu0 %v547
    %2465 = vmatprep.subr.bf16.mxu0 0
    %2466 = vmatpush2.bf16.msra.mxu0 0
    %2467 = vmatprep.subr.bf16.mxu0 0
    %2468 = vmatpush2.bf16.msra.mxu0 0
    %2469 = vmatprep.subr.bf16.mxu0 0
    %2470 = vmatpush2.bf16.msra.mxu0 0
    %2471 = vmatprep.subr.bf16.mxu0 0
    %2472 = vmatpush2.bf16.msra.mxu0 0
    %2473 = vmatprep.subr.bf16.mxu0 0
    %2474 = vmatpush2.bf16.msra.mxu0 0
    %2475 = vmatprep.subr.bf16.mxu0 0
    %2476 = vmatpush2.bf16.msra.mxu0 0
    %2477 = vmatprep.subr.bf16.mxu0 0
    %2478 = vmatpush2.bf16.msra.mxu0 0
    %2479 = vmatprep.subr.bf16.mxu0 0
    %2480 = vmatpush2.bf16.msra.mxu0 0
    %2481 = vmatprep.mubr.bf16.mxu0 0
    %2482 = vmatmul.mubr.bf16.gmra.mxu0 %v2448
    %v2483 = vpop.f32.mrf.mxu0
    %v2484 = vadd.f32 0.0, %v2483
    %v2485 = vpop.f32.mrf.mxu0
    %v2486 = vpop.f32.mrf.mxu0
    %v2487 = vadd.f32 0.0, %v2486
    %v2488 = vpop.f32.mrf.mxu0
    %2489 = vdwg.mxu0
    %v2490 = vpack.c.bf16 %v2487, %v2484
    %2491 = vmatprep.subr.bf16.mxu0 0
    %2492 = vmatpush1.bf16.msra.mxu0 0
    %2493 = vmatprep.subr.bf16.mxu0 0
    %2494 = vmatpush1.bf16.msra.mxu0 0
    %2495 = vmatprep.subr.bf16.mxu0 0
    %2496 = vmatpush1.bf16.msra.mxu0 0
    %2497 = vmatprep.subr.bf16.mxu0 0
    %2498 = vmatpush1.bf16.msra.mxu0 0
    %2499 = vmatprep.subr.bf16.mxu0 0
    %2500 = vmatpush1.bf16.msra.mxu0 0
    %2501 = vmatprep.subr.bf16.mxu0 0
    %2502 = vmatpush1.bf16.msra.mxu0 0
    %2503 = vmatprep.subr.bf16.mxu0 0
    %2504 = vmatpush1.bf16.msra.mxu0 0
    %2505 = vmatprep.subr.bf16.mxu0 0
    %2506 = vmatpush1.bf16.msra.mxu0 %v2490
    %2507 = vmatprep.subr.bf16.mxu0 0
    %2508 = vmatpush2.bf16.msra.mxu0 0
    %2509 = vmatprep.subr.bf16.mxu0 0
    %2510 = vmatpush2.bf16.msra.mxu0 0
    %2511 = vmatprep.subr.bf16.mxu0 0
    %2512 = vmatpush2.bf16.msra.mxu0 0
    %2513 = vmatprep.subr.bf16.mxu0 0
    %2514 = vmatpush2.bf16.msra.mxu0 0
    %2515 = vmatprep.subr.bf16.mxu0 0
    %2516 = vmatpush2.bf16.msra.mxu0 0
    %2517 = vmatprep.subr.bf16.mxu0 0
    %2518 = vmatpush2.bf16.msra.mxu0 0
    %2519 = vmatprep.subr.bf16.mxu0 0
    %2520 = vmatpush2.bf16.msra.mxu0 0
    %2521 = vmatprep.subr.bf16.mxu0 0
    %2522 = vmatpush2.bf16.msra.mxu0 0
    %2523 = vmatprep.mubr.bf16.mxu0 0
    %2524 = vmatmul.mubr.bf16.gmra.mxu0 %v268
    %v2525 = vpop.f32.mrf.mxu0
    %v2526 = vadd.f32 %v505, %v2525
    %v2527 = vpop.f32.mrf.mxu0
    %v2528 = vpop.f32.mrf.mxu0
    %v2529 = vadd.f32 %v505, %v2528
    %v2530 = vpop.f32.mrf.mxu0
    %2531 = vdwg.mxu0
    %v2532 = vmax.f32 %v2526, 0.0
    %v2533 = vmax.f32 %v2529, 0.0
    %v2534 = vand.u32 2147483647, %v2526
    %v2535 = vand.u32 2147483647, %v2529
    %v2536 = vsub.f32 0.0, %v2534
    %v2537 = vsub.f32 0.0, %v2535
    %v2538 = vmul.f32 %v2536, 1.442695
    %v2539 = vpow.pop %v2538
    %v2540 = vmul.f32 %v2537, 1.442695
    %v2541 = vpow.pop %v2540
    %v2542 = vadd.f32 %v2539, 1.0
    %v2543 = vlog2.pop %v2542
    %v2544 = vmul.f32 %v2543, 0.6931472
    %v2545 = vmul.f32 -0.5, %v2539
    %v2546 = vadd.f32 %v2545, 1.0
    %v2547 = vmul.f32 %v2546, %v2539
    %v2548 = vand.u32 2147483647, %v2539
    %vm2549 = vcmp.lt.f32.partialorder %v2548, 0.0004427343
    %v2550 = vsel %vm2549, %v2547, %v2544
    %v2551 = vadd.f32 %v2541, 1.0
    %v2552 = vlog2.pop %v2551
    %v2553 = vmul.f32 %v2552, 0.6931472
    %v2554 = vmul.f32 -0.5, %v2541
    %v2555 = vadd.f32 %v2554, 1.0
    %v2556 = vmul.f32 %v2555, %v2541
    %v2557 = vand.u32 2147483647, %v2541
    %vm2558 = vcmp.lt.f32.partialorder %v2557, 0.0004427343
    %v2559 = vsel %vm2558, %v2556, %v2553
    %v2560 = vadd.f32 %v2532, %v2550
    %v2561 = vadd.f32 %v2533, %v2559
    %v2562 = vpack.c.bf16 %v2561, %v2560
    %2563 = vmatprep.subr.bf16.mxu0 0
    %2564 = vmatpush1.bf16.msra.mxu0 %v716
    %2565 = vmatprep.subr.bf16.mxu0 0
    %2566 = vmatpush1.bf16.msra.mxu0 %v715
    %2567 = vmatprep.subr.bf16.mxu0 0
    %2568 = vmatpush1.bf16.msra.mxu0 %v714
    %2569 = vmatprep.subr.bf16.mxu0 0
    %2570 = vmatpush1.bf16.msra.mxu0 %v713
    %2571 = vmatprep.subr.bf16.mxu0 0
    %2572 = vmatpush1.bf16.msra.mxu0 %v712
    %2573 = vmatprep.subr.bf16.mxu0 0
    %2574 = vmatpush1.bf16.msra.mxu0 %v711
    %2575 = vmatprep.subr.bf16.mxu0 0
    %2576 = vmatpush1.bf16.msra.mxu0 %v710
    %2577 = vmatprep.subr.bf16.mxu0 0
    %2578 = vmatpush1.bf16.msra.mxu0 %v709
    %2579 = vmatprep.subr.bf16.mxu0 0
    %2580 = vmatpush2.bf16.msra.mxu0 0
    %2581 = vmatprep.subr.bf16.mxu0 0
    %2582 = vmatpush2.bf16.msra.mxu0 0
    %2583 = vmatprep.subr.bf16.mxu0 0
    %2584 = vmatpush2.bf16.msra.mxu0 0
    %2585 = vmatprep.subr.bf16.mxu0 0
    %2586 = vmatpush2.bf16.msra.mxu0 0
    %2587 = vmatprep.subr.bf16.mxu0 0
    %2588 = vmatpush2.bf16.msra.mxu0 0
    %2589 = vmatprep.subr.bf16.mxu0 0
    %2590 = vmatpush2.bf16.msra.mxu0 0
    %2591 = vmatprep.subr.bf16.mxu0 0
    %2592 = vmatpush2.bf16.msra.mxu0 0
    %2593 = vmatprep.subr.bf16.mxu0 0
    %2594 = vmatpush2.bf16.msra.mxu0 0
    %2595 = vmatprep.mubr.bf16.mxu0 0
    %2596 = vmatmul.mubr.bf16.gmra.mxu0 %v2562
    %v2597 = vpop.f32.mrf.mxu0
    %v2598 = vadd.f32 0.0, %v2597
    %v2599 = vpop.f32.mrf.mxu0
    %v2600 = vpop.f32.mrf.mxu0
    %v2601 = vadd.f32 0.0, %v2600
    %v2602 = vpop.f32.mrf.mxu0
    %2603 = vdwg.mxu0
    %v2604 = vpack.c.bf16 %v2601, %v2598
    %2605 = vmatprep.subr.bf16.mxu0 0
    %2606 = vmatpush1.bf16.msra.mxu0 0
    %2607 = vmatprep.subr.bf16.mxu0 0
    %2608 = vmatpush1.bf16.msra.mxu0 0
    %2609 = vmatprep.subr.bf16.mxu0 0
    %2610 = vmatpush1.bf16.msra.mxu0 0
    %2611 = vmatprep.subr.bf16.mxu0 0
    %2612 = vmatpush1.bf16.msra.mxu0 0
    %2613 = vmatprep.subr.bf16.mxu0 0
    %2614 = vmatpush1.bf16.msra.mxu0 0
    %2615 = vmatprep.subr.bf16.mxu0 0
    %2616 = vmatpush1.bf16.msra.mxu0 0
    %2617 = vmatprep.subr.bf16.mxu0 0
    %2618 = vmatpush1.bf16.msra.mxu0 0
    %2619 = vmatprep.subr.bf16.mxu0 0
    %2620 = vmatpush1.bf16.msra.mxu0 %v2604
    %2621 = vmatprep.subr.bf16.mxu0 0
    %2622 = vmatpush2.bf16.msra.mxu0 0
    %2623 = vmatprep.subr.bf16.mxu0 0
    %2624 = vmatpush2.bf16.msra.mxu0 0
    %2625 = vmatprep.subr.bf16.mxu0 0
    %2626 = vmatpush2.bf16.msra.mxu0 0
    %2627 = vmatprep.subr.bf16.mxu0 0
    %2628 = vmatpush2.bf16.msra.mxu0 0
    %2629 = vmatprep.subr.bf16.mxu0 0
    %2630 = vmatpush2.bf16.msra.mxu0 0
    %2631 = vmatprep.subr.bf16.mxu0 0
    %2632 = vmatpush2.bf16.msra.mxu0 0
    %2633 = vmatprep.subr.bf16.mxu0 0
    %2634 = vmatpush2.bf16.msra.mxu0 0
    %2635 = vmatprep.subr.bf16.mxu0 0
    %2636 = vmatpush2.bf16.msra.mxu0 0
    %2637 = vmatprep.mubr.bf16.mxu0 0
    %2638 = vmatmul.mubr.bf16.gmra.mxu0 %v268
    %v2639 = vpop.f32.mrf.mxu0
    %v2640 = vadd.f32 %v512, %v2639
    %v2641 = vpop.f32.mrf.mxu0
    %v2642 = vpop.f32.mrf.mxu0
    %v2643 = vadd.f32 %v512, %v2642
    %v2644 = vpop.f32.mrf.mxu0
    %2645 = vdwg.mxu0
    %v2646 = vmul.f32 %v2640, 0.125
    %v2647 = vmul.f32 %v2643, 0.125
    %v2648 = vadd.f32 %v2244, %v2646
    %v2649 = vadd.f32 %v2245, %v2647
    %v2650 = vpack.c.bf16 %v2649, %v2648
    %2651 = vmatprep.subr.bf16.mxu0 0
    %2652 = vmatpush1.bf16.msra.mxu0 %v554
    %2653 = vmatprep.subr.bf16.mxu0 0
    %2654 = vmatpush1.bf16.msra.mxu0 %v553
    %2655 = vmatprep.subr.bf16.mxu0 0
    %2656 = vmatpush1.bf16.msra.mxu0 %v552
    %2657 = vmatprep.subr.bf16.mxu0 0
    %2658 = vmatpush1.bf16.msra.mxu0 %v551
    %2659 = vmatprep.subr.bf16.mxu0 0
    %2660 = vmatpush1.bf16.msra.mxu0 %v550
    %2661 = vmatprep.subr.bf16.mxu0 0
    %2662 = vmatpush1.bf16.msra.mxu0 %v549
    %2663 = vmatprep.subr.bf16.mxu0 0
    %2664 = vmatpush1.bf16.msra.mxu0 %v548
    %2665 = vmatprep.subr.bf16.mxu0 0
    %2666 = vmatpush1.bf16.msra.mxu0 %v547
    %2667 = vmatprep.subr.bf16.mxu0 0
    %2668 = vmatpush2.bf16.msra.mxu0 0
    %2669 = vmatprep.subr.bf16.mxu0 0
    %2670 = vmatpush2.bf16.msra.mxu0 0
    %2671 = vmatprep.subr.bf16.mxu0 0
    %2672 = vmatpush2.bf16.msra.mxu0 0
    %2673 = vmatprep.subr.bf16.mxu0 0
    %2674 = vmatpush2.bf16.msra.mxu0 0
    %2675 = vmatprep.subr.bf16.mxu0 0
    %2676 = vmatpush2.bf16.msra.mxu0 0
    %2677 = vmatprep.subr.bf16.mxu0 0
    %2678 = vmatpush2.bf16.msra.mxu0 0
    %2679 = vmatprep.subr.bf16.mxu0 0
    %2680 = vmatpush2.bf16.msra.mxu0 0
    %2681 = vmatprep.subr.bf16.mxu0 0
    %2682 = vmatpush2.bf16.msra.mxu0 0
    %2683 = vmatprep.mubr.bf16.mxu0 0
    %2684 = vmatmul.mubr.bf16.gmra.mxu0 %v2650
    %v2685 = vpop.f32.mrf.mxu0
    %v2686 = vadd.f32 0.0, %v2685
    %v2687 = vpop.f32.mrf.mxu0
    %v2688 = vpop.f32.mrf.mxu0
    %v2689 = vadd.f32 0.0, %v2688
    %v2690 = vpop.f32.mrf.mxu0
    %2691 = vdwg.mxu0
    %v2692 = vpack.c.bf16 %v2689, %v2686
    %2693 = vmatprep.subr.bf16.mxu0 0
    %2694 = vmatpush1.bf16.msra.mxu0 0
    %2695 = vmatprep.subr.bf16.mxu0 0
    %2696 = vmatpush1.bf16.msra.mxu0 0
    %2697 = vmatprep.subr.bf16.mxu0 0
    %2698 = vmatpush1.bf16.msra.mxu0 0
    %2699 = vmatprep.subr.bf16.mxu0 0
    %2700 = vmatpush1.bf16.msra.mxu0 0
    %2701 = vmatprep.subr.bf16.mxu0 0
    %2702 = vmatpush1.bf16.msra.mxu0 0
    %2703 = vmatprep.subr.bf16.mxu0 0
    %2704 = vmatpush1.bf16.msra.mxu0 0
    %2705 = vmatprep.subr.bf16.mxu0 0
    %2706 = vmatpush1.bf16.msra.mxu0 0
    %2707 = vmatprep.subr.bf16.mxu0 0
    %2708 = vmatpush1.bf16.msra.mxu0 %v2692
    %2709 = vmatprep.subr.bf16.mxu0 0
    %2710 = vmatpush2.bf16.msra.mxu0 0
    %2711 = vmatprep.subr.bf16.mxu0 0
    %2712 = vmatpush2.bf16.msra.mxu0 0
    %2713 = vmatprep.subr.bf16.mxu0 0
    %2714 = vmatpush2.bf16.msra.mxu0 0
    %2715 = vmatprep.subr.bf16.mxu0 0
    %2716 = vmatpush2.bf16.msra.mxu0 0
    %2717 = vmatprep.subr.bf16.mxu0 0
    %2718 = vmatpush2.bf16.msra.mxu0 0
    %2719 = vmatprep.subr.bf16.mxu0 0
    %2720 = vmatpush2.bf16.msra.mxu0 0
    %2721 = vmatprep.subr.bf16.mxu0 0
    %2722 = vmatpush2.bf16.msra.mxu0 0
    %2723 = vmatprep.subr.bf16.mxu0 0
    %2724 = vmatpush2.bf16.msra.mxu0 0
    %2725 = vmatprep.mubr.bf16.mxu0 0
    %2726 = vmatmul.mubr.bf16.gmra.mxu0 %v268
    %v2727 = vpop.f32.mrf.mxu0
    %v2728 = vadd.f32 %v505, %v2727
    %v2729 = vpop.f32.mrf.mxu0
    %v2730 = vpop.f32.mrf.mxu0
    %v2731 = vadd.f32 %v505, %v2730
    %v2732 = vpop.f32.mrf.mxu0
    %2733 = vdwg.mxu0
    %v2734 = vmax.f32 %v2728, 0.0
    %v2735 = vmax.f32 %v2731, 0.0
    %v2736 = vand.u32 2147483647, %v2728
    %v2737 = vand.u32 2147483647, %v2731
    %v2738 = vsub.f32 0.0, %v2736
    %v2739 = vsub.f32 0.0, %v2737
    %v2740 = vmul.f32 %v2738, 1.442695
    %v2741 = vpow.pop %v2740
    %v2742 = vmul.f32 %v2739, 1.442695
    %v2743 = vpow.pop %v2742
    %v2744 = vadd.f32 %v2741, 1.0
    %v2745 = vlog2.pop %v2744
    %v2746 = vmul.f32 %v2745, 0.6931472
    %v2747 = vmul.f32 -0.5, %v2741
    %v2748 = vadd.f32 %v2747, 1.0
    %v2749 = vmul.f32 %v2748, %v2741
    %v2750 = vand.u32 2147483647, %v2741
    %vm2751 = vcmp.lt.f32.partialorder %v2750, 0.0004427343
    %v2752 = vsel %vm2751, %v2749, %v2746
    %v2753 = vadd.f32 %v2743, 1.0
    %v2754 = vlog2.pop %v2753
    %v2755 = vmul.f32 %v2754, 0.6931472
    %v2756 = vmul.f32 -0.5, %v2743
    %v2757 = vadd.f32 %v2756, 1.0
    %v2758 = vmul.f32 %v2757, %v2743
    %v2759 = vand.u32 2147483647, %v2743
    %vm2760 = vcmp.lt.f32.partialorder %v2759, 0.0004427343
    %v2761 = vsel %vm2760, %v2758, %v2755
    %v2762 = vadd.f32 %v2734, %v2752
    %v2763 = vadd.f32 %v2735, %v2761
    %v2764 = vpack.c.bf16 %v2763, %v2762
    %2765 = vmatprep.subr.bf16.mxu0 0
    %2766 = vmatpush1.bf16.msra.mxu0 %v716
    %2767 = vmatprep.subr.bf16.mxu0 0
    %2768 = vmatpush1.bf16.msra.mxu0 %v715
    %2769 = vmatprep.subr.bf16.mxu0 0
    %2770 = vmatpush1.bf16.msra.mxu0 %v714
    %2771 = vmatprep.subr.bf16.mxu0 0
    %2772 = vmatpush1.bf16.msra.mxu0 %v713
    %2773 = vmatprep.subr.bf16.mxu0 0
    %2774 = vmatpush1.bf16.msra.mxu0 %v712
    %2775 = vmatprep.subr.bf16.mxu0 0
    %2776 = vmatpush1.bf16.msra.mxu0 %v711
    %2777 = vmatprep.subr.bf16.mxu0 0
    %2778 = vmatpush1.bf16.msra.mxu0 %v710
    %2779 = vmatprep.subr.bf16.mxu0 0
    %2780 = vmatpush1.bf16.msra.mxu0 %v709
    %2781 = vmatprep.subr.bf16.mxu0 0
    %2782 = vmatpush2.bf16.msra.mxu0 0
    %2783 = vmatprep.subr.bf16.mxu0 0
    %2784 = vmatpush2.bf16.msra.mxu0 0
    %2785 = vmatprep.subr.bf16.mxu0 0
    %2786 = vmatpush2.bf16.msra.mxu0 0
    %2787 = vmatprep.subr.bf16.mxu0 0
    %2788 = vmatpush2.bf16.msra.mxu0 0
    %2789 = vmatprep.subr.bf16.mxu0 0
    %2790 = vmatpush2.bf16.msra.mxu0 0
    %2791 = vmatprep.subr.bf16.mxu0 0
    %2792 = vmatpush2.bf16.msra.mxu0 0
    %2793 = vmatprep.subr.bf16.mxu0 0
    %2794 = vmatpush2.bf16.msra.mxu0 0
    %2795 = vmatprep.subr.bf16.mxu0 0
    %2796 = vmatpush2.bf16.msra.mxu0 0
    %2797 = vmatprep.mubr.bf16.mxu0 0
    %2798 = vmatmul.mubr.bf16.gmra.mxu0 %v2764
    %v2799 = vpop.f32.mrf.mxu0
    %v2800 = vadd.f32 0.0, %v2799
    %v2801 = vpop.f32.mrf.mxu0
    %v2802 = vpop.f32.mrf.mxu0
    %v2803 = vadd.f32 0.0, %v2802
    %v2804 = vpop.f32.mrf.mxu0
    %2805 = vdwg.mxu0
    %v2806 = vpack.c.bf16 %v2803, %v2800
    %2807 = vmatprep.subr.bf16.mxu0 0
    %2808 = vmatpush1.bf16.msra.mxu0 0
    %2809 = vmatprep.subr.bf16.mxu0 0
    %2810 = vmatpush1.bf16.msra.mxu0 0
    %2811 = vmatprep.subr.bf16.mxu0 0
    %2812 = vmatpush1.bf16.msra.mxu0 0
    %2813 = vmatprep.subr.bf16.mxu0 0
    %2814 = vmatpush1.bf16.msra.mxu0 0
    %2815 = vmatprep.subr.bf16.mxu0 0
    %2816 = vmatpush1.bf16.msra.mxu0 0
    %2817 = vmatprep.subr.bf16.mxu0 0
    %2818 = vmatpush1.bf16.msra.mxu0 0
    %2819 = vmatprep.subr.bf16.mxu0 0
    %2820 = vmatpush1.bf16.msra.mxu0 0
    %2821 = vmatprep.subr.bf16.mxu0 0
    %2822 = vmatpush1.bf16.msra.mxu0 %v2806
    %2823 = vmatprep.subr.bf16.mxu0 0
    %2824 = vmatpush2.bf16.msra.mxu0 0
    %2825 = vmatprep.subr.bf16.mxu0 0
    %2826 = vmatpush2.bf16.msra.mxu0 0
    %2827 = vmatprep.subr.bf16.mxu0 0
    %2828 = vmatpush2.bf16.msra.mxu0 0
    %2829 = vmatprep.subr.bf16.mxu0 0
    %2830 = vmatpush2.bf16.msra.mxu0 0
    %2831 = vmatprep.subr.bf16.mxu0 0
    %2832 = vmatpush2.bf16.msra.mxu0 0
    %2833 = vmatprep.subr.bf16.mxu0 0
    %2834 = vmatpush2.bf16.msra.mxu0 0
    %2835 = vmatprep.subr.bf16.mxu0 0
    %2836 = vmatpush2.bf16.msra.mxu0 0
    %2837 = vmatprep.subr.bf16.mxu0 0
    %2838 = vmatpush2.bf16.msra.mxu0 0
    %2839 = vmatprep.mubr.bf16.mxu0 0
    %2840 = vmatmul.mubr.bf16.gmra.mxu0 %v268
    %v2841 = vpop.f32.mrf.mxu0
    %v2842 = vadd.f32 %v512, %v2841
    %v2843 = vpop.f32.mrf.mxu0
    %v2844 = vpop.f32.mrf.mxu0
    %v2845 = vadd.f32 %v512, %v2844
    %v2846 = vpop.f32.mrf.mxu0
    %2847 = vdwg.mxu0
    %v2848 = vmul.f32 %v2842, 0.25
    %v2849 = vmul.f32 %v2845, 0.25
    %v2850 = vadd.f32 %v2244, %v2848
    %v2851 = vadd.f32 %v2245, %v2849
    %v2852 = vpack.c.bf16 %v2851, %v2850
    %2853 = vmatprep.subr.bf16.mxu0 0
    %2854 = vmatpush1.bf16.msra.mxu0 %v554
    %2855 = vmatprep.subr.bf16.mxu0 0
    %2856 = vmatpush1.bf16.msra.mxu0 %v553
    %2857 = vmatprep.subr.bf16.mxu0 0
    %2858 = vmatpush1.bf16.msra.mxu0 %v552
    %2859 = vmatprep.subr.bf16.mxu0 0
    %2860 = vmatpush1.bf16.msra.mxu0 %v551
    %2861 = vmatprep.subr.bf16.mxu0 0
    %2862 = vmatpush1.bf16.msra.mxu0 %v550
    %2863 = vmatprep.subr.bf16.mxu0 0
    %2864 = vmatpush1.bf16.msra.mxu0 %v549
    %2865 = vmatprep.subr.bf16.mxu0 0
    %2866 = vmatpush1.bf16.msra.mxu0 %v548
    %2867 = vmatprep.subr.bf16.mxu0 0
    %2868 = vmatpush1.bf16.msra.mxu0 %v547
    %2869 = vmatprep.subr.bf16.mxu0 0
    %2870 = vmatpush2.bf16.msra.mxu0 0
    %2871 = vmatprep.subr.bf16.mxu0 0
    %2872 = vmatpush2.bf16.msra.mxu0 0
    %2873 = vmatprep.subr.bf16.mxu0 0
    %2874 = vmatpush2.bf16.msra.mxu0 0
    %2875 = vmatprep.subr.bf16.mxu0 0
    %2876 = vmatpush2.bf16.msra.mxu0 0
    %2877 = vmatprep.subr.bf16.mxu0 0
    %2878 = vmatpush2.bf16.msra.mxu0 0
    %2879 = vmatprep.subr.bf16.mxu0 0
    %2880 = vmatpush2.bf16.msra.mxu0 0
    %2881 = vmatprep.subr.bf16.mxu0 0
    %2882 = vmatpush2.bf16.msra.mxu0 0
    %2883 = vmatprep.subr.bf16.mxu0 0
    %2884 = vmatpush2.bf16.msra.mxu0 0
    %2885 = vmatprep.mubr.bf16.mxu0 0
    %2886 = vmatmul.mubr.bf16.gmra.mxu0 %v2852
    %v2887 = vpop.f32.mrf.mxu0
    %v2888 = vadd.f32 0.0, %v2887
    %v2889 = vpop.f32.mrf.mxu0
    %v2890 = vpop.f32.mrf.mxu0
    %v2891 = vadd.f32 0.0, %v2890
    %v2892 = vpop.f32.mrf.mxu0
    %2893 = vdwg.mxu0
    %v2894 = vpack.c.bf16 %v2891, %v2888
    %2895 = vmatprep.subr.bf16.mxu0 0
    %2896 = vmatpush1.bf16.msra.mxu0 0
    %2897 = vmatprep.subr.bf16.mxu0 0
    %2898 = vmatpush1.bf16.msra.mxu0 0
    %2899 = vmatprep.subr.bf16.mxu0 0
    %2900 = vmatpush1.bf16.msra.mxu0 0
    %2901 = vmatprep.subr.bf16.mxu0 0
    %2902 = vmatpush1.bf16.msra.mxu0 0
    %2903 = vmatprep.subr.bf16.mxu0 0
    %2904 = vmatpush1.bf16.msra.mxu0 0
    %2905 = vmatprep.subr.bf16.mxu0 0
    %2906 = vmatpush1.bf16.msra.mxu0 0
    %2907 = vmatprep.subr.bf16.mxu0 0
    %2908 = vmatpush1.bf16.msra.mxu0 0
    %2909 = vmatprep.subr.bf16.mxu0 0
    %2910 = vmatpush1.bf16.msra.mxu0 %v2894
    %2911 = vmatprep.subr.bf16.mxu0 0
    %2912 = vmatpush2.bf16.msra.mxu0 0
    %2913 = vmatprep.subr.bf16.mxu0 0
    %2914 = vmatpush2.bf16.msra.mxu0 0
    %2915 = vmatprep.subr.bf16.mxu0 0
    %2916 = vmatpush2.bf16.msra.mxu0 0
    %2917 = vmatprep.subr.bf16.mxu0 0
    %2918 = vmatpush2.bf16.msra.mxu0 0
    %2919 = vmatprep.subr.bf16.mxu0 0
    %2920 = vmatpush2.bf16.msra.mxu0 0
    %2921 = vmatprep.subr.bf16.mxu0 0
    %2922 = vmatpush2.bf16.msra.mxu0 0
    %2923 = vmatprep.subr.bf16.mxu0 0
    %2924 = vmatpush2.bf16.msra.mxu0 0
    %2925 = vmatprep.subr.bf16.mxu0 0
    %2926 = vmatpush2.bf16.msra.mxu0 0
    %2927 = vmatprep.mubr.bf16.mxu0 0
    %2928 = vmatmul.mubr.bf16.gmra.mxu0 %v268
    %v2929 = vpop.f32.mrf.mxu0
    %v2930 = vadd.f32 %v505, %v2929
    %v2931 = vpop.f32.mrf.mxu0
    %v2932 = vpop.f32.mrf.mxu0
    %v2933 = vadd.f32 %v505, %v2932
    %v2934 = vpop.f32.mrf.mxu0
    %2935 = vdwg.mxu0
    %v2936 = vmax.f32 %v2930, 0.0
    %v2937 = vmax.f32 %v2933, 0.0
    %v2938 = vand.u32 2147483647, %v2930
    %v2939 = vand.u32 2147483647, %v2933
    %v2940 = vsub.f32 0.0, %v2938
    %v2941 = vsub.f32 0.0, %v2939
    %v2942 = vmul.f32 %v2940, 1.442695
    %v2943 = vpow.pop %v2942
    %v2944 = vmul.f32 %v2941, 1.442695
    %v2945 = vpow.pop %v2944
    %v2946 = vadd.f32 %v2943, 1.0
    %v2947 = vlog2.pop %v2946
    %v2948 = vmul.f32 %v2947, 0.6931472
    %v2949 = vmul.f32 -0.5, %v2943
    %v2950 = vadd.f32 %v2949, 1.0
    %v2951 = vmul.f32 %v2950, %v2943
    %v2952 = vand.u32 2147483647, %v2943
    %vm2953 = vcmp.lt.f32.partialorder %v2952, 0.0004427343
    %v2954 = vsel %vm2953, %v2951, %v2948
    %v2955 = vadd.f32 %v2945, 1.0
    %v2956 = vlog2.pop %v2955
    %v2957 = vmul.f32 %v2956, 0.6931472
    %v2958 = vmul.f32 -0.5, %v2945
    %v2959 = vadd.f32 %v2958, 1.0
    %v2960 = vmul.f32 %v2959, %v2945
    %v2961 = vand.u32 2147483647, %v2945
    %vm2962 = vcmp.lt.f32.partialorder %v2961, 0.0004427343
    %v2963 = vsel %vm2962, %v2960, %v2957
    %v2964 = vadd.f32 %v2936, %v2954
    %v2965 = vadd.f32 %v2937, %v2963
    %v2966 = vpack.c.bf16 %v2965, %v2964
    %2967 = vmatprep.subr.bf16.mxu0 0
    %2968 = vmatpush1.bf16.msra.mxu0 %v716
    %2969 = vmatprep.subr.bf16.mxu0 0
    %2970 = vmatpush1.bf16.msra.mxu0 %v715
    %2971 = vmatprep.subr.bf16.mxu0 0
    %2972 = vmatpush1.bf16.msra.mxu0 %v714
    %2973 = vmatprep.subr.bf16.mxu0 0
    %2974 = vmatpush1.bf16.msra.mxu0 %v713
    %2975 = vmatprep.subr.bf16.mxu0 0
    %2976 = vmatpush1.bf16.msra.mxu0 %v712
    %2977 = vmatprep.subr.bf16.mxu0 0
    %2978 = vmatpush1.bf16.msra.mxu0 %v711
    %2979 = vmatprep.subr.bf16.mxu0 0
    %2980 = vmatpush1.bf16.msra.mxu0 %v710
    %2981 = vmatprep.subr.bf16.mxu0 0
    %2982 = vmatpush1.bf16.msra.mxu0 %v709
    %2983 = vmatprep.subr.bf16.mxu0 0
    %2984 = vmatpush2.bf16.msra.mxu0 0
    %2985 = vmatprep.subr.bf16.mxu0 0
    %2986 = vmatpush2.bf16.msra.mxu0 0
    %2987 = vmatprep.subr.bf16.mxu0 0
    %2988 = vmatpush2.bf16.msra.mxu0 0
    %2989 = vmatprep.subr.bf16.mxu0 0
    %2990 = vmatpush2.bf16.msra.mxu0 0
    %2991 = vmatprep.subr.bf16.mxu0 0
    %2992 = vmatpush2.bf16.msra.mxu0 0
    %2993 = vmatprep.subr.bf16.mxu0 0
    %2994 = vmatpush2.bf16.msra.mxu0 0
    %2995 = vmatprep.subr.bf16.mxu0 0
    %2996 = vmatpush2.bf16.msra.mxu0 0
    %2997 = vmatprep.subr.bf16.mxu0 0
    %2998 = vmatpush2.bf16.msra.mxu0 0
    %2999 = vmatprep.mubr.bf16.mxu0 0
    %3000 = vmatmul.mubr.bf16.gmra.mxu0 %v2966
    %v3001 = vpop.f32.mrf.mxu0
    %v3002 = vadd.f32 0.0, %v3001
    %v3003 = vpop.f32.mrf.mxu0
    %v3004 = vpop.f32.mrf.mxu0
    %v3005 = vadd.f32 0.0, %v3004
    %v3006 = vpop.f32.mrf.mxu0
    %3007 = vdwg.mxu0
    %v3008 = vpack.c.bf16 %v3005, %v3002
    %3009 = vmatprep.subr.bf16.mxu0 0
    %3010 = vmatpush1.bf16.msra.mxu0 0
    %3011 = vmatprep.subr.bf16.mxu0 0
    %3012 = vmatpush1.bf16.msra.mxu0 0
    %3013 = vmatprep.subr.bf16.mxu0 0
    %3014 = vmatpush1.bf16.msra.mxu0 0
    %3015 = vmatprep.subr.bf16.mxu0 0
    %3016 = vmatpush1.bf16.msra.mxu0 0
    %3017 = vmatprep.subr.bf16.mxu0 0
    %3018 = vmatpush1.bf16.msra.mxu0 0
    %3019 = vmatprep.subr.bf16.mxu0 0
    %3020 = vmatpush1.bf16.msra.mxu0 0
    %3021 = vmatprep.subr.bf16.mxu0 0
    %3022 = vmatpush1.bf16.msra.mxu0 0
    %3023 = vmatprep.subr.bf16.mxu0 0
    %3024 = vmatpush1.bf16.msra.mxu0 %v3008
    %3025 = vmatprep.subr.bf16.mxu0 0
    %3026 = vmatpush2.bf16.msra.mxu0 0
    %3027 = vmatprep.subr.bf16.mxu0 0
    %3028 = vmatpush2.bf16.msra.mxu0 0
    %3029 = vmatprep.subr.bf16.mxu0 0
    %3030 = vmatpush2.bf16.msra.mxu0 0
    %3031 = vmatprep.subr.bf16.mxu0 0
    %3032 = vmatpush2.bf16.msra.mxu0 0
    %3033 = vmatprep.subr.bf16.mxu0 0
    %3034 = vmatpush2.bf16.msra.mxu0 0
    %3035 = vmatprep.subr.bf16.mxu0 0
    %3036 = vmatpush2.bf16.msra.mxu0 0
    %3037 = vmatprep.subr.bf16.mxu0 0
    %3038 = vmatpush2.bf16.msra.mxu0 0
    %3039 = vmatprep.subr.bf16.mxu0 0
    %3040 = vmatpush2.bf16.msra.mxu0 0
    %3041 = vmatprep.mubr.bf16.mxu0 0
    %3042 = vmatmul.mubr.bf16.gmra.mxu0 %v268
    %v3043 = vpop.f32.mrf.mxu0
    %v3044 = vadd.f32 %v512, %v3043
    %v3045 = vpop.f32.mrf.mxu0
    %v3046 = vpop.f32.mrf.mxu0
    %v3047 = vadd.f32 %v512, %v3046
    %v3048 = vpop.f32.mrf.mxu0
    %3049 = vdwg.mxu0
    %v3050 = vmul.f32 %v2640, 2.0
    %v3051 = vmul.f32 %v2643, 2.0
    %v3052 = vadd.f32 %v2438, %v3050
    %v3053 = vadd.f32 %v2441, %v3051
    %v3054 = vmul.f32 %v2842, 2.0
    %v3055 = vmul.f32 %v2845, 2.0
    %v3056 = vadd.f32 %v3052, %v3054
    %v3057 = vadd.f32 %v3053, %v3055
    %v3058 = vadd.f32 %v3056, %v3044
    %v3059 = vadd.f32 %v3057, %v3047
    %v3060 = vmul.f32 %v3058, 0.041666668
    %v3061 = vmul.f32 %v3059, 0.041666668
    %v3062 = vadd.f32 %v2244, %v3060
    %v3063 = vadd.f32 %v2245, %v3061
    %v3064 = vpack.c.bf16 %v3063, %v3062
    %3065 = vmatprep.subr.bf16.mxu0 0
    %3066 = vmatpush1.bf16.msra.mxu0 %v554
    %3067 = vmatprep.subr.bf16.mxu0 0
    %3068 = vmatpush1.bf16.msra.mxu0 %v553
    %3069 = vmatprep.subr.bf16.mxu0 0
    %3070 = vmatpush1.bf16.msra.mxu0 %v552
    %3071 = vmatprep.subr.bf16.mxu0 0
    %3072 = vmatpush1.bf16.msra.mxu0 %v551
    %3073 = vmatprep.subr.bf16.mxu0 0
    %3074 = vmatpush1.bf16.msra.mxu0 %v550
    %3075 = vmatprep.subr.bf16.mxu0 0
    %3076 = vmatpush1.bf16.msra.mxu0 %v549
    %3077 = vmatprep.subr.bf16.mxu0 0
    %3078 = vmatpush1.bf16.msra.mxu0 %v548
    %3079 = vmatprep.subr.bf16.mxu0 0
    %3080 = vmatpush1.bf16.msra.mxu0 %v547
    %3081 = vmatprep.subr.bf16.mxu0 0
    %3082 = vmatpush2.bf16.msra.mxu0 0
    %3083 = vmatprep.subr.bf16.mxu0 0
    %3084 = vmatpush2.bf16.msra.mxu0 0
    %3085 = vmatprep.subr.bf16.mxu0 0
    %3086 = vmatpush2.bf16.msra.mxu0 0
    %3087 = vmatprep.subr.bf16.mxu0 0
    %3088 = vmatpush2.bf16.msra.mxu0 0
    %3089 = vmatprep.subr.bf16.mxu0 0
    %3090 = vmatpush2.bf16.msra.mxu0 0
    %3091 = vmatprep.subr.bf16.mxu0 0
    %3092 = vmatpush2.bf16.msra.mxu0 0
    %3093 = vmatprep.subr.bf16.mxu0 0
    %3094 = vmatpush2.bf16.msra.mxu0 0
    %3095 = vmatprep.subr.bf16.mxu0 0
    %3096 = vmatpush2.bf16.msra.mxu0 0
    %3097 = vmatprep.mubr.bf16.mxu0 0
    %3098 = vmatmul.mubr.bf16.gmra.mxu0 %v3064
    %v3099 = vpop.f32.mrf.mxu0
    %v3100 = vadd.f32 0.0, %v3099
    %v3101 = vpop.f32.mrf.mxu0
    %v3102 = vpop.f32.mrf.mxu0
    %v3103 = vadd.f32 0.0, %v3102
    %v3104 = vpop.f32.mrf.mxu0
    %3105 = vdwg.mxu0
    %v3106 = vpack.c.bf16 %v3103, %v3100
    %3107 = vmatprep.subr.bf16.mxu0 0
    %3108 = vmatpush1.bf16.msra.mxu0 0
    %3109 = vmatprep.subr.bf16.mxu0 0
    %3110 = vmatpush1.bf16.msra.mxu0 0
    %3111 = vmatprep.subr.bf16.mxu0 0
    %3112 = vmatpush1.bf16.msra.mxu0 0
    %3113 = vmatprep.subr.bf16.mxu0 0
    %3114 = vmatpush1.bf16.msra.mxu0 0
    %3115 = vmatprep.subr.bf16.mxu0 0
    %3116 = vmatpush1.bf16.msra.mxu0 0
    %3117 = vmatprep.subr.bf16.mxu0 0
    %3118 = vmatpush1.bf16.msra.mxu0 0
    %3119 = vmatprep.subr.bf16.mxu0 0
    %3120 = vmatpush1.bf16.msra.mxu0 0
    %3121 = vmatprep.subr.bf16.mxu0 0
    %3122 = vmatpush1.bf16.msra.mxu0 %v3106
    %3123 = vmatprep.subr.bf16.mxu0 0
    %3124 = vmatpush2.bf16.msra.mxu0 0
    %3125 = vmatprep.subr.bf16.mxu0 0
    %3126 = vmatpush2.bf16.msra.mxu0 0
    %3127 = vmatprep.subr.bf16.mxu0 0
    %3128 = vmatpush2.bf16.msra.mxu0 0
    %3129 = vmatprep.subr.bf16.mxu0 0
    %3130 = vmatpush2.bf16.msra.mxu0 0
    %3131 = vmatprep.subr.bf16.mxu0 0
    %3132 = vmatpush2.bf16.msra.mxu0 0
    %3133 = vmatprep.subr.bf16.mxu0 0
    %3134 = vmatpush2.bf16.msra.mxu0 0
    %3135 = vmatprep.subr.bf16.mxu0 0
    %3136 = vmatpush2.bf16.msra.mxu0 0
    %3137 = vmatprep.subr.bf16.mxu0 0
    %3138 = vmatpush2.bf16.msra.mxu0 0
    %3139 = vmatprep.mubr.bf16.mxu0 0
    %3140 = vmatmul.mubr.bf16.gmra.mxu0 %v268
    %v3141 = vpop.f32.mrf.mxu0
    %v3142 = vadd.f32 %v505, %v3141
    %v3143 = vpop.f32.mrf.mxu0
    %v3144 = vpop.f32.mrf.mxu0
    %v3145 = vadd.f32 %v505, %v3144
    %v3146 = vpop.f32.mrf.mxu0
    %3147 = vdwg.mxu0
    %v3148 = vmax.f32 %v3142, 0.0
    %v3149 = vmax.f32 %v3145, 0.0
    %v3150 = vand.u32 2147483647, %v3142
    %v3151 = vand.u32 2147483647, %v3145
    %v3152 = vsub.f32 0.0, %v3150
    %v3153 = vsub.f32 0.0, %v3151
    %v3154 = vmul.f32 %v3152, 1.442695
    %v3155 = vpow.pop %v3154
    %v3156 = vmul.f32 %v3153, 1.442695
    %v3157 = vpow.pop %v3156
    %v3158 = vadd.f32 %v3155, 1.0
    %v3159 = vlog2.pop %v3158
    %v3160 = vmul.f32 %v3159, 0.6931472
    %v3161 = vmul.f32 -0.5, %v3155
    %v3162 = vadd.f32 %v3161, 1.0
    %v3163 = vmul.f32 %v3162, %v3155
    %v3164 = vand.u32 2147483647, %v3155
    %vm3165 = vcmp.lt.f32.partialorder %v3164, 0.0004427343
    %v3166 = vsel %vm3165, %v3163, %v3160
    %v3167 = vadd.f32 %v3157, 1.0
    %v3168 = vlog2.pop %v3167
    %v3169 = vmul.f32 %v3168, 0.6931472
    %v3170 = vmul.f32 -0.5, %v3157
    %v3171 = vadd.f32 %v3170, 1.0
    %v3172 = vmul.f32 %v3171, %v3157
    %v3173 = vand.u32 2147483647, %v3157
    %vm3174 = vcmp.lt.f32.partialorder %v3173, 0.0004427343
    %v3175 = vsel %vm3174, %v3172, %v3169
    %v3176 = vadd.f32 %v3148, %v3166
    %v3177 = vadd.f32 %v3149, %v3175
    %v3178 = vpack.c.bf16 %v3177, %v3176
    %3179 = vmatprep.subr.bf16.mxu0 0
    %3180 = vmatpush1.bf16.msra.mxu0 %v716
    %3181 = vmatprep.subr.bf16.mxu0 0
    %3182 = vmatpush1.bf16.msra.mxu0 %v715
    %3183 = vmatprep.subr.bf16.mxu0 0
    %3184 = vmatpush1.bf16.msra.mxu0 %v714
    %3185 = vmatprep.subr.bf16.mxu0 0
    %3186 = vmatpush1.bf16.msra.mxu0 %v713
    %3187 = vmatprep.subr.bf16.mxu0 0
    %3188 = vmatpush1.bf16.msra.mxu0 %v712
    %3189 = vmatprep.subr.bf16.mxu0 0
    %3190 = vmatpush1.bf16.msra.mxu0 %v711
    %3191 = vmatprep.subr.bf16.mxu0 0
    %3192 = vmatpush1.bf16.msra.mxu0 %v710
    %3193 = vmatprep.subr.bf16.mxu0 0
    %3194 = vmatpush1.bf16.msra.mxu0 %v709
    %3195 = vmatprep.subr.bf16.mxu0 0
    %3196 = vmatpush2.bf16.msra.mxu0 0
    %3197 = vmatprep.subr.bf16.mxu0 0
    %3198 = vmatpush2.bf16.msra.mxu0 0
    %3199 = vmatprep.subr.bf16.mxu0 0
    %3200 = vmatpush2.bf16.msra.mxu0 0
    %3201 = vmatprep.subr.bf16.mxu0 0
    %3202 = vmatpush2.bf16.msra.mxu0 0
    %3203 = vmatprep.subr.bf16.mxu0 0
    %3204 = vmatpush2.bf16.msra.mxu0 0
    %3205 = vmatprep.subr.bf16.mxu0 0
    %3206 = vmatpush2.bf16.msra.mxu0 0
    %3207 = vmatprep.subr.bf16.mxu0 0
    %3208 = vmatpush2.bf16.msra.mxu0 0
    %3209 = vmatprep.subr.bf16.mxu0 0
    %3210 = vmatpush2.bf16.msra.mxu0 0
    %3211 = vmatprep.mubr.bf16.mxu0 0
    %3212 = vmatmul.mubr.bf16.gmra.mxu0 %v3178
    %v3213 = vpop.f32.mrf.mxu0
    %v3214 = vadd.f32 0.0, %v3213
    %v3215 = vpop.f32.mrf.mxu0
    %v3216 = vpop.f32.mrf.mxu0
    %v3217 = vadd.f32 0.0, %v3216
    %v3218 = vpop.f32.mrf.mxu0
    %3219 = vdwg.mxu0
    %v3220 = vpack.c.bf16 %v3217, %v3214
    %3221 = vmatprep.subr.bf16.mxu0 0
    %3222 = vmatpush1.bf16.msra.mxu0 0
    %3223 = vmatprep.subr.bf16.mxu0 0
    %3224 = vmatpush1.bf16.msra.mxu0 0
    %3225 = vmatprep.subr.bf16.mxu0 0
    %3226 = vmatpush1.bf16.msra.mxu0 0
    %3227 = vmatprep.subr.bf16.mxu0 0
    %3228 = vmatpush1.bf16.msra.mxu0 0
    %3229 = vmatprep.subr.bf16.mxu0 0
    %3230 = vmatpush1.bf16.msra.mxu0 0
    %3231 = vmatprep.subr.bf16.mxu0 0
    %3232 = vmatpush1.bf16.msra.mxu0 0
    %3233 = vmatprep.subr.bf16.mxu0 0
    %3234 = vmatpush1.bf16.msra.mxu0 0
    %3235 = vmatprep.subr.bf16.mxu0 0
    %3236 = vmatpush1.bf16.msra.mxu0 %v3220
    %3237 = vmatprep.subr.bf16.mxu0 0
    %3238 = vmatpush2.bf16.msra.mxu0 0
    %3239 = vmatprep.subr.bf16.mxu0 0
    %3240 = vmatpush2.bf16.msra.mxu0 0
    %3241 = vmatprep.subr.bf16.mxu0 0
    %3242 = vmatpush2.bf16.msra.mxu0 0
    %3243 = vmatprep.subr.bf16.mxu0 0
    %3244 = vmatpush2.bf16.msra.mxu0 0
    %3245 = vmatprep.subr.bf16.mxu0 0
    %3246 = vmatpush2.bf16.msra.mxu0 0
    %3247 = vmatprep.subr.bf16.mxu0 0
    %3248 = vmatpush2.bf16.msra.mxu0 0
    %3249 = vmatprep.subr.bf16.mxu0 0
    %3250 = vmatpush2.bf16.msra.mxu0 0
    %3251 = vmatprep.subr.bf16.mxu0 0
    %3252 = vmatpush2.bf16.msra.mxu0 0
    %3253 = vmatprep.mubr.bf16.mxu0 0
    %3254 = vmatmul.mubr.bf16.gmra.mxu0 %v268
    %v3255 = vpop.f32.mrf.mxu0
    %v3256 = vadd.f32 %v512, %v3255
    %v3257 = vpop.f32.mrf.mxu0
    %v3258 = vpop.f32.mrf.mxu0
    %v3259 = vadd.f32 %v512, %v3258
    %v3260 = vpop.f32.mrf.mxu0
    %3261 = vdwg.mxu0
    %v3262 = vmul.f32 %v3256, 0.125
    %v3263 = vmul.f32 %v3259, 0.125
    %v3264 = vadd.f32 %v3062, %v3262
    %v3265 = vadd.f32 %v3063, %v3263
    %v3266 = vpack.c.bf16 %v3265, %v3264
    %3267 = vmatprep.subr.bf16.mxu0 0
    %3268 = vmatpush1.bf16.msra.mxu0 %v554
    %3269 = vmatprep.subr.bf16.mxu0 0
    %3270 = vmatpush1.bf16.msra.mxu0 %v553
    %3271 = vmatprep.subr.bf16.mxu0 0
    %3272 = vmatpush1.bf16.msra.mxu0 %v552
    %3273 = vmatprep.subr.bf16.mxu0 0
    %3274 = vmatpush1.bf16.msra.mxu0 %v551
    %3275 = vmatprep.subr.bf16.mxu0 0
    %3276 = vmatpush1.bf16.msra.mxu0 %v550
    %3277 = vmatprep.subr.bf16.mxu0 0
    %3278 = vmatpush1.bf16.msra.mxu0 %v549
    %3279 = vmatprep.subr.bf16.mxu0 0
    %3280 = vmatpush1.bf16.msra.mxu0 %v548
    %3281 = vmatprep.subr.bf16.mxu0 0
    %3282 = vmatpush1.bf16.msra.mxu0 %v547
    %3283 = vmatprep.subr.bf16.mxu0 0
    %3284 = vmatpush2.bf16.msra.mxu0 0
    %3285 = vmatprep.subr.bf16.mxu0 0
    %3286 = vmatpush2.bf16.msra.mxu0 0
    %3287 = vmatprep.subr.bf16.mxu0 0
    %3288 = vmatpush2.bf16.msra.mxu0 0
    %3289 = vmatprep.subr.bf16.mxu0 0
    %3290 = vmatpush2.bf16.msra.mxu0 0
    %3291 = vmatprep.subr.bf16.mxu0 0
    %3292 = vmatpush2.bf16.msra.mxu0 0
    %3293 = vmatprep.subr.bf16.mxu0 0
    %3294 = vmatpush2.bf16.msra.mxu0 0
    %3295 = vmatprep.subr.bf16.mxu0 0
    %3296 = vmatpush2.bf16.msra.mxu0 0
    %3297 = vmatprep.subr.bf16.mxu0 0
    %3298 = vmatpush2.bf16.msra.mxu0 0
    %3299 = vmatprep.mubr.bf16.mxu0 0
    %3300 = vmatmul.mubr.bf16.gmra.mxu0 %v3266
    %v3301 = vpop.f32.mrf.mxu0
    %v3302 = vadd.f32 0.0, %v3301
    %v3303 = vpop.f32.mrf.mxu0
    %v3304 = vpop.f32.mrf.mxu0
    %v3305 = vadd.f32 0.0, %v3304
    %v3306 = vpop.f32.mrf.mxu0
    %3307 = vdwg.mxu0
    %v3308 = vpack.c.bf16 %v3305, %v3302
    %3309 = vmatprep.subr.bf16.mxu0 0
    %3310 = vmatpush1.bf16.msra.mxu0 0
    %3311 = vmatprep.subr.bf16.mxu0 0
    %3312 = vmatpush1.bf16.msra.mxu0 0
    %3313 = vmatprep.subr.bf16.mxu0 0
    %3314 = vmatpush1.bf16.msra.mxu0 0
    %3315 = vmatprep.subr.bf16.mxu0 0
    %3316 = vmatpush1.bf16.msra.mxu0 0
    %3317 = vmatprep.subr.bf16.mxu0 0
    %3318 = vmatpush1.bf16.msra.mxu0 0
    %3319 = vmatprep.subr.bf16.mxu0 0
    %3320 = vmatpush1.bf16.msra.mxu0 0
    %3321 = vmatprep.subr.bf16.mxu0 0
    %3322 = vmatpush1.bf16.msra.mxu0 0
    %3323 = vmatprep.subr.bf16.mxu0 0
    %3324 = vmatpush1.bf16.msra.mxu0 %v3308
    %3325 = vmatprep.subr.bf16.mxu0 0
    %3326 = vmatpush2.bf16.msra.mxu0 0
    %3327 = vmatprep.subr.bf16.mxu0 0
    %3328 = vmatpush2.bf16.msra.mxu0 0
    %3329 = vmatprep.subr.bf16.mxu0 0
    %3330 = vmatpush2.bf16.msra.mxu0 0
    %3331 = vmatprep.subr.bf16.mxu0 0
    %3332 = vmatpush2.bf16.msra.mxu0 0
    %3333 = vmatprep.subr.bf16.mxu0 0
    %3334 = vmatpush2.bf16.msra.mxu0 0
    %3335 = vmatprep.subr.bf16.mxu0 0
    %3336 = vmatpush2.bf16.msra.mxu0 0
    %3337 = vmatprep.subr.bf16.mxu0 0
    %3338 = vmatpush2.bf16.msra.mxu0 0
    %3339 = vmatprep.subr.bf16.mxu0 0
    %3340 = vmatpush2.bf16.msra.mxu0 0
    %3341 = vmatprep.mubr.bf16.mxu0 0
    %3342 = vmatmul.mubr.bf16.gmra.mxu0 %v268
    %v3343 = vpop.f32.mrf.mxu0
    %v3344 = vadd.f32 %v505, %v3343
    %v3345 = vpop.f32.mrf.mxu0
    %v3346 = vpop.f32.mrf.mxu0
    %v3347 = vadd.f32 %v505, %v3346
    %v3348 = vpop.f32.mrf.mxu0
    %3349 = vdwg.mxu0
    %v3350 = vmax.f32 %v3344, 0.0
    %v3351 = vmax.f32 %v3347, 0.0
    %v3352 = vand.u32 2147483647, %v3344
    %v3353 = vand.u32 2147483647, %v3347
    %v3354 = vsub.f32 0.0, %v3352
    %v3355 = vsub.f32 0.0, %v3353
    %v3356 = vmul.f32 %v3354, 1.442695
    %v3357 = vpow.pop %v3356
    %v3358 = vmul.f32 %v3355, 1.442695
    %v3359 = vpow.pop %v3358
    %v3360 = vadd.f32 %v3357, 1.0
    %v3361 = vlog2.pop %v3360
    %v3362 = vmul.f32 %v3361, 0.6931472
    %v3363 = vmul.f32 -0.5, %v3357
    %v3364 = vadd.f32 %v3363, 1.0
    %v3365 = vmul.f32 %v3364, %v3357
    %v3366 = vand.u32 2147483647, %v3357
    %vm3367 = vcmp.lt.f32.partialorder %v3366, 0.0004427343
    %v3368 = vsel %vm3367, %v3365, %v3362
    %v3369 = vadd.f32 %v3359, 1.0
    %v3370 = vlog2.pop %v3369
    %v3371 = vmul.f32 %v3370, 0.6931472
    %v3372 = vmul.f32 -0.5, %v3359
    %v3373 = vadd.f32 %v3372, 1.0
    %v3374 = vmul.f32 %v3373, %v3359
    %v3375 = vand.u32 2147483647, %v3359
    %vm3376 = vcmp.lt.f32.partialorder %v3375, 0.0004427343
    %v3377 = vsel %vm3376, %v3374, %v3371
    %v3378 = vadd.f32 %v3350, %v3368
    %v3379 = vadd.f32 %v3351, %v3377
    %v3380 = vpack.c.bf16 %v3379, %v3378
    %3381 = vmatprep.subr.bf16.mxu0 0
    %3382 = vmatpush1.bf16.msra.mxu0 %v716
    %3383 = vmatprep.subr.bf16.mxu0 0
    %3384 = vmatpush1.bf16.msra.mxu0 %v715
    %3385 = vmatprep.subr.bf16.mxu0 0
    %3386 = vmatpush1.bf16.msra.mxu0 %v714
    %3387 = vmatprep.subr.bf16.mxu0 0
    %3388 = vmatpush1.bf16.msra.mxu0 %v713
    %3389 = vmatprep.subr.bf16.mxu0 0
    %3390 = vmatpush1.bf16.msra.mxu0 %v712
    %3391 = vmatprep.subr.bf16.mxu0 0
    %3392 = vmatpush1.bf16.msra.mxu0 %v711
    %3393 = vmatprep.subr.bf16.mxu0 0
    %3394 = vmatpush1.bf16.msra.mxu0 %v710
    %3395 = vmatprep.subr.bf16.mxu0 0
    %3396 = vmatpush1.bf16.msra.mxu0 %v709
    %3397 = vmatprep.subr.bf16.mxu0 0
    %3398 = vmatpush2.bf16.msra.mxu0 0
    %3399 = vmatprep.subr.bf16.mxu0 0
    %3400 = vmatpush2.bf16.msra.mxu0 0
    %3401 = vmatprep.subr.bf16.mxu0 0
    %3402 = vmatpush2.bf16.msra.mxu0 0
    %3403 = vmatprep.subr.bf16.mxu0 0
    %3404 = vmatpush2.bf16.msra.mxu0 0
    %3405 = vmatprep.subr.bf16.mxu0 0
    %3406 = vmatpush2.bf16.msra.mxu0 0
    %3407 = vmatprep.subr.bf16.mxu0 0
    %3408 = vmatpush2.bf16.msra.mxu0 0
    %3409 = vmatprep.subr.bf16.mxu0 0
    %3410 = vmatpush2.bf16.msra.mxu0 0
    %3411 = vmatprep.subr.bf16.mxu0 0
    %3412 = vmatpush2.bf16.msra.mxu0 0
    %3413 = vmatprep.mubr.bf16.mxu0 0
    %3414 = vmatmul.mubr.bf16.gmra.mxu0 %v3380
    %v3415 = vpop.f32.mrf.mxu0
    %v3416 = vadd.f32 0.0, %v3415
    %v3417 = vpop.f32.mrf.mxu0
    %v3418 = vpop.f32.mrf.mxu0
    %v3419 = vadd.f32 0.0, %v3418
    %v3420 = vpop.f32.mrf.mxu0
    %3421 = vdwg.mxu0
    %v3422 = vpack.c.bf16 %v3419, %v3416
    %3423 = vmatprep.subr.bf16.mxu0 0
    %3424 = vmatpush1.bf16.msra.mxu0 0
    %3425 = vmatprep.subr.bf16.mxu0 0
    %3426 = vmatpush1.bf16.msra.mxu0 0
    %3427 = vmatprep.subr.bf16.mxu0 0
    %3428 = vmatpush1.bf16.msra.mxu0 0
    %3429 = vmatprep.subr.bf16.mxu0 0
    %3430 = vmatpush1.bf16.msra.mxu0 0
    %3431 = vmatprep.subr.bf16.mxu0 0
    %3432 = vmatpush1.bf16.msra.mxu0 0
    %3433 = vmatprep.subr.bf16.mxu0 0
    %3434 = vmatpush1.bf16.msra.mxu0 0
    %3435 = vmatprep.subr.bf16.mxu0 0
    %3436 = vmatpush1.bf16.msra.mxu0 0
    %3437 = vmatprep.subr.bf16.mxu0 0
    %3438 = vmatpush1.bf16.msra.mxu0 %v3422
    %3439 = vmatprep.subr.bf16.mxu0 0
    %3440 = vmatpush2.bf16.msra.mxu0 0
    %3441 = vmatprep.subr.bf16.mxu0 0
    %3442 = vmatpush2.bf16.msra.mxu0 0
    %3443 = vmatprep.subr.bf16.mxu0 0
    %3444 = vmatpush2.bf16.msra.mxu0 0
    %3445 = vmatprep.subr.bf16.mxu0 0
    %3446 = vmatpush2.bf16.msra.mxu0 0
    %3447 = vmatprep.subr.bf16.mxu0 0
    %3448 = vmatpush2.bf16.msra.mxu0 0
    %3449 = vmatprep.subr.bf16.mxu0 0
    %3450 = vmatpush2.bf16.msra.mxu0 0
    %3451 = vmatprep.subr.bf16.mxu0 0
    %3452 = vmatpush2.bf16.msra.mxu0 0
    %3453 = vmatprep.subr.bf16.mxu0 0
    %3454 = vmatpush2.bf16.msra.mxu0 0
    %3455 = vmatprep.mubr.bf16.mxu0 0
    %3456 = vmatmul.mubr.bf16.gmra.mxu0 %v268
    %v3457 = vpop.f32.mrf.mxu0
    %v3458 = vadd.f32 %v512, %v3457
    %v3459 = vpop.f32.mrf.mxu0
    %v3460 = vpop.f32.mrf.mxu0
    %v3461 = vadd.f32 %v512, %v3460
    %v3462 = vpop.f32.mrf.mxu0
    %3463 = vdwg.mxu0
    %v3464 = vmul.f32 %v3458, 0.125
    %v3465 = vmul.f32 %v3461, 0.125
    %v3466 = vadd.f32 %v3062, %v3464
    %v3467 = vadd.f32 %v3063, %v3465
    %v3468 = vpack.c.bf16 %v3467, %v3466
    %3469 = vmatprep.subr.bf16.mxu0 0
    %3470 = vmatpush1.bf16.msra.mxu0 %v554
    %3471 = vmatprep.subr.bf16.mxu0 0
    %3472 = vmatpush1.bf16.msra.mxu0 %v553
    %3473 = vmatprep.subr.bf16.mxu0 0
    %3474 = vmatpush1.bf16.msra.mxu0 %v552
    %3475 = vmatprep.subr.bf16.mxu0 0
    %3476 = vmatpush1.bf16.msra.mxu0 %v551
    %3477 = vmatprep.subr.bf16.mxu0 0
    %3478 = vmatpush1.bf16.msra.mxu0 %v550
    %3479 = vmatprep.subr.bf16.mxu0 0
    %3480 = vmatpush1.bf16.msra.mxu0 %v549
    %3481 = vmatprep.subr.bf16.mxu0 0
    %3482 = vmatpush1.bf16.msra.mxu0 %v548
    %3483 = vmatprep.subr.bf16.mxu0 0
    %3484 = vmatpush1.bf16.msra.mxu0 %v547
    %3485 = vmatprep.subr.bf16.mxu0 0
    %3486 = vmatpush2.bf16.msra.mxu0 0
    %3487 = vmatprep.subr.bf16.mxu0 0
    %3488 = vmatpush2.bf16.msra.mxu0 0
    %3489 = vmatprep.subr.bf16.mxu0 0
    %3490 = vmatpush2.bf16.msra.mxu0 0
    %3491 = vmatprep.subr.bf16.mxu0 0
    %3492 = vmatpush2.bf16.msra.mxu0 0
    %3493 = vmatprep.subr.bf16.mxu0 0
    %3494 = vmatpush2.bf16.msra.mxu0 0
    %3495 = vmatprep.subr.bf16.mxu0 0
    %3496 = vmatpush2.bf16.msra.mxu0 0
    %3497 = vmatprep.subr.bf16.mxu0 0
    %3498 = vmatpush2.bf16.msra.mxu0 0
    %3499 = vmatprep.subr.bf16.mxu0 0
    %3500 = vmatpush2.bf16.msra.mxu0 0
    %3501 = vmatprep.mubr.bf16.mxu0 0
    %3502 = vmatmul.mubr.bf16.gmra.mxu0 %v3468
    %v3503 = vpop.f32.mrf.mxu0
    %v3504 = vadd.f32 0.0, %v3503
    %v3505 = vpop.f32.mrf.mxu0
    %v3506 = vpop.f32.mrf.mxu0
    %v3507 = vadd.f32 0.0, %v3506
    %v3508 = vpop.f32.mrf.mxu0
    %3509 = vdwg.mxu0
    %v3510 = vpack.c.bf16 %v3507, %v3504
    %3511 = vmatprep.subr.bf16.mxu0 0
    %3512 = vmatpush1.bf16.msra.mxu0 0
    %3513 = vmatprep.subr.bf16.mxu0 0
    %3514 = vmatpush1.bf16.msra.mxu0 0
    %3515 = vmatprep.subr.bf16.mxu0 0
    %3516 = vmatpush1.bf16.msra.mxu0 0
    %3517 = vmatprep.subr.bf16.mxu0 0
    %3518 = vmatpush1.bf16.msra.mxu0 0
    %3519 = vmatprep.subr.bf16.mxu0 0
    %3520 = vmatpush1.bf16.msra.mxu0 0
    %3521 = vmatprep.subr.bf16.mxu0 0
    %3522 = vmatpush1.bf16.msra.mxu0 0
    %3523 = vmatprep.subr.bf16.mxu0 0
    %3524 = vmatpush1.bf16.msra.mxu0 0
    %3525 = vmatprep.subr.bf16.mxu0 0
    %3526 = vmatpush1.bf16.msra.mxu0 %v3510
    %3527 = vmatprep.subr.bf16.mxu0 0
    %3528 = vmatpush2.bf16.msra.mxu0 0
    %3529 = vmatprep.subr.bf16.mxu0 0
    %3530 = vmatpush2.bf16.msra.mxu0 0
    %3531 = vmatprep.subr.bf16.mxu0 0
    %3532 = vmatpush2.bf16.msra.mxu0 0
    %3533 = vmatprep.subr.bf16.mxu0 0
    %3534 = vmatpush2.bf16.msra.mxu0 0
    %3535 = vmatprep.subr.bf16.mxu0 0
    %3536 = vmatpush2.bf16.msra.mxu0 0
    %3537 = vmatprep.subr.bf16.mxu0 0
    %3538 = vmatpush2.bf16.msra.mxu0 0
    %3539 = vmatprep.subr.bf16.mxu0 0
    %3540 = vmatpush2.bf16.msra.mxu0 0
    %3541 = vmatprep.subr.bf16.mxu0 0
    %3542 = vmatpush2.bf16.msra.mxu0 0
    %3543 = vmatprep.mubr.bf16.mxu0 0
    %3544 = vmatmul.mubr.bf16.gmra.mxu0 %v268
    %v3545 = vpop.f32.mrf.mxu0
    %v3546 = vadd.f32 %v505, %v3545
    %v3547 = vpop.f32.mrf.mxu0
    %v3548 = vpop.f32.mrf.mxu0
    %v3549 = vadd.f32 %v505, %v3548
    %v3550 = vpop.f32.mrf.mxu0
    %3551 = vdwg.mxu0
    %v3552 = vmax.f32 %v3546, 0.0
    %v3553 = vmax.f32 %v3549, 0.0
    %v3554 = vand.u32 2147483647, %v3546
    %v3555 = vand.u32 2147483647, %v3549
    %v3556 = vsub.f32 0.0, %v3554
    %v3557 = vsub.f32 0.0, %v3555
    %v3558 = vmul.f32 %v3556, 1.442695
    %v3559 = vpow.pop %v3558
    %v3560 = vmul.f32 %v3557, 1.442695
    %v3561 = vpow.pop %v3560
    %v3562 = vadd.f32 %v3559, 1.0
    %v3563 = vlog2.pop %v3562
    %v3564 = vmul.f32 %v3563, 0.6931472
    %v3565 = vmul.f32 -0.5, %v3559
    %v3566 = vadd.f32 %v3565, 1.0
    %v3567 = vmul.f32 %v3566, %v3559
    %v3568 = vand.u32 2147483647, %v3559
    %vm3569 = vcmp.lt.f32.partialorder %v3568, 0.0004427343
    %v3570 = vsel %vm3569, %v3567, %v3564
    %v3571 = vadd.f32 %v3561, 1.0
    %v3572 = vlog2.pop %v3571
    %v3573 = vmul.f32 %v3572, 0.6931472
    %v3574 = vmul.f32 -0.5, %v3561
    %v3575 = vadd.f32 %v3574, 1.0
    %v3576 = vmul.f32 %v3575, %v3561
    %v3577 = vand.u32 2147483647, %v3561
    %vm3578 = vcmp.lt.f32.partialorder %v3577, 0.0004427343
    %v3579 = vsel %vm3578, %v3576, %v3573
    %v3580 = vadd.f32 %v3552, %v3570
    %v3581 = vadd.f32 %v3553, %v3579
    %v3582 = vpack.c.bf16 %v3581, %v3580
    %3583 = vmatprep.subr.bf16.mxu0 0
    %3584 = vmatpush1.bf16.msra.mxu0 %v716
    %3585 = vmatprep.subr.bf16.mxu0 0
    %3586 = vmatpush1.bf16.msra.mxu0 %v715
    %3587 = vmatprep.subr.bf16.mxu0 0
    %3588 = vmatpush1.bf16.msra.mxu0 %v714
    %3589 = vmatprep.subr.bf16.mxu0 0
    %3590 = vmatpush1.bf16.msra.mxu0 %v713
    %3591 = vmatprep.subr.bf16.mxu0 0
    %3592 = vmatpush1.bf16.msra.mxu0 %v712
    %3593 = vmatprep.subr.bf16.mxu0 0
    %3594 = vmatpush1.bf16.msra.mxu0 %v711
    %3595 = vmatprep.subr.bf16.mxu0 0
    %3596 = vmatpush1.bf16.msra.mxu0 %v710
    %3597 = vmatprep.subr.bf16.mxu0 0
    %3598 = vmatpush1.bf16.msra.mxu0 %v709
    %3599 = vmatprep.subr.bf16.mxu0 0
    %3600 = vmatpush2.bf16.msra.mxu0 0
    %3601 = vmatprep.subr.bf16.mxu0 0
    %3602 = vmatpush2.bf16.msra.mxu0 0
    %3603 = vmatprep.subr.bf16.mxu0 0
    %3604 = vmatpush2.bf16.msra.mxu0 0
    %3605 = vmatprep.subr.bf16.mxu0 0
    %3606 = vmatpush2.bf16.msra.mxu0 0
    %3607 = vmatprep.subr.bf16.mxu0 0
    %3608 = vmatpush2.bf16.msra.mxu0 0
    %3609 = vmatprep.subr.bf16.mxu0 0
    %3610 = vmatpush2.bf16.msra.mxu0 0
    %3611 = vmatprep.subr.bf16.mxu0 0
    %3612 = vmatpush2.bf16.msra.mxu0 0
    %3613 = vmatprep.subr.bf16.mxu0 0
    %3614 = vmatpush2.bf16.msra.mxu0 0
    %3615 = vmatprep.mubr.bf16.mxu0 0
    %3616 = vmatmul.mubr.bf16.gmra.mxu0 %v3582
    %v3617 = vpop.f32.mrf.mxu0
    %v3618 = vadd.f32 0.0, %v3617
    %v3619 = vpop.f32.mrf.mxu0
    %v3620 = vpop.f32.mrf.mxu0
    %v3621 = vadd.f32 0.0, %v3620
    %v3622 = vpop.f32.mrf.mxu0
    %3623 = vdwg.mxu0
    %v3624 = vpack.c.bf16 %v3621, %v3618
    %3625 = vmatprep.subr.bf16.mxu0 0
    %3626 = vmatpush1.bf16.msra.mxu0 0
    %3627 = vmatprep.subr.bf16.mxu0 0
    %3628 = vmatpush1.bf16.msra.mxu0 0
    %3629 = vmatprep.subr.bf16.mxu0 0
    %3630 = vmatpush1.bf16.msra.mxu0 0
    %3631 = vmatprep.subr.bf16.mxu0 0
    %3632 = vmatpush1.bf16.msra.mxu0 0
    %3633 = vmatprep.subr.bf16.mxu0 0
    %3634 = vmatpush1.bf16.msra.mxu0 0
    %3635 = vmatprep.subr.bf16.mxu0 0
    %3636 = vmatpush1.bf16.msra.mxu0 0
    %3637 = vmatprep.subr.bf16.mxu0 0
    %3638 = vmatpush1.bf16.msra.mxu0 0
    %3639 = vmatprep.subr.bf16.mxu0 0
    %3640 = vmatpush1.bf16.msra.mxu0 %v3624
    %3641 = vmatprep.subr.bf16.mxu0 0
    %3642 = vmatpush2.bf16.msra.mxu0 0
    %3643 = vmatprep.subr.bf16.mxu0 0
    %3644 = vmatpush2.bf16.msra.mxu0 0
    %3645 = vmatprep.subr.bf16.mxu0 0
    %3646 = vmatpush2.bf16.msra.mxu0 0
    %3647 = vmatprep.subr.bf16.mxu0 0
    %3648 = vmatpush2.bf16.msra.mxu0 0
    %3649 = vmatprep.subr.bf16.mxu0 0
    %3650 = vmatpush2.bf16.msra.mxu0 0
    %3651 = vmatprep.subr.bf16.mxu0 0
    %3652 = vmatpush2.bf16.msra.mxu0 0
    %3653 = vmatprep.subr.bf16.mxu0 0
    %3654 = vmatpush2.bf16.msra.mxu0 0
    %3655 = vmatprep.subr.bf16.mxu0 0
    %3656 = vmatpush2.bf16.msra.mxu0 0
    %3657 = vmatprep.mubr.bf16.mxu0 0
    %3658 = vmatmul.mubr.bf16.gmra.mxu0 %v268
    %v3659 = vpop.f32.mrf.mxu0
    %v3660 = vadd.f32 %v512, %v3659
    %v3661 = vpop.f32.mrf.mxu0
    %v3662 = vpop.f32.mrf.mxu0
    %v3663 = vadd.f32 %v512, %v3662
    %v3664 = vpop.f32.mrf.mxu0
    %3665 = vdwg.mxu0
    %v3666 = vmul.f32 %v3660, 0.25
    %v3667 = vmul.f32 %v3663, 0.25
    %v3668 = vadd.f32 %v3062, %v3666
    %v3669 = vadd.f32 %v3063, %v3667
    %v3670 = vpack.c.bf16 %v3669, %v3668
    %3671 = vmatprep.subr.bf16.mxu0 0
    %3672 = vmatpush1.bf16.msra.mxu0 %v554
    %3673 = vmatprep.subr.bf16.mxu0 0
    %3674 = vmatpush1.bf16.msra.mxu0 %v553
    %3675 = vmatprep.subr.bf16.mxu0 0
    %3676 = vmatpush1.bf16.msra.mxu0 %v552
    %3677 = vmatprep.subr.bf16.mxu0 0
    %3678 = vmatpush1.bf16.msra.mxu0 %v551
    %3679 = vmatprep.subr.bf16.mxu0 0
    %3680 = vmatpush1.bf16.msra.mxu0 %v550
    %3681 = vmatprep.subr.bf16.mxu0 0
    %3682 = vmatpush1.bf16.msra.mxu0 %v549
    %3683 = vmatprep.subr.bf16.mxu0 0
    %3684 = vmatpush1.bf16.msra.mxu0 %v548
    %3685 = vmatprep.subr.bf16.mxu0 0
    %3686 = vmatpush1.bf16.msra.mxu0 %v547
    %3687 = vmatprep.subr.bf16.mxu0 0
    %3688 = vmatpush2.bf16.msra.mxu0 0
    %3689 = vmatprep.subr.bf16.mxu0 0
    %3690 = vmatpush2.bf16.msra.mxu0 0
    %3691 = vmatprep.subr.bf16.mxu0 0
    %3692 = vmatpush2.bf16.msra.mxu0 0
    %3693 = vmatprep.subr.bf16.mxu0 0
    %3694 = vmatpush2.bf16.msra.mxu0 0
    %3695 = vmatprep.subr.bf16.mxu0 0
    %3696 = vmatpush2.bf16.msra.mxu0 0
    %3697 = vmatprep.subr.bf16.mxu0 0
    %3698 = vmatpush2.bf16.msra.mxu0 0
    %3699 = vmatprep.subr.bf16.mxu0 0
    %3700 = vmatpush2.bf16.msra.mxu0 0
    %3701 = vmatprep.subr.bf16.mxu0 0
    %3702 = vmatpush2.bf16.msra.mxu0 0
    %3703 = vmatprep.mubr.bf16.mxu0 0
    %3704 = vmatmul.mubr.bf16.gmra.mxu0 %v3670
    %v3705 = vpop.f32.mrf.mxu0
    %v3706 = vadd.f32 0.0, %v3705
    %v3707 = vpop.f32.mrf.mxu0
    %v3708 = vpop.f32.mrf.mxu0
    %v3709 = vadd.f32 0.0, %v3708
    %v3710 = vpop.f32.mrf.mxu0
    %3711 = vdwg.mxu0
    %v3712 = vpack.c.bf16 %v3709, %v3706
    %3713 = vmatprep.subr.bf16.mxu0 0
    %3714 = vmatpush1.bf16.msra.mxu0 0
    %3715 = vmatprep.subr.bf16.mxu0 0
    %3716 = vmatpush1.bf16.msra.mxu0 0
    %3717 = vmatprep.subr.bf16.mxu0 0
    %3718 = vmatpush1.bf16.msra.mxu0 0
    %3719 = vmatprep.subr.bf16.mxu0 0
    %3720 = vmatpush1.bf16.msra.mxu0 0
    %3721 = vmatprep.subr.bf16.mxu0 0
    %3722 = vmatpush1.bf16.msra.mxu0 0
    %3723 = vmatprep.subr.bf16.mxu0 0
    %3724 = vmatpush1.bf16.msra.mxu0 0
    %3725 = vmatprep.subr.bf16.mxu0 0
    %3726 = vmatpush1.bf16.msra.mxu0 0
    %3727 = vmatprep.subr.bf16.mxu0 0
    %3728 = vmatpush1.bf16.msra.mxu0 %v3712
    %3729 = vmatprep.subr.bf16.mxu0 0
    %3730 = vmatpush2.bf16.msra.mxu0 0
    %3731 = vmatprep.subr.bf16.mxu0 0
    %3732 = vmatpush2.bf16.msra.mxu0 0
    %3733 = vmatprep.subr.bf16.mxu0 0
    %3734 = vmatpush2.bf16.msra.mxu0 0
    %3735 = vmatprep.subr.bf16.mxu0 0
    %3736 = vmatpush2.bf16.msra.mxu0 0
    %3737 = vmatprep.subr.bf16.mxu0 0
    %3738 = vmatpush2.bf16.msra.mxu0 0
    %3739 = vmatprep.subr.bf16.mxu0 0
    %3740 = vmatpush2.bf16.msra.mxu0 0
    %3741 = vmatprep.subr.bf16.mxu0 0
    %3742 = vmatpush2.bf16.msra.mxu0 0
    %3743 = vmatprep.subr.bf16.mxu0 0
    %3744 = vmatpush2.bf16.msra.mxu0 0
    %3745 = vmatprep.mubr.bf16.mxu0 0
    %3746 = vmatmul.mubr.bf16.gmra.mxu0 %v268
    %v3747 = vpop.f32.mrf.mxu0
    %v3748 = vadd.f32 %v505, %v3747
    %v3749 = vpop.f32.mrf.mxu0
    %v3750 = vpop.f32.mrf.mxu0
    %v3751 = vadd.f32 %v505, %v3750
    %v3752 = vpop.f32.mrf.mxu0
    %3753 = vdwg.mxu0
    %v3754 = vmax.f32 %v3748, 0.0
    %v3755 = vmax.f32 %v3751, 0.0
    %v3756 = vand.u32 2147483647, %v3748
    %v3757 = vand.u32 2147483647, %v3751
    %v3758 = vsub.f32 0.0, %v3756
    %v3759 = vsub.f32 0.0, %v3757
    %v3760 = vmul.f32 %v3758, 1.442695
    %v3761 = vpow.pop %v3760
    %v3762 = vmul.f32 %v3759, 1.442695
    %v3763 = vpow.pop %v3762
    %v3764 = vadd.f32 %v3761, 1.0
    %v3765 = vlog2.pop %v3764
    %v3766 = vmul.f32 %v3765, 0.6931472
    %v3767 = vmul.f32 -0.5, %v3761
    %v3768 = vadd.f32 %v3767, 1.0
    %v3769 = vmul.f32 %v3768, %v3761
    %v3770 = vand.u32 2147483647, %v3761
    %vm3771 = vcmp.lt.f32.partialorder %v3770, 0.0004427343
    %v3772 = vsel %vm3771, %v3769, %v3766
    %v3773 = vadd.f32 %v3763, 1.0
    %v3774 = vlog2.pop %v3773
    %v3775 = vmul.f32 %v3774, 0.6931472
    %v3776 = vmul.f32 -0.5, %v3763
    %v3777 = vadd.f32 %v3776, 1.0
    %v3778 = vmul.f32 %v3777, %v3763
    %v3779 = vand.u32 2147483647, %v3763
    %vm3780 = vcmp.lt.f32.partialorder %v3779, 0.0004427343
    %v3781 = vsel %vm3780, %v3778, %v3775
    %v3782 = vadd.f32 %v3754, %v3772
    %v3783 = vadd.f32 %v3755, %v3781
    %v3784 = vpack.c.bf16 %v3783, %v3782
    %3785 = vmatprep.subr.bf16.mxu0 0
    %3786 = vmatpush1.bf16.msra.mxu0 %v716
    %3787 = vmatprep.subr.bf16.mxu0 0
    %3788 = vmatpush1.bf16.msra.mxu0 %v715
    %3789 = vmatprep.subr.bf16.mxu0 0
    %3790 = vmatpush1.bf16.msra.mxu0 %v714
    %3791 = vmatprep.subr.bf16.mxu0 0
    %3792 = vmatpush1.bf16.msra.mxu0 %v713
    %3793 = vmatprep.subr.bf16.mxu0 0
    %3794 = vmatpush1.bf16.msra.mxu0 %v712
    %3795 = vmatprep.subr.bf16.mxu0 0
    %3796 = vmatpush1.bf16.msra.mxu0 %v711
    %3797 = vmatprep.subr.bf16.mxu0 0
    %3798 = vmatpush1.bf16.msra.mxu0 %v710
    %3799 = vmatprep.subr.bf16.mxu0 0
    %3800 = vmatpush1.bf16.msra.mxu0 %v709
    %3801 = vmatprep.subr.bf16.mxu0 0
    %3802 = vmatpush2.bf16.msra.mxu0 0
    %3803 = vmatprep.subr.bf16.mxu0 0
    %3804 = vmatpush2.bf16.msra.mxu0 0
    %3805 = vmatprep.subr.bf16.mxu0 0
    %3806 = vmatpush2.bf16.msra.mxu0 0
    %3807 = vmatprep.subr.bf16.mxu0 0
    %3808 = vmatpush2.bf16.msra.mxu0 0
    %3809 = vmatprep.subr.bf16.mxu0 0
    %3810 = vmatpush2.bf16.msra.mxu0 0
    %3811 = vmatprep.subr.bf16.mxu0 0
    %3812 = vmatpush2.bf16.msra.mxu0 0
    %3813 = vmatprep.subr.bf16.mxu0 0
    %3814 = vmatpush2.bf16.msra.mxu0 0
    %3815 = vmatprep.subr.bf16.mxu0 0
    %3816 = vmatpush2.bf16.msra.mxu0 0
    %3817 = vmatprep.mubr.bf16.mxu0 0
    %3818 = vmatmul.mubr.bf16.gmra.mxu0 %v3784
    %v3819 = vpop.f32.mrf.mxu0
    %v3820 = vadd.f32 0.0, %v3819
    %v3821 = vpop.f32.mrf.mxu0
    %v3822 = vpop.f32.mrf.mxu0
    %v3823 = vadd.f32 0.0, %v3822
    %v3824 = vpop.f32.mrf.mxu0
    %3825 = vdwg.mxu0
    %v3826 = vpack.c.bf16 %v3823, %v3820
    %3827 = vmatprep.subr.bf16.mxu0 0
    %3828 = vmatpush1.bf16.msra.mxu0 0
    %3829 = vmatprep.subr.bf16.mxu0 0
    %3830 = vmatpush1.bf16.msra.mxu0 0
    %3831 = vmatprep.subr.bf16.mxu0 0
    %3832 = vmatpush1.bf16.msra.mxu0 0
    %3833 = vmatprep.subr.bf16.mxu0 0
    %3834 = vmatpush1.bf16.msra.mxu0 0
    %3835 = vmatprep.subr.bf16.mxu0 0
    %3836 = vmatpush1.bf16.msra.mxu0 0
    %3837 = vmatprep.subr.bf16.mxu0 0
    %3838 = vmatpush1.bf16.msra.mxu0 0
    %3839 = vmatprep.subr.bf16.mxu0 0
    %3840 = vmatpush1.bf16.msra.mxu0 0
    %3841 = vmatprep.subr.bf16.mxu0 0
    %3842 = vmatpush1.bf16.msra.mxu0 %v3826
    %3843 = vmatprep.subr.bf16.mxu0 0
    %3844 = vmatpush2.bf16.msra.mxu0 0
    %3845 = vmatprep.subr.bf16.mxu0 0
    %3846 = vmatpush2.bf16.msra.mxu0 0
    %3847 = vmatprep.subr.bf16.mxu0 0
    %3848 = vmatpush2.bf16.msra.mxu0 0
    %3849 = vmatprep.subr.bf16.mxu0 0
    %3850 = vmatpush2.bf16.msra.mxu0 0
    %3851 = vmatprep.subr.bf16.mxu0 0
    %3852 = vmatpush2.bf16.msra.mxu0 0
    %3853 = vmatprep.subr.bf16.mxu0 0
    %3854 = vmatpush2.bf16.msra.mxu0 0
    %3855 = vmatprep.subr.bf16.mxu0 0
    %3856 = vmatpush2.bf16.msra.mxu0 0
    %3857 = vmatprep.subr.bf16.mxu0 0
    %3858 = vmatpush2.bf16.msra.mxu0 0
    %3859 = vmatprep.mubr.bf16.mxu0 0
    %3860 = vmatmul.mubr.bf16.gmra.mxu0 %v268
    %v3861 = vpop.f32.mrf.mxu0
    %v3862 = vadd.f32 %v512, %v3861
    %v3863 = vpop.f32.mrf.mxu0
    %v3864 = vpop.f32.mrf.mxu0
    %v3865 = vadd.f32 %v512, %v3864
    %v3866 = vpop.f32.mrf.mxu0
    %3867 = vdwg.mxu0
    %v3868 = vmul.f32 %v3458, 2.0
    %v3869 = vmul.f32 %v3461, 2.0
    %v3870 = vadd.f32 %v3256, %v3868
    %v3871 = vadd.f32 %v3259, %v3869
    %v3872 = vmul.f32 %v3660, 2.0
    %v3873 = vmul.f32 %v3663, 2.0
    %v3874 = vadd.f32 %v3870, %v3872
    %v3875 = vadd.f32 %v3871, %v3873
    %v3876 = vadd.f32 %v3874, %v3862
    %v3877 = vadd.f32 %v3875, %v3865
    %v3878 = vmul.f32 %v3876, 0.041666668
    %v3879 = vmul.f32 %v3877, 0.041666668
    %v3880 = vadd.f32 %v3062, %v3878
    %v3881 = vadd.f32 %v3063, %v3879
    %v3882 = vld [vmem:[#allocation13] sm:$0xf]
    %v3883 = vld [vmem:[#allocation13 + $0x4] sm:$0xf]
    %v3884 = vld [vmem:[#allocation13 + $0x8] sm:$0xf]
    %v3885 = vld [vmem:[#allocation13 + $0xc] sm:$0xf]
    %v3886 = vld [vmem:[#allocation13 + $0x10] sm:$0xf]
    %v3887 = vld [vmem:[#allocation13 + $0x14] sm:$0xf]
    %v3888 = vld [vmem:[#allocation13 + $0x18] sm:$0xf]
    %v3889 = vld [vmem:[#allocation13 + $0x1c] sm:$0xf]
    %v3890 = vld [vmem:[#allocation13 + $0x20] sm:$0xf]
    %v3891 = vld [vmem:[#allocation13 + $0x24] sm:$0xf]
    %v3892 = vld [vmem:[#allocation13 + $0x28] sm:$0xf]
    %v3893 = vld [vmem:[#allocation13 + $0x2c] sm:$0xf]
    %v3894 = vld [vmem:[#allocation13 + $0x30] sm:$0xf]
    %v3895 = vld [vmem:[#allocation13 + $0x34] sm:$0xf]
    %v3896 = vld [vmem:[#allocation13 + $0x38] sm:$0xf]
    %v3897 = vld [vmem:[#allocation13 + $0x3c] sm:$0xf]
    %v3898 = vld [vmem:[%s11] sm:$0x1]
    %v3899 = vpack.c.bf16 %v3881, %v3880
    %v3916 = vunpack.c.l.b16 %v3882
    %v3917 = vunpack.c.l.b16 %v3883
    %v3918 = vunpack.c.l.b16 %v3884
    %v3919 = vunpack.c.l.b16 %v3885
    %v3920 = vunpack.c.l.b16 %v3886
    %v3921 = vunpack.c.l.b16 %v3887
    %v3922 = vunpack.c.l.b16 %v3888
    %v3923 = vunpack.c.l.b16 %v3889
    %v3924 = vunpack.c.l.b16 %v3890
    %v3925 = vunpack.c.l.b16 %v3891
    %v3926 = vunpack.c.l.b16 %v3892
    %v3927 = vunpack.c.l.b16 %v3893
    %v3928 = vunpack.c.l.b16 %v3894
    %v3929 = vunpack.c.l.b16 %v3895
    %v3930 = vunpack.c.l.b16 %v3896
    %v3931 = vunpack.c.l.b16 %v3897
    %v3932 = vpack.c.b16 %v3917, %v3916
    %v3933 = vpack.c.b16 %v3919, %v3918
    %v3934 = vpack.c.b16 %v3921, %v3920
    %v3935 = vpack.c.b16 %v3923, %v3922
    %v3936 = vpack.c.b16 %v3925, %v3924
    %v3937 = vpack.c.b16 %v3927, %v3926
    %v3938 = vpack.c.b16 %v3929, %v3928
    %v3939 = vpack.c.b16 %v3931, %v3930
    %3948 = vmatprep.subr.bf16.mxu0 0
    %3949 = vmatpush1.bf16.msra.mxu0 %v3939
    %3950 = vmatprep.subr.bf16.mxu0 0
    %3951 = vmatpush1.bf16.msra.mxu0 %v3938
    %3952 = vmatprep.subr.bf16.mxu0 0
    %3953 = vmatpush1.bf16.msra.mxu0 %v3937
    %3954 = vmatprep.subr.bf16.mxu0 0
    %3955 = vmatpush1.bf16.msra.mxu0 %v3936
    %3956 = vmatprep.subr.bf16.mxu0 0
    %3957 = vmatpush1.bf16.msra.mxu0 %v3935
    %3958 = vmatprep.subr.bf16.mxu0 0
    %3959 = vmatpush1.bf16.msra.mxu0 %v3934
    %3960 = vmatprep.subr.bf16.mxu0 0
    %3961 = vmatpush1.bf16.msra.mxu0 %v3933
    %3962 = vmatprep.subr.bf16.mxu0 0
    %3963 = vmatpush1.bf16.msra.mxu0 %v3932
    %3964 = vmatprep.subr.bf16.mxu0 0
    %3965 = vmatpush2.bf16.msra.mxu0 0
    %3966 = vmatprep.subr.bf16.mxu0 0
    %3967 = vmatpush2.bf16.msra.mxu0 0
    %3968 = vmatprep.subr.bf16.mxu0 0
    %3969 = vmatpush2.bf16.msra.mxu0 0
    %3970 = vmatprep.subr.bf16.mxu0 0
    %3971 = vmatpush2.bf16.msra.mxu0 0
    %3972 = vmatprep.subr.bf16.mxu0 0
    %3973 = vmatpush2.bf16.msra.mxu0 0
    %3974 = vmatprep.subr.bf16.mxu0 0
    %3975 = vmatpush2.bf16.msra.mxu0 0
    %3976 = vmatprep.subr.bf16.mxu0 0
    %3977 = vmatpush2.bf16.msra.mxu0 0
    %3978 = vmatprep.subr.bf16.mxu0 0
    %3979 = vmatpush2.bf16.msra.mxu0 0
    %3980 = vmatprep.mubr.bf16.mxu0 0
    %3981 = vmatmul.mubr.bf16.gmra.mxu0 %v3899
    %v3982 = vpop.f32.mrf.mxu0
    %v3983 = vadd.f32 0.0, %v3982
    %v3984 = vpop.f32.mrf.mxu0
    %v3985 = vpop.f32.mrf.mxu0
    %v3986 = vadd.f32 0.0, %v3985
    %v3987 = vpop.f32.mrf.mxu0
    %3988 = vdwg.mxu0
    %v3989 = vpack.c.bf16 %v3986, %v3983
    %v3991 = vlaneseq
    %v3992 = vshrl.u32 %v3991, 7
    %v3993 = vsub.s32 0, %v3992
    %v3994 = vrot.slane %v3898, %v3993
    %3996 = vmatprep.subr.bf16.mxu0 0
    %3997 = vmatpush1.bf16.msra.mxu0 0
    %3998 = vmatprep.subr.bf16.mxu0 0
    %3999 = vmatpush1.bf16.msra.mxu0 0
    %4000 = vmatprep.subr.bf16.mxu0 0
    %4001 = vmatpush1.bf16.msra.mxu0 0
    %4002 = vmatprep.subr.bf16.mxu0 0
    %4003 = vmatpush1.bf16.msra.mxu0 0
    %4004 = vmatprep.subr.bf16.mxu0 0
    %4005 = vmatpush1.bf16.msra.mxu0 0
    %4006 = vmatprep.subr.bf16.mxu0 0
    %4007 = vmatpush1.bf16.msra.mxu0 0
    %4008 = vmatprep.subr.bf16.mxu0 0
    %4009 = vmatpush1.bf16.msra.mxu0 0
    %4010 = vmatprep.subr.bf16.mxu0 0
    %4011 = vmatpush1.bf16.msra.mxu0 %v3989
    %4012 = vmatprep.subr.bf16.mxu0 0
    %4013 = vmatpush2.bf16.msra.mxu0 0
    %4014 = vmatprep.subr.bf16.mxu0 0
    %4015 = vmatpush2.bf16.msra.mxu0 0
    %4016 = vmatprep.subr.bf16.mxu0 0
    %4017 = vmatpush2.bf16.msra.mxu0 0
    %4018 = vmatprep.subr.bf16.mxu0 0
    %4019 = vmatpush2.bf16.msra.mxu0 0
    %4020 = vmatprep.subr.bf16.mxu0 0
    %4021 = vmatpush2.bf16.msra.mxu0 0
    %4022 = vmatprep.subr.bf16.mxu0 0
    %4023 = vmatpush2.bf16.msra.mxu0 0
    %4024 = vmatprep.subr.bf16.mxu0 0
    %4025 = vmatpush2.bf16.msra.mxu0 0
    %4026 = vmatprep.subr.bf16.mxu0 0
    %4027 = vmatpush2.bf16.msra.mxu0 0
    %4028 = vmatprep.mubr.bf16.mxu0 0
    %4029 = vmatmul.mubr.bf16.gmra.mxu0 %v268
    %v4030 = vpop.f32.mrf.mxu0
    %v4031 = vadd.f32 %v3994, %v4030
    %v4032 = vpop.f32.mrf.mxu0
    %v4033 = vpop.f32.mrf.mxu0
    %v4034 = vadd.f32 %v3994, %v4033
    %v4035 = vpop.f32.mrf.mxu0
    %4036 = vdwg.mxu0
    %4037 = vst [vmem:[#allocation14] sm:$0xff] %v4031
    %4038 = vst [vmem:[#allocation14 + $0x8] sm:$0xff] %v4034
    // Predicated region
    $region78: #{tpu_custom_call.1} parent=1 // pred_check
      _
    $region79: #{tpu_custom_call.1} parent=1 // pred_check_branch
      %4040 = sbr.rel (0) target = $region81
    $region80: #{tpu_custom_call.1} parent=1 // pred_region
      %s4042 = ssub.s32 256, 256
      %4043 = vsyncadd [#allocation4], %s4042
      %s4044 = sshll.u32 [#allocation14], 4
      %s4045 = int_to_ptr.vmem [resolvable:$true] %s4044
      %4050 = dma.vmem_to_hbm [thread:$0]  %s4045, 256, %s12, [#allocation4], 128, 128, 8
    $region81: #{tpu_custom_call.1} parent=1 // pred_fallthru
      _
    // Predicated region
    $region82: #{tpu_custom_call.1} parent=1 // pred_check
      _
    $region83: #{tpu_custom_call.1} parent=1 // pred_check_branch
      %4052 = sbr.rel (0) target = $region85
    $region84: #{tpu_custom_call.1} parent=1 // pred_region
      %4053 = dma.done [#allocation4], 256
    $region85: #{tpu_custom_call.1} parent=1 // pred_fallthru
      _
    %4054 = vsyncpa [#allocation3], 1
    %4055 = vsyncpa [#allocation6], 1
    %4056 = vsyncpa [#allocation9], 1
    %4057 = vsyncpa [#allocation12], 1
    %4058 = vsyncpa [#allocation4], 1

</llo_original>
